<compile_context>
chip_gen: v6e
topology: v6e:2x2x1
jax: 0.10.0
libtpu: 0.0.40
codegen_flags: <defaults>
</compile_context>

<pallas_src>
import math

import jax
import jax.numpy as jnp
from jax.experimental import pallas as pl
from jax.experimental.pallas import tpu as pltpu


def _ban_kernel(scal_ref,                        # SMEM (2,): weight-norm scales (s_v, s_q)
                v_ref, q_ref,                    # (Bt, Nvp, v_dim), (Bt, Nqp, q_dim)
                wv_ref, bv_ref, wq_ref, bq_ref,  # resident FC weights / biases
                hmat_ref, hbias_ref,             # (h_out+1, K) cdt, (h_out+1, 1, 1) f32
                vmask_ref, qmask_ref,            # (Nvp, 1), (Nqp, 1) f32 row-validity masks
                pool_ref,                        # (K, h_dim) cdt 0/1 grouped-sum matrix
                bn_scale_ref, bn_shift_ref,      # (1, h_dim) f32 folded eval BatchNorm
                logits_ref, att_ref):            # (Bt, h_dim), (Bt, h_out, Nvp, Nqp)
    bt, nvp, v_dim = v_ref.shape
    _, nqp, q_dim = q_ref.shape
    kdim = wv_ref.shape[1]
    h_out = att_ref.shape[1]
    cdt = wv_ref.dtype                 # MXU input dtype (bf16 fast path / f32 exact path)

    s_v = scal_ref[0]
    s_q = scal_ref[1]

    # ---- FCNet (eval): weight-normed Linear + ReLU, batched over the Bt block ----
    # weight-norm scale is applied to the matmul OUTPUT; accumulation stays f32.
    xv = v_ref[...].reshape(bt * nvp, v_dim).astype(cdt)
    xq = q_ref[...].reshape(bt * nqp, q_dim).astype(cdt)
    v_all = jnp.dot(xv, wv_ref[...], preferred_element_type=jnp.float32)
    v_all = jnp.maximum(v_all * s_v + bv_ref[...], 0.0)        # [Bt*Nvp, K] f32
    q_all = jnp.dot(xq, wq_ref[...], preferred_element_type=jnp.float32)
    q_all = jnp.maximum(q_all * s_q + bq_ref[...], 0.0)        # [Bt*Nqp, K] f32
    # Dropout(p) in eval mode == identity.

    hmat = hmat_ref[...]               # [(h_out+1), K]; last row = sum over heads
    hbias = hbias_ref[...]             # [(h_out+1), 1, 1]; last entry = sum of head biases
    vmask = vmask_ref[...]
    qmask = qmask_ref[...]

    fusion_rows = []
    for b in range(bt):                # small static batch block
        # zero the padded rows so padding never leaks into att_maps or the fusion sum
        vf = v_all[b * nvp:(b + 1) * nvp] * vmask               # [Nvp, K] f32
        qf = q_all[b * nqp:(b + 1) * nqp] * qmask               # [Nqp, K] f32
        vb = vf.astype(cdt)
        qb = qf.astype(cdt)

        # Batched bilinear heads (+ one appended "sum over heads" row): single MXU matmul
        # with M = (h_out+1)*Nvp instead of h_out tiny matmuls.
        vh = (hmat[:, None, :] * vb[None, :, :]).reshape((h_out + 1) * nvp, kdim)
        att_all = jax.lax.dot_general(
            vh, qb, (((1,), (1,)), ((), ())),
            preferred_element_type=jnp.float32)                 # [(h_out+1)*Nvp, Nqp]
        att_all = att_all.reshape(h_out + 1, nvp, nqp) + hbias

        att_ref[b] = att_all[:h_out].astype(att_ref.dtype)      # one bulk lane-dense store
        att_sum = att_all[h_out]                                # sum_h att_h (incl. biases)

        # attention pooling: fusion[k] = sum_{i,j} v_[i,k] * att_sum[i,j] * q_[j,k]
        t = jnp.dot(att_sum.astype(cdt), qb, preferred_element_type=jnp.float32)  # [Nvp, K]
        fusion_rows.append(jnp.sum(vf * t, axis=0, keepdims=True))                # [1, K]

    fusion = jnp.concatenate(fusion_rows, axis=0)               # [Bt, K]
    # AvgPool1d(k, stride=k) * k == grouped lane sum == one matmul with a 0/1 matrix.
    logits = jnp.dot(fusion.astype(cdt), pool_ref[...], preferred_element_type=jnp.float32)
    # eval-mode BatchNorm1d folded to scale/shift in the wrapper.
    logits_ref[...] = (logits * bn_scale_ref[...] + bn_shift_ref[...]).astype(logits_ref.dtype)


def _round_up(n, m):
    return ((n + m - 1) // m) * m


def _nbytes(shape, dtype):
    return math.prod(shape) * jnp.dtype(dtype).itemsize


def ban_layer(v, q, vv_t, vb, vg, qv_t, qb, qg, h_mat, h_bias,
              bn_gamma, bn_beta, bn_mean, bn_var, *,
              k=3, eps=1e-5, batch_block=1,
              compute_dtype=jnp.bfloat16, att_dtype=jnp.float32):
    """BANLayer forward (eval, softmax=False, h_out <= 32 branch).

    v: [B, Nv, v_dim], q: [B, Nq, q_dim].
    vv_t/qv_t: weight_norm "v" tensors stored transposed as [in_dim, h_dim*k]; vg/qg gains.
    h_mat: [1, h_out, 1, h_dim*k], h_bias: [1, h_out, 1, 1].
    compute_dtype: MXU matmul input dtype (bf16 = fast path, f32 = exact path).
    att_dtype: dtype of the returned attention maps (bf16 halves HBM write traffic).
    Returns (logits [B, h_dim] f32, att_maps [B, h_out, Nv, Nq] att_dtype).
    """
    B, Nv, v_dim = v.shape
    _, Nq, q_dim = q.shape
    K = vv_t.shape[1]
    assert K % k == 0
    h_dim = K // k
    h_out = h_mat.shape[1]
    assert h_out <= 32, "h_out > 32 (h_net branch) not implemented"

    f32 = jnp.float32
    cdt = jnp.dtype(compute_dtype)

    bt = max(1, min(int(batch_block), B))
    Bp = _round_up(B, bt)                 # batch padded to a multiple of the batch block
    Nvp = _round_up(Nv, 8)                # sublane-align att's second-minor dim
    Nqp = _round_up(Nq, 128)              # lane-dense att stores (biggest single lever)
    assert Bp % bt == 0

    vpad = jnp.pad(v.astype(f32), ((0, Bp - B), (0, Nvp - Nv), (0, 0)))
    qpad = jnp.pad(q.astype(f32), ((0, Bp - B), (0, Nqp - Nq), (0, 0)))

    # weight_norm (dim=None): scale the matmul OUTPUT by g/||V||_F, computed once in f32.
    s_v = vg / jnp.sqrt(jnp.sum(vv_t.astype(f32) ** 2))
    s_q = qg / jnp.sqrt(jnp.sum(qv_t.astype(f32) ** 2))
    scales = jnp.stack([s_v, s_q]).astype(f32)                  # -> SMEM

    wv = vv_t.astype(cdt)                                       # MXU input dtype
    wq = qv_t.astype(cdt)
    bv2 = vb.reshape(1, K).astype(f32)
    bq2 = qb.reshape(1, K).astype(f32)

    hmat2 = h_mat.reshape(h_out, K).astype(f32)
    hmat_ext = jnp.concatenate([hmat2, hmat2.sum(0, keepdims=True)], 0).astype(cdt)
    hb2 = h_bias.reshape(h_out, 1).astype(f32)
    hbias_ext = jnp.concatenate([hb2, hb2.sum(0, keepdims=True)], 0).reshape(h_out + 1, 1, 1)

    # row-validity masks (1 for real rows, 0 for padding)
    vmask = (jnp.arange(Nvp) < Nv).astype(f32).reshape(Nvp, 1)
    qmask = (jnp.arange(Nqp) < Nq).astype(f32).reshape(Nqp, 1)

    # 0/1 pooling matrix implementing AvgPool1d(k, stride=k) * k, stored in compute dtype.
    pool = (jnp.arange(K)[:, None] // k == jnp.arange(h_dim)[None, :]).astype(cdt)

    # eval BatchNorm1d folded into a single scale/shift.
    inv_std = 1.0 / jnp.sqrt(bn_var.astype(f32) + eps)
    bn_scale = (bn_gamma * inv_std).reshape(1, h_dim).astype(f32)
    bn_shift = (bn_beta - bn_mean * bn_gamma * inv_std).reshape(1, h_dim).astype(f32)

    resident = [
        (wv, (v_dim, K)), (bv2, (1, K)), (wq, (q_dim, K)), (bq2, (1, K)),
        (hmat_ext, (h_out + 1, K)), (hbias_ext, (h_out + 1, 1, 1)),
        (vmask, (Nvp, 1)), (qmask, (Nqp, 1)),
        (pool, (K, h_dim)), (bn_scale, (1, h_dim)), (bn_shift, (1, h_dim)),
    ]

    # --- VMEM re-budget (tight on v7x: 64 MiB physical; generous on v5e/v6e) ---
    est = sum(_nbytes(s, a.dtype) for a, s in resident) * 2      # worst case: double buffered
    est += 2 * (_nbytes((bt, Nvp, v_dim), f32) + _nbytes((bt, Nqp, q_dim), f32))
    est += 2 * (_nbytes((bt, h_dim), f32) + _nbytes((bt, h_out, Nvp, Nqp), att_dtype))
    est += 3 * _nbytes(((h_out + 1) * Nvp, max(Nqp, K)), f32)    # vh / att_all / FC slack
    vmem_limit = int(min(max(2 * est, 32 * 1024 * 1024), 48 * 1024 * 1024))

    grid = (Bp // bt,)

    def run(weight_pipeline_mode):
        def res_spec(shape):
            idx = lambda b, _n=len(shape): (0,) * _n
            if weight_pipeline_mode is None:
                return pl.BlockSpec(shape, idx)
            return pl.BlockSpec(shape, idx, pipeline_mode=weight_pipeline_mode)

        in_specs = [
            pl.BlockSpec(memory_space=pltpu.MemorySpace.SMEM),           # weight-norm scales
            pl.BlockSpec((bt, Nvp, v_dim), lambda b: (b, 0, 0)),         # v (per-step tile)
            pl.BlockSpec((bt, Nqp, q_dim), lambda b: (b, 0, 0)),         # q (per-step tile)
        ] + [res_spec(s) for _, s in resident]                           # resident operands

        out_specs = [
            pl.BlockSpec((None, bt, h_dim), lambda b: (b, 0, 0)),        # logits
            pl.BlockSpec((bt, h_out, Nvp, Nqp), lambda b: (b, 0, 0, 0)),  # att_maps
        ]
        out_shape = [
            jax.ShapeDtypeStruct((Bp // bt, bt, h_dim), f32),
            jax.ShapeDtypeStruct((Bp, h_out, Nvp, Nqp), jnp.dtype(att_dtype)),
        ]
        return pl.pallas_call(
            _ban_kernel,
            grid=grid,
            in_specs=in_specs,
            out_specs=out_specs,
            out_shape=out_shape,
            compiler_params=pltpu.CompilerParams(
                dimension_semantics=("parallel",),       # batch axis -> megacore on v7x
                vmem_limit_bytes=vmem_limit,
            ),
        )(scales, vpad, qpad, *[a for a, _ in resident])

    try:
        # Grid-invariant operands never change across steps: single-buffer them to halve
        # the resident-weight VMEM footprint (most important on v7x's 64 MiB).
        logits_p, att_p = run(pl.Buffered(1))
    except Exception:   # pragma: no cover - fallback for jax without pipeline_mode support
        logits_p, att_p = run(None)

    logits = logits_p.reshape(Bp, h_dim)[:B]
    att = att_p[:B, :, :Nv, :Nq]
    return logits, att


def ban_layer_ref(v, q, vv_t, vb, vg, qv_t, qb, qg, h_mat, h_bias,
                  bn_gamma, bn_beta, bn_mean, bn_var, *, k=3, eps=1e-5):
    """Pure-JAX reference mirroring the PyTorch forward (eval, softmax=False)."""
    B = v.shape[0]
    K = vv_t.shape[1]
    h_dim = K // k
    h_out = h_mat.shape[1]
    hi = jax.lax.Precision.HIGHEST
    wv = vg * vv_t / jnp.sqrt(jnp.sum(vv_t ** 2))
    wq = qg * qv_t / jnp.sqrt(jnp.sum(qv_t ** 2))
    v_ = jnp.maximum(jnp.einsum('bnd,dk->bnk', v, wv, precision=hi) + vb, 0.0)
    q_ = jnp.maximum(jnp.einsum('bnd,dk->bnk', q, wq, precision=hi) + qb, 0.0)
    att = jnp.einsum('hk,bvk,bqk->bhvq', h_mat.reshape(h_out, K), v_, q_, precision=hi) \
        + h_bias.reshape(1, h_out, 1, 1)
    logits = None
    for i in range(h_out):                                     # per-head pooling, then sum
        fus = jnp.einsum('bvk,bvq,bqk->bk', v_, att[:, i], q_, precision=hi)
        fus = fus.reshape(B, h_dim, k).sum(-1)                 # AvgPool1d(k, k) * k
        logits = fus if logits is None else logits + fus
    logits = (logits - bn_mean) / jnp.sqrt(bn_var + eps) * bn_gamma + bn_beta
    return logits, att


if __name__ == "__main__":
    # Small shapes consistent with BANLayer: v [B, Nv, v_dim], q [B, Nq, q_dim].
    B, Nv, Nq = 4, 8, 6
    v_dim, q_dim, h_dim, h_out, k = 16, 24, 8, 4, 3
    K = h_dim * k

    key = jax.random.PRNGKey(0)
    ks = jax.random.split(key, 12)

    v = jax.random.normal(ks[0], (B, Nv, v_dim), jnp.float32)
    q = jax.random.normal(ks[1], (B, Nq, q_dim), jnp.float32)
    vv_t = jax.random.normal(ks[2], (v_dim, K), jnp.float32) * 0.1   # weight_norm "v", [in,out]
    vb = jax.random.normal(ks[3], (K,), jnp.float32) * 0.1
    qv_t = jax.random.normal(ks[4], (q_dim, K), jnp.float32) * 0.1
    qb = jax.random.normal(ks[5], (K,), jnp.float32) * 0.1
    vg, qg = 1.3, 0.7                                                # weight-norm scalar gains
    h_mat = jax.random.normal(ks[6], (1, h_out, 1, K), jnp.float32)
    h_bias = jax.random.normal(ks[7], (1, h_out, 1, 1), jnp.float32)
    bn_gamma = 1.0 + 0.1 * jax.random.normal(ks[8], (h_dim,), jnp.float32)
    bn_beta = 0.1 * jax.random.normal(ks[9], (h_dim,), jnp.float32)
    bn_mean = 0.1 * jax.random.normal(ks[10], (h_dim,), jnp.float32)
    bn_var = 1.0 + 0.1 * jax.random.uniform(ks[11], (h_dim,), jnp.float32)

    ref_logits, ref_att = ban_layer_ref(v, q, vv_t, vb, vg, qv_t, qb, qg, h_mat, h_bias,
                                        bn_gamma, bn_beta, bn_mean, bn_var, k=k)

    # Exact path: f32 MXU matmuls (multi-pass), f32 att_maps — tight check.
    logits32, att32 = ban_layer(v, q, vv_t, vb, vg, qv_t, qb, qg, h_mat, h_bias,
                                bn_gamma, bn_beta, bn_mean, bn_var, k=k,
                                batch_block=2, compute_dtype=jnp.float32,
                                att_dtype=jnp.float32)
    logits32, att32 = jax.block_until_ready((logits32, att32))
    assert logits32.shape == (B, h_dim)
    assert att32.shape == (B, h_out, Nv, Nq)
    assert jnp.allclose(att32, ref_att, atol=2e-3, rtol=2e-3), "att_maps mismatch (f32 path)"
    assert jnp.allclose(logits32, ref_logits, atol=2e-3, rtol=2e-3), "logits mismatch (f32 path)"

    # Fast path: bf16 MXU matmuls (f32 accumulate) + bf16 att_maps output — loose check.
    logits_bf, att_bf = ban_layer(v, q, vv_t, vb, vg, qv_t, qb, qg, h_mat, h_bias,
                                  bn_gamma, bn_beta, bn_mean, bn_var, k=k,
                                  batch_block=2, compute_dtype=jnp.bfloat16,
                                  att_dtype=jnp.bfloat16)
    logits_bf, att_bf = jax.block_until_ready((logits_bf, att_bf))
    assert logits_bf.shape == (B, h_dim)
    assert att_bf.shape == (B, h_out, Nv, Nq)
    assert jnp.allclose(att_bf.astype(jnp.float32), ref_att, atol=0.15, rtol=0.1), \
        "att_maps mismatch (bf16 path)"
    assert jnp.allclose(logits_bf, ref_logits, atol=0.2, rtol=0.1), "logits mismatch (bf16 path)"

    print("KERNEL_OK")
</pallas_src>

<mosaic_0001>
module attributes {stable_mosaic.version = 11 : i64} {
  func.func @_ban_kernel(%arg0: i32, %arg1: memref<2xf32, #tpu.memory_space<smem>>, %arg2: memref<2x8x16xf32, #tpu.memory_space<vmem>>, %arg3: memref<2x128x24xf32, #tpu.memory_space<vmem>>, %arg4: memref<16x24xf32, #tpu.memory_space<vmem>>, %arg5: memref<1x24xf32, #tpu.memory_space<vmem>>, %arg6: memref<24x24xf32, #tpu.memory_space<vmem>>, %arg7: memref<1x24xf32, #tpu.memory_space<vmem>>, %arg8: memref<5x24xf32, #tpu.memory_space<vmem>>, %arg9: memref<5x1x1xf32, #tpu.memory_space<vmem>>, %arg10: memref<8x1xf32, #tpu.memory_space<vmem>>, %arg11: memref<128x1xf32, #tpu.memory_space<vmem>>, %arg12: memref<24x8xf32, #tpu.memory_space<vmem>>, %arg13: memref<1x8xf32, #tpu.memory_space<vmem>>, %arg14: memref<1x8xf32, #tpu.memory_space<vmem>>, %arg15: memref<1x2x8xf32, #tpu.memory_space<vmem>>, %arg16: memref<2x4x8x128xf32, #tpu.memory_space<vmem>>) attributes {dimension_semantics = [#tpu.dimension_semantics<parallel>], iteration_bounds = array<i64: 2>, scalar_prefetch = 0 : i64, scratch_operands = 0 : i64, tpu.core_type = #tpu.core_type<tc>, window_params = [{transform_indices = @transform_0, window_bounds = array<i64: 2>}, {transform_indices = @transform_1, window_bounds = array<i64: 2, 8, 16>}, {transform_indices = @transform_2, window_bounds = array<i64: 2, 128, 24>}, {pipeline_mode = #tpu.pipeline_mode<synchronous>, transform_indices = @transform_3, window_bounds = array<i64: 16, 24>}, {pipeline_mode = #tpu.pipeline_mode<synchronous>, transform_indices = @transform_4, window_bounds = array<i64: 1, 24>}, {pipeline_mode = #tpu.pipeline_mode<synchronous>, transform_indices = @transform_5, window_bounds = array<i64: 24, 24>}, {pipeline_mode = #tpu.pipeline_mode<synchronous>, transform_indices = @transform_6, window_bounds = array<i64: 1, 24>}, {pipeline_mode = #tpu.pipeline_mode<synchronous>, transform_indices = @transform_7, window_bounds = array<i64: 5, 24>}, {pipeline_mode = #tpu.pipeline_mode<synchronous>, transform_indices = @transform_8, window_bounds = array<i64: 5, 1, 1>}, {pipeline_mode = #tpu.pipeline_mode<synchronous>, transform_indices = @transform_9, window_bounds = array<i64: 8, 1>}, {pipeline_mode = #tpu.pipeline_mode<synchronous>, transform_indices = @transform_10, window_bounds = array<i64: 128, 1>}, {pipeline_mode = #tpu.pipeline_mode<synchronous>, transform_indices = @transform_11, window_bounds = array<i64: 24, 8>}, {pipeline_mode = #tpu.pipeline_mode<synchronous>, transform_indices = @transform_12, window_bounds = array<i64: 1, 8>}, {pipeline_mode = #tpu.pipeline_mode<synchronous>, transform_indices = @transform_13, window_bounds = array<i64: 1, 8>}, {transform_indices = @transform_14, window_bounds = array<i64: 1, 2, 8>}, {transform_indices = @transform_15, window_bounds = array<i64: 2, 4, 8, 128>}]} {
    %c0 = arith.constant 0 : index
    %0 = memref.load %arg1[%c0] : memref<2xf32, #tpu.memory_space<smem>>
    %c1 = arith.constant 1 : index
    %1 = memref.load %arg1[%c1] : memref<2xf32, #tpu.memory_space<smem>>
    %c0_0 = arith.constant 0 : index
    %c0_1 = arith.constant 0 : index
    %c0_2 = arith.constant 0 : index
    %2 = vector.load %arg2[%c0_0, %c0_1, %c0_2] : memref<2x8x16xf32, #tpu.memory_space<vmem>>, vector<2x8x16xf32>
    %3 = vector.shape_cast %2 : vector<2x8x16xf32> to vector<16x16xf32>
    %c0_3 = arith.constant 0 : index
    %c0_4 = arith.constant 0 : index
    %c0_5 = arith.constant 0 : index
    %4 = vector.load %arg3[%c0_3, %c0_4, %c0_5] : memref<2x128x24xf32, #tpu.memory_space<vmem>>, vector<2x128x24xf32>
    %5 = vector.shape_cast %4 : vector<2x128x24xf32> to vector<256x24xf32>
    %c0_6 = arith.constant 0 : index
    %c0_7 = arith.constant 0 : index
    %6 = vector.load %arg4[%c0_6, %c0_7] : memref<16x24xf32, #tpu.memory_space<vmem>>, vector<16x24xf32>
    %cst = arith.constant dense<0.000000e+00> : vector<16x24xf32>
    %7 = tpu.matmul %3, %6, %cst {dimension_numbers = #tpu.dot_dimension_numbers<[1], [0], [0], [1], [0, 0, 1, 1], [], []>} : vector<16x16xf32>, vector<16x24xf32>, vector<16x24xf32> -> vector<16x24xf32>
    %8 = vector.broadcast %0 : f32 to vector<16x24xf32>
    %9 = arith.mulf %7, %8 : vector<16x24xf32>
    %c0_8 = arith.constant 0 : index
    %c0_9 = arith.constant 0 : index
    %10 = vector.load %arg5[%c0_8, %c0_9] : memref<1x24xf32, #tpu.memory_space<vmem>>, vector<1x24xf32>
    %11 = vector.broadcast %10 : vector<1x24xf32> to vector<16x24xf32>
    %12 = arith.addf %9, %11 : vector<16x24xf32>
    %cst_10 = arith.constant 0.000000e+00 : f32
    %13 = vector.broadcast %cst_10 : f32 to vector<16x24xf32>
    %14 = arith.maximumf %12, %13 : vector<16x24xf32>
    %c0_11 = arith.constant 0 : index
    %c0_12 = arith.constant 0 : index
    %15 = vector.load %arg6[%c0_11, %c0_12] : memref<24x24xf32, #tpu.memory_space<vmem>>, vector<24x24xf32>
    %cst_13 = arith.constant dense<0.000000e+00> : vector<256x24xf32>
    %16 = tpu.matmul %5, %15, %cst_13 {dimension_numbers = #tpu.dot_dimension_numbers<[1], [0], [0], [1], [0, 0, 1, 1], [], []>} : vector<256x24xf32>, vector<24x24xf32>, vector<256x24xf32> -> vector<256x24xf32>
    %17 = vector.broadcast %1 : f32 to vector<256x24xf32>
    %18 = arith.mulf %16, %17 : vector<256x24xf32>
    %c0_14 = arith.constant 0 : index
    %c0_15 = arith.constant 0 : index
    %19 = vector.load %arg7[%c0_14, %c0_15] : memref<1x24xf32, #tpu.memory_space<vmem>>, vector<1x24xf32>
    %20 = vector.broadcast %19 : vector<1x24xf32> to vector<256x24xf32>
    %21 = arith.addf %18, %20 : vector<256x24xf32>
    %cst_16 = arith.constant 0.000000e+00 : f32
    %22 = vector.broadcast %cst_16 : f32 to vector<256x24xf32>
    %23 = arith.maximumf %21, %22 : vector<256x24xf32>
    %c0_17 = arith.constant 0 : index
    %c0_18 = arith.constant 0 : index
    %24 = vector.load %arg8[%c0_17, %c0_18] : memref<5x24xf32, #tpu.memory_space<vmem>>, vector<5x24xf32>
    %c0_19 = arith.constant 0 : index
    %c0_20 = arith.constant 0 : index
    %c0_21 = arith.constant 0 : index
    %25 = vector.load %arg9[%c0_19, %c0_20, %c0_21] : memref<5x1x1xf32, #tpu.memory_space<vmem>>, vector<5x1x1xf32>
    %c0_22 = arith.constant 0 : index
    %c0_23 = arith.constant 0 : index
    %26 = vector.load %arg10[%c0_22, %c0_23] : memref<8x1xf32, #tpu.memory_space<vmem>>, vector<8x1xf32>
    %c0_24 = arith.constant 0 : index
    %c0_25 = arith.constant 0 : index
    %27 = vector.load %arg11[%c0_24, %c0_25] : memref<128x1xf32, #tpu.memory_space<vmem>>, vector<128x1xf32>
    %28 = vector.extract_strided_slice %14 {offsets = [0, 0], sizes = [8, 24], strides = [1, 1]} : vector<16x24xf32> to vector<8x24xf32>
    %29 = vector.broadcast %26 : vector<8x1xf32> to vector<8x24xf32>
    %30 = arith.mulf %28, %29 : vector<8x24xf32>
    %31 = vector.extract_strided_slice %23 {offsets = [0, 0], sizes = [128, 24], strides = [1, 1]} : vector<256x24xf32> to vector<128x24xf32>
    %32 = vector.broadcast %27 : vector<128x1xf32> to vector<128x24xf32>
    %33 = arith.mulf %31, %32 : vector<128x24xf32>
    %34 = vector.shape_cast %24 : vector<5x24xf32> to vector<5x1x24xf32>
    %35 = vector.shape_cast %30 : vector<8x24xf32> to vector<1x8x24xf32>
    %36 = vector.broadcast %34 : vector<5x1x24xf32> to vector<5x8x24xf32>
    %37 = vector.broadcast %35 : vector<1x8x24xf32> to vector<5x8x24xf32>
    %38 = arith.mulf %36, %37 : vector<5x8x24xf32>
    %39 = vector.shape_cast %38 : vector<5x8x24xf32> to vector<40x24xf32>
    %cst_26 = arith.constant dense<0.000000e+00> : vector<40x128xf32>
    %40 = tpu.matmul %39, %33, %cst_26 {dimension_numbers = #tpu.dot_dimension_numbers<[1], [1], [0], [0], [0, 0, 1, 0], [], []>} : vector<40x24xf32>, vector<128x24xf32>, vector<40x128xf32> -> vector<40x128xf32>
    %41 = vector.shape_cast %40 : vector<40x128xf32> to vector<5x8x128xf32>
    %42 = vector.broadcast %25 : vector<5x1x1xf32> to vector<5x8x128xf32>
    %43 = arith.addf %41, %42 : vector<5x8x128xf32>
    %44 = vector.extract_strided_slice %43 {offsets = [0, 0, 0], sizes = [4, 8, 128], strides = [1, 1, 1]} : vector<5x8x128xf32> to vector<4x8x128xf32>
    %c0_27 = arith.constant 0 : index
    %c0_28 = arith.constant 0 : index
    %c0_29 = arith.constant 0 : index
    %c0_30 = arith.constant 0 : index
    %45 = vector.load %arg16[%c0_27, %c0_28, %c0_29, %c0_30] : memref<2x4x8x128xf32, #tpu.memory_space<vmem>>, vector<1x4x8x128xf32>
    %46 = vector.shape_cast %45 : vector<1x4x8x128xf32> to vector<4x8x128xf32>
    %47 = vector.shape_cast %44 : vector<4x8x128xf32> to vector<1x4x8x128xf32>
    tpu.vector_store %arg16[%c0_27, %c0_28, %c0_29, %c0_30], %47 {strides = array<i32>} : memref<2x4x8x128xf32, #tpu.memory_space<vmem>>, vector<1x4x8x128xf32>,
    %48 = vector.extract_strided_slice %43 {offsets = [4, 0, 0], sizes = [1, 8, 128], strides = [1, 1, 1]} : vector<5x8x128xf32> to vector<1x8x128xf32>
    %49 = vector.shape_cast %48 : vector<1x8x128xf32> to vector<8x128xf32>
    %cst_31 = arith.constant dense<0.000000e+00> : vector<8x24xf32>
    %50 = tpu.matmul %49, %33, %cst_31 {dimension_numbers = #tpu.dot_dimension_numbers<[1], [0], [0], [1], [0, 0, 1, 1], [], []>} : vector<8x128xf32>, vector<128x24xf32>, vector<8x24xf32> -> vector<8x24xf32>
    %51 = arith.mulf %30, %50 : vector<8x24xf32>
    %cst_32 = arith.constant dense<0.000000e+00> : vector<24xf32>
    %52 = vector.multi_reduction <add>, %51, %cst_32 [0] : vector<8x24xf32> to vector<24xf32>
    %53 = vector.shape_cast %52 : vector<24xf32> to vector<1x24xf32>
    %54 = vector.extract_strided_slice %14 {offsets = [8, 0], sizes = [8, 24], strides = [1, 1]} : vector<16x24xf32> to vector<8x24xf32>
    %55 = vector.broadcast %26 : vector<8x1xf32> to vector<8x24xf32>
    %56 = arith.mulf %54, %55 : vector<8x24xf32>
    %57 = vector.extract_strided_slice %23 {offsets = [128, 0], sizes = [128, 24], strides = [1, 1]} : vector<256x24xf32> to vector<128x24xf32>
    %58 = vector.broadcast %27 : vector<128x1xf32> to vector<128x24xf32>
    %59 = arith.mulf %57, %58 : vector<128x24xf32>
    %60 = vector.shape_cast %24 : vector<5x24xf32> to vector<5x1x24xf32>
    %61 = vector.shape_cast %56 : vector<8x24xf32> to vector<1x8x24xf32>
    %62 = vector.broadcast %60 : vector<5x1x24xf32> to vector<5x8x24xf32>
    %63 = vector.broadcast %61 : vector<1x8x24xf32> to vector<5x8x24xf32>
    %64 = arith.mulf %62, %63 : vector<5x8x24xf32>
    %65 = vector.shape_cast %64 : vector<5x8x24xf32> to vector<40x24xf32>
    %cst_33 = arith.constant dense<0.000000e+00> : vector<40x128xf32>
    %66 = tpu.matmul %65, %59, %cst_33 {dimension_numbers = #tpu.dot_dimension_numbers<[1], [1], [0], [0], [0, 0, 1, 0], [], []>} : vector<40x24xf32>, vector<128x24xf32>, vector<40x128xf32> -> vector<40x128xf32>
    %67 = vector.shape_cast %66 : vector<40x128xf32> to vector<5x8x128xf32>
    %68 = vector.broadcast %25 : vector<5x1x1xf32> to vector<5x8x128xf32>
    %69 = arith.addf %67, %68 : vector<5x8x128xf32>
    %70 = vector.extract_strided_slice %69 {offsets = [0, 0, 0], sizes = [4, 8, 128], strides = [1, 1, 1]} : vector<5x8x128xf32> to vector<4x8x128xf32>
    %c1_34 = arith.constant 1 : index
    %c0_35 = arith.constant 0 : index
    %c0_36 = arith.constant 0 : index
    %c0_37 = arith.constant 0 : index
    %71 = vector.load %arg16[%c1_34, %c0_35, %c0_36, %c0_37] : memref<2x4x8x128xf32, #tpu.memory_space<vmem>>, vector<1x4x8x128xf32>
    %72 = vector.shape_cast %71 : vector<1x4x8x128xf32> to vector<4x8x128xf32>
    %73 = vector.shape_cast %70 : vector<4x8x128xf32> to vector<1x4x8x128xf32>
    tpu.vector_store %arg16[%c1_34, %c0_35, %c0_36, %c0_37], %73 {strides = array<i32>} : memref<2x4x8x128xf32, #tpu.memory_space<vmem>>, vector<1x4x8x128xf32>,
    %74 = vector.extract_strided_slice %69 {offsets = [4, 0, 0], sizes = [1, 8, 128], strides = [1, 1, 1]} : vector<5x8x128xf32> to vector<1x8x128xf32>
    %75 = vector.shape_cast %74 : vector<1x8x128xf32> to vector<8x128xf32>
    %cst_38 = arith.constant dense<0.000000e+00> : vector<8x24xf32>
    %76 = tpu.matmul %75, %59, %cst_38 {dimension_numbers = #tpu.dot_dimension_numbers<[1], [0], [0], [1], [0, 0, 1, 1], [], []>} : vector<8x128xf32>, vector<128x24xf32>, vector<8x24xf32> -> vector<8x24xf32>
    %77 = arith.mulf %56, %76 : vector<8x24xf32>
    %cst_39 = arith.constant dense<0.000000e+00> : vector<24xf32>
    %78 = vector.multi_reduction <add>, %77, %cst_39 [0] : vector<8x24xf32> to vector<24xf32>
    %79 = vector.shape_cast %78 : vector<24xf32> to vector<1x24xf32>
    %80 = tpu.concatenate %53, %79 in 0 : vector<1x24xf32>, vector<1x24xf32> -> vector<2x24xf32>
    %c0_40 = arith.constant 0 : index
    %c0_41 = arith.constant 0 : index
    %81 = vector.load %arg12[%c0_40, %c0_41] : memref<24x8xf32, #tpu.memory_space<vmem>>, vector<24x8xf32>
    %cst_42 = arith.constant dense<0.000000e+00> : vector<2x8xf32>
    %82 = tpu.matmul %80, %81, %cst_42 {dimension_numbers = #tpu.dot_dimension_numbers<[1], [0], [0], [1], [0, 0, 1, 1], [], []>} : vector<2x24xf32>, vector<24x8xf32>, vector<2x8xf32> -> vector<2x8xf32>
    %c0_43 = arith.constant 0 : index
    %c0_44 = arith.constant 0 : index
    %83 = vector.load %arg13[%c0_43, %c0_44] : memref<1x8xf32, #tpu.memory_space<vmem>>, vector<1x8xf32>
    %84 = vector.broadcast %83 : vector<1x8xf32> to vector<2x8xf32>
    %85 = arith.mulf %82, %84 : vector<2x8xf32>
    %c0_45 = arith.constant 0 : index
    %c0_46 = arith.constant 0 : index
    %86 = vector.load %arg14[%c0_45, %c0_46] : memref<1x8xf32, #tpu.memory_space<vmem>>, vector<1x8xf32>
    %87 = vector.broadcast %86 : vector<1x8xf32> to vector<2x8xf32>
    %88 = arith.addf %85, %87 : vector<2x8xf32>
    %c0_47 = arith.constant 0 : index
    %c0_48 = arith.constant 0 : index
    %c0_49 = arith.constant 0 : index
    %89 = vector.load %arg15[%c0_47, %c0_48, %c0_49] : memref<1x2x8xf32, #tpu.memory_space<vmem>>, vector<1x2x8xf32>
    %90 = vector.shape_cast %89 : vector<1x2x8xf32> to vector<2x8xf32>
    %91 = vector.shape_cast %88 : vector<2x8xf32> to vector<1x2x8xf32>
    tpu.vector_store %arg15[%c0_47, %c0_48, %c0_49], %91 {strides = array<i32>} : memref<1x2x8xf32, #tpu.memory_space<vmem>>, vector<1x2x8xf32>,
    return
  }
  func.func @transform_0(%arg0: i32) -> i32 {
    %c0_i32 = arith.constant 0 : i32
    %c0_i32_0 = arith.constant 0 : i32
    return %c0_i32 : i32
  }
  func.func @transform_1(%arg0: i32) -> (i32, i32, i32) {
    %c0_i32 = arith.constant 0 : i32
    %c0_i32_0 = arith.constant 0 : i32
    %c0_i32_1 = arith.constant 0 : i32
    return %arg0, %c0_i32, %c0_i32_0 : i32, i32, i32
  }
  func.func @transform_2(%arg0: i32) -> (i32, i32, i32) {
    %c0_i32 = arith.constant 0 : i32
    %c0_i32_0 = arith.constant 0 : i32
    %c0_i32_1 = arith.constant 0 : i32
    return %arg0, %c0_i32, %c0_i32_0 : i32, i32, i32
  }
  func.func @transform_3(%arg0: i32) -> (i32, i32) {
    %c0_i32 = arith.constant 0 : i32
    %c0_i32_0 = arith.constant 0 : i32
    %c0_i32_1 = arith.constant 0 : i32
    return %c0_i32, %c0_i32_0 : i32, i32
  }
  func.func @transform_4(%arg0: i32) -> (i32, i32) {
    %c0_i32 = arith.constant 0 : i32
    %c0_i32_0 = arith.constant 0 : i32
    %c0_i32_1 = arith.constant 0 : i32
    return %c0_i32, %c0_i32_0 : i32, i32
  }
  func.func @transform_5(%arg0: i32) -> (i32, i32) {
    %c0_i32 = arith.constant 0 : i32
    %c0_i32_0 = arith.constant 0 : i32
    %c0_i32_1 = arith.constant 0 : i32
    return %c0_i32, %c0_i32_0 : i32, i32
  }
  func.func @transform_6(%arg0: i32) -> (i32, i32) {
    %c0_i32 = arith.constant 0 : i32
    %c0_i32_0 = arith.constant 0 : i32
    %c0_i32_1 = arith.constant 0 : i32
    return %c0_i32, %c0_i32_0 : i32, i32
  }
  func.func @transform_7(%arg0: i32) -> (i32, i32) {
    %c0_i32 = arith.constant 0 : i32
    %c0_i32_0 = arith.constant 0 : i32
    %c0_i32_1 = arith.constant 0 : i32
    return %c0_i32, %c0_i32_0 : i32, i32
  }
  func.func @transform_8(%arg0: i32) -> (i32, i32, i32) {
    %c0_i32 = arith.constant 0 : i32
    %c0_i32_0 = arith.constant 0 : i32
    %c0_i32_1 = arith.constant 0 : i32
    %c0_i32_2 = arith.constant 0 : i32
    return %c0_i32, %c0_i32_0, %c0_i32_1 : i32, i32, i32
  }
  func.func @transform_9(%arg0: i32) -> (i32, i32) {
    %c0_i32 = arith.constant 0 : i32
    %c0_i32_0 = arith.constant 0 : i32
    %c0_i32_1 = arith.constant 0 : i32
    return %c0_i32, %c0_i32_0 : i32, i32
  }
  func.func @transform_10(%arg0: i32) -> (i32, i32) {
    %c0_i32 = arith.constant 0 : i32
    %c0_i32_0 = arith.constant 0 : i32
    %c0_i32_1 = arith.constant 0 : i32
    return %c0_i32, %c0_i32_0 : i32, i32
  }
  func.func @transform_11(%arg0: i32) -> (i32, i32) {
    %c0_i32 = arith.constant 0 : i32
    %c0_i32_0 = arith.constant 0 : i32
    %c0_i32_1 = arith.constant 0 : i32
    return %c0_i32, %c0_i32_0 : i32, i32
  }
  func.func @transform_12(%arg0: i32) -> (i32, i32) {
    %c0_i32 = arith.constant 0 : i32
    %c0_i32_0 = arith.constant 0 : i32
    %c0_i32_1 = arith.constant 0 : i32
    return %c0_i32, %c0_i32_0 : i32, i32
  }
  func.func @transform_13(%arg0: i32) -> (i32, i32) {
    %c0_i32 = arith.constant 0 : i32
    %c0_i32_0 = arith.constant 0 : i32
    %c0_i32_1 = arith.constant 0 : i32
    return %c0_i32, %c0_i32_0 : i32, i32
  }
  func.func @transform_14(%arg0: i32) -> (i32, i32, i32) {
    %c0_i32 = arith.constant 0 : i32
    %c0_i32_0 = arith.constant 0 : i32
    %c0_i32_1 = arith.constant 0 : i32
    return %arg0, %c0_i32, %c0_i32_0 : i32, i32, i32
  }
  func.func @transform_15(%arg0: i32) -> (i32, i32, i32, i32) {
    %c0_i32 = arith.constant 0 : i32
    %c0_i32_0 = arith.constant 0 : i32
    %c0_i32_1 = arith.constant 0 : i32
    %c0_i32_2 = arith.constant 0 : i32
    return %arg0, %c0_i32, %c0_i32_0, %c0_i32_1 : i32, i32, i32, i32
  }
}

module attributes {stable_mosaic.version = 11 : i64} {
  func.func @_ban_kernel(%arg0: i32, %arg1: memref<2xf32, #tpu.memory_space<smem>>, %arg2: memref<2x8x16xf32, #tpu.memory_space<vmem>>, %arg3: memref<2x128x24xf32, #tpu.memory_space<vmem>>, %arg4: memref<16x24xf32, #tpu.memory_space<vmem>>, %arg5: memref<1x24xf32, #tpu.memory_space<vmem>>, %arg6: memref<24x24xf32, #tpu.memory_space<vmem>>, %arg7: memref<1x24xf32, #tpu.memory_space<vmem>>, %arg8: memref<5x24xf32, #tpu.memory_space<vmem>>, %arg9: memref<5x1x1xf32, #tpu.memory_space<vmem>>, %arg10: memref<8x1xf32, #tpu.memory_space<vmem>>, %arg11: memref<128x1xf32, #tpu.memory_space<vmem>>, %arg12: memref<24x8xf32, #tpu.memory_space<vmem>>, %arg13: memref<1x8xf32, #tpu.memory_space<vmem>>, %arg14: memref<1x8xf32, #tpu.memory_space<vmem>>, %arg15: memref<1x2x8xf32, #tpu.memory_space<vmem>>, %arg16: memref<2x4x8x128xf32, #tpu.memory_space<vmem>>) attributes {dimension_semantics = [#tpu.dimension_semantics<parallel>], iteration_bounds = array<i64: 2>, scalar_prefetch = 0 : i64, scratch_operands = 0 : i64, tpu.core_type = #tpu.core_type<tc>, window_params = [{transform_indices = @transform_0, window_bounds = array<i64: 2>}, {transform_indices = @transform_1, window_bounds = array<i64: 2, 8, 16>}, {transform_indices = @transform_2, window_bounds = array<i64: 2, 128, 24>}, {pipeline_mode = #tpu.pipeline_mode<synchronous>, transform_indices = @transform_3, window_bounds = array<i64: 16, 24>}, {pipeline_mode = #tpu.pipeline_mode<synchronous>, transform_indices = @transform_4, window_bounds = array<i64: 1, 24>}, {pipeline_mode = #tpu.pipeline_mode<synchronous>, transform_indices = @transform_5, window_bounds = array<i64: 24, 24>}, {pipeline_mode = #tpu.pipeline_mode<synchronous>, transform_indices = @transform_6, window_bounds = array<i64: 1, 24>}, {pipeline_mode = #tpu.pipeline_mode<synchronous>, transform_indices = @transform_7, window_bounds = array<i64: 5, 24>}, {pipeline_mode = #tpu.pipeline_mode<synchronous>, transform_indices = @transform_8, window_bounds = array<i64: 5, 1, 1>}, {pipeline_mode = #tpu.pipeline_mode<synchronous>, transform_indices = @transform_9, window_bounds = array<i64: 8, 1>}, {pipeline_mode = #tpu.pipeline_mode<synchronous>, transform_indices = @transform_10, window_bounds = array<i64: 128, 1>}, {pipeline_mode = #tpu.pipeline_mode<synchronous>, transform_indices = @transform_11, window_bounds = array<i64: 24, 8>}, {pipeline_mode = #tpu.pipeline_mode<synchronous>, transform_indices = @transform_12, window_bounds = array<i64: 1, 8>}, {pipeline_mode = #tpu.pipeline_mode<synchronous>, transform_indices = @transform_13, window_bounds = array<i64: 1, 8>}, {transform_indices = @transform_14, window_bounds = array<i64: 1, 2, 8>}, {transform_indices = @transform_15, window_bounds = array<i64: 2, 4, 8, 128>}]} {
    %c0 = arith.constant 0 : index
    %0 = memref.load %arg1[%c0] : memref<2xf32, #tpu.memory_space<smem>>
    %c1 = arith.constant 1 : index
    %1 = memref.load %arg1[%c1] : memref<2xf32, #tpu.memory_space<smem>>
    %c0_0 = arith.constant 0 : index
    %c0_1 = arith.constant 0 : index
    %c0_2 = arith.constant 0 : index
    %2 = vector.load %arg2[%c0_0, %c0_1, %c0_2] : memref<2x8x16xf32, #tpu.memory_space<vmem>>, vector<2x8x16xf32>
    %3 = vector.shape_cast %2 : vector<2x8x16xf32> to vector<16x16xf32>
    %c0_3 = arith.constant 0 : index
    %c0_4 = arith.constant 0 : index
    %c0_5 = arith.constant 0 : index
    %4 = vector.load %arg3[%c0_3, %c0_4, %c0_5] : memref<2x128x24xf32, #tpu.memory_space<vmem>>, vector<2x128x24xf32>
    %5 = vector.shape_cast %4 : vector<2x128x24xf32> to vector<256x24xf32>
    %c0_6 = arith.constant 0 : index
    %c0_7 = arith.constant 0 : index
    %6 = vector.load %arg4[%c0_6, %c0_7] : memref<16x24xf32, #tpu.memory_space<vmem>>, vector<16x24xf32>
    %cst = arith.constant dense<0.000000e+00> : vector<16x24xf32>
    %7 = tpu.matmul %3, %6, %cst {dimension_numbers = #tpu.dot_dimension_numbers<[1], [0], [0], [1], [0, 0, 1, 1], [], []>} : vector<16x16xf32>, vector<16x24xf32>, vector<16x24xf32> -> vector<16x24xf32>
    %8 = vector.broadcast %0 : f32 to vector<16x24xf32>
    %9 = arith.mulf %7, %8 : vector<16x24xf32>
    %c0_8 = arith.constant 0 : index
    %c0_9 = arith.constant 0 : index
    %10 = vector.load %arg5[%c0_8, %c0_9] : memref<1x24xf32, #tpu.memory_space<vmem>>, vector<1x24xf32>
    %11 = vector.broadcast %10 : vector<1x24xf32> to vector<16x24xf32>
    %12 = arith.addf %9, %11 : vector<16x24xf32>
    %cst_10 = arith.constant 0.000000e+00 : f32
    %13 = vector.broadcast %cst_10 : f32 to vector<16x24xf32>
    %14 = arith.maximumf %12, %13 : vector<16x24xf32>
    %c0_11 = arith.constant 0 : index
    %c0_12 = arith.constant 0 : index
    %15 = vector.load %arg6[%c0_11, %c0_12] : memref<24x24xf32, #tpu.memory_space<vmem>>, vector<24x24xf32>
    %cst_13 = arith.constant dense<0.000000e+00> : vector<256x24xf32>
    %16 = tpu.matmul %5, %15, %cst_13 {dimension_numbers = #tpu.dot_dimension_numbers<[1], [0], [0], [1], [0, 0, 1, 1], [], []>} : vector<256x24xf32>, vector<24x24xf32>, vector<256x24xf32> -> vector<256x24xf32>
    %17 = vector.broadcast %1 : f32 to vector<256x24xf32>
    %18 = arith.mulf %16, %17 : vector<256x24xf32>
    %c0_14 = arith.constant 0 : index
    %c0_15 = arith.constant 0 : index
    %19 = vector.load %arg7[%c0_14, %c0_15] : memref<1x24xf32, #tpu.memory_space<vmem>>, vector<1x24xf32>
    %20 = vector.broadcast %19 : vector<1x24xf32> to vector<256x24xf32>
    %21 = arith.addf %18, %20 : vector<256x24xf32>
    %cst_16 = arith.constant 0.000000e+00 : f32
    %22 = vector.broadcast %cst_16 : f32 to vector<256x24xf32>
    %23 = arith.maximumf %21, %22 : vector<256x24xf32>
    %c0_17 = arith.constant 0 : index
    %c0_18 = arith.constant 0 : index
    %24 = vector.load %arg8[%c0_17, %c0_18] : memref<5x24xf32, #tpu.memory_space<vmem>>, vector<5x24xf32>
    %c0_19 = arith.constant 0 : index
    %c0_20 = arith.constant 0 : index
    %c0_21 = arith.constant 0 : index
    %25 = vector.load %arg9[%c0_19, %c0_20, %c0_21] : memref<5x1x1xf32, #tpu.memory_space<vmem>>, vector<5x1x1xf32>
    %c0_22 = arith.constant 0 : index
    %c0_23 = arith.constant 0 : index
    %26 = vector.load %arg10[%c0_22, %c0_23] : memref<8x1xf32, #tpu.memory_space<vmem>>, vector<8x1xf32>
    %c0_24 = arith.constant 0 : index
    %c0_25 = arith.constant 0 : index
    %27 = vector.load %arg11[%c0_24, %c0_25] : memref<128x1xf32, #tpu.memory_space<vmem>>, vector<128x1xf32>
    %28 = vector.extract_strided_slice %14 {offsets = [0, 0], sizes = [8, 24], strides = [1, 1]} : vector<16x24xf32> to vector<8x24xf32>
    %29 = vector.broadcast %26 : vector<8x1xf32> to vector<8x24xf32>
    %30 = arith.mulf %28, %29 : vector<8x24xf32>
    %31 = vector.extract_strided_slice %23 {offsets = [0, 0], sizes = [128, 24], strides = [1, 1]} : vector<256x24xf32> to vector<128x24xf32>
    %32 = vector.broadcast %27 : vector<128x1xf32> to vector<128x24xf32>
    %33 = arith.mulf %31, %32 : vector<128x24xf32>
    %34 = vector.shape_cast %24 : vector<5x24xf32> to vector<5x1x24xf32>
    %35 = vector.shape_cast %30 : vector<8x24xf32> to vector<1x8x24xf32>
    %36 = vector.broadcast %34 : vector<5x1x24xf32> to vector<5x8x24xf32>
    %37 = vector.broadcast %35 : vector<1x8x24xf32> to vector<5x8x24xf32>
    %38 = arith.mulf %36, %37 : vector<5x8x24xf32>
    %39 = vector.shape_cast %38 : vector<5x8x24xf32> to vector<40x24xf32>
    %cst_26 = arith.constant dense<0.000000e+00> : vector<40x128xf32>
    %40 = tpu.matmul %39, %33, %cst_26 {dimension_numbers = #tpu.dot_dimension_numbers<[1], [1], [0], [0], [0, 0, 1, 0], [], []>} : vector<40x24xf32>, vector<128x24xf32>, vector<40x128xf32> -> vector<40x128xf32>
    %41 = vector.shape_cast %40 : vector<40x128xf32> to vector<5x8x128xf32>
    %42 = vector.broadcast %25 : vector<5x1x1xf32> to vector<5x8x128xf32>
    %43 = arith.addf %41, %42 : vector<5x8x128xf32>
    %44 = vector.extract_strided_slice %43 {offsets = [0, 0, 0], sizes = [4, 8, 128], strides = [1, 1, 1]} : vector<5x8x128xf32> to vector<4x8x128xf32>
    %c0_27 = arith.constant 0 : index
    %c0_28 = arith.constant 0 : index
    %c0_29 = arith.constant 0 : index
    %c0_30 = arith.constant 0 : index
    %45 = vector.load %arg16[%c0_27, %c0_28, %c0_29, %c0_30] : memref<2x4x8x128xf32, #tpu.memory_space<vmem>>, vector<1x4x8x128xf32>
    %46 = vector.shape_cast %45 : vector<1x4x8x128xf32> to vector<4x8x128xf32>
    %47 = vector.shape_cast %44 : vector<4x8x128xf32> to vector<1x4x8x128xf32>
    tpu.vector_store %arg16[%c0_27, %c0_28, %c0_29, %c0_30], %47 {strides = array<i32>} : memref<2x4x8x128xf32, #tpu.memory_space<vmem>>, vector<1x4x8x128xf32>,
    %48 = vector.extract_strided_slice %43 {offsets = [4, 0, 0], sizes = [1, 8, 128], strides = [1, 1, 1]} : vector<5x8x128xf32> to vector<1x8x128xf32>
    %49 = vector.shape_cast %48 : vector<1x8x128xf32> to vector<8x128xf32>
    %cst_31 = arith.constant dense<0.000000e+00> : vector<8x24xf32>
    %50 = tpu.matmul %49, %33, %cst_31 {dimension_numbers = #tpu.dot_dimension_numbers<[1], [0], [0], [1], [0, 0, 1, 1], [], []>} : vector<8x128xf32>, vector<128x24xf32>, vector<8x24xf32> -> vector<8x24xf32>
    %51 = arith.mulf %30, %50 : vector<8x24xf32>
    %cst_32 = arith.constant dense<0.000000e+00> : vector<24xf32>
    %52 = vector.multi_reduction <add>, %51, %cst_32 [0] : vector<8x24xf32> to vector<24xf32>
    %53 = vector.shape_cast %52 : vector<24xf32> to vector<1x24xf32>
    %54 = vector.extract_strided_slice %14 {offsets = [8, 0], sizes = [8, 24], strides = [1, 1]} : vector<16x24xf32> to vector<8x24xf32>
    %55 = vector.broadcast %26 : vector<8x1xf32> to vector<8x24xf32>
    %56 = arith.mulf %54, %55 : vector<8x24xf32>
    %57 = vector.extract_strided_slice %23 {offsets = [128, 0], sizes = [128, 24], strides = [1, 1]} : vector<256x24xf32> to vector<128x24xf32>
    %58 = vector.broadcast %27 : vector<128x1xf32> to vector<128x24xf32>
    %59 = arith.mulf %57, %58 : vector<128x24xf32>
    %60 = vector.shape_cast %24 : vector<5x24xf32> to vector<5x1x24xf32>
    %61 = vector.shape_cast %56 : vector<8x24xf32> to vector<1x8x24xf32>
    %62 = vector.broadcast %60 : vector<5x1x24xf32> to vector<5x8x24xf32>
    %63 = vector.broadcast %61 : vector<1x8x24xf32> to vector<5x8x24xf32>
    %64 = arith.mulf %62, %63 : vector<5x8x24xf32>
    %65 = vector.shape_cast %64 : vector<5x8x24xf32> to vector<40x24xf32>
    %cst_33 = arith.constant dense<0.000000e+00> : vector<40x128xf32>
    %66 = tpu.matmul %65, %59, %cst_33 {dimension_numbers = #tpu.dot_dimension_numbers<[1], [1], [0], [0], [0, 0, 1, 0], [], []>} : vector<40x24xf32>, vector<128x24xf32>, vector<40x128xf32> -> vector<40x128xf32>
    %67 = vector.shape_cast %66 : vector<40x128xf32> to vector<5x8x128xf32>
    %68 = vector.broadcast %25 : vector<5x1x1xf32> to vector<5x8x128xf32>
    %69 = arith.addf %67, %68 : vector<5x8x128xf32>
    %70 = vector.extract_strided_slice %69 {offsets = [0, 0, 0], sizes = [4, 8, 128], strides = [1, 1, 1]} : vector<5x8x128xf32> to vector<4x8x128xf32>
    %c1_34 = arith.constant 1 : index
    %c0_35 = arith.constant 0 : index
    %c0_36 = arith.constant 0 : index
    %c0_37 = arith.constant 0 : index
    %71 = vector.load %arg16[%c1_34, %c0_35, %c0_36, %c0_37] : memref<2x4x8x128xf32, #tpu.memory_space<vmem>>, vector<1x4x8x128xf32>
    %72 = vector.shape_cast %71 : vector<1x4x8x128xf32> to vector<4x8x128xf32>
    %73 = vector.shape_cast %70 : vector<4x8x128xf32> to vector<1x4x8x128xf32>
    tpu.vector_store %arg16[%c1_34, %c0_35, %c0_36, %c0_37], %73 {strides = array<i32>} : memref<2x4x8x128xf32, #tpu.memory_space<vmem>>, vector<1x4x8x128xf32>,
    %74 = vector.extract_strided_slice %69 {offsets = [4, 0, 0], sizes = [1, 8, 128], strides = [1, 1, 1]} : vector<5x8x128xf32> to vector<1x8x128xf32>
    %75 = vector.shape_cast %74 : vector<1x8x128xf32> to vector<8x128xf32>
    %cst_38 = arith.constant dense<0.000000e+00> : vector<8x24xf32>
    %76 = tpu.matmul %75, %59, %cst_38 {dimension_numbers = #tpu.dot_dimension_numbers<[1], [0], [0], [1], [0, 0, 1, 1], [], []>} : vector<8x128xf32>, vector<128x24xf32>, vector<8x24xf32> -> vector<8x24xf32>
    %77 = arith.mulf %56, %76 : vector<8x24xf32>
    %cst_39 = arith.constant dense<0.000000e+00> : vector<24xf32>
    %78 = vector.multi_reduction <add>, %77, %cst_39 [0] : vector<8x24xf32> to vector<24xf32>
    %79 = vector.shape_cast %78 : vector<24xf32> to vector<1x24xf32>
    %80 = tpu.concatenate %53, %79 in 0 : vector<1x24xf32>, vector<1x24xf32> -> vector<2x24xf32>
    %c0_40 = arith.constant 0 : index
    %c0_41 = arith.constant 0 : index
    %81 = vector.load %arg12[%c0_40, %c0_41] : memref<24x8xf32, #tpu.memory_space<vmem>>, vector<24x8xf32>
    %cst_42 = arith.constant dense<0.000000e+00> : vector<2x8xf32>
    %82 = tpu.matmul %80, %81, %cst_42 {dimension_numbers = #tpu.dot_dimension_numbers<[1], [0], [0], [1], [0, 0, 1, 1], [], []>} : vector<2x24xf32>, vector<24x8xf32>, vector<2x8xf32> -> vector<2x8xf32>
    %c0_43 = arith.constant 0 : index
    %c0_44 = arith.constant 0 : index
    %83 = vector.load %arg13[%c0_43, %c0_44] : memref<1x8xf32, #tpu.memory_space<vmem>>, vector<1x8xf32>
    %84 = vector.broadcast %83 : vector<1x8xf32> to vector<2x8xf32>
    %85 = arith.mulf %82, %84 : vector<2x8xf32>
    %c0_45 = arith.constant 0 : index
    %c0_46 = arith.constant 0 : index
    %86 = vector.load %arg14[%c0_45, %c0_46] : memref<1x8xf32, #tpu.memory_space<vmem>>, vector<1x8xf32>
    %87 = vector.broadcast %86 : vector<1x8xf32> to vector<2x8xf32>
    %88 = arith.addf %85, %87 : vector<2x8xf32>
    %c0_47 = arith.constant 0 : index
    %c0_48 = arith.constant 0 : index
    %c0_49 = arith.constant 0 : index
    %89 = vector.load %arg15[%c0_47, %c0_48, %c0_49] : memref<1x2x8xf32, #tpu.memory_space<vmem>>, vector<1x2x8xf32>
    %90 = vector.shape_cast %89 : vector<1x2x8xf32> to vector<2x8xf32>
    %91 = vector.shape_cast %88 : vector<2x8xf32> to vector<1x2x8xf32>
    tpu.vector_store %arg15[%c0_47, %c0_48, %c0_49], %91 {strides = array<i32>} : memref<1x2x8xf32, #tpu.memory_space<vmem>>, vector<1x2x8xf32>,
    return
  }
  func.func @transform_0(%arg0: i32) -> i32 {
    %c0_i32 = arith.constant 0 : i32
    %c0_i32_0 = arith.constant 0 : i32
    return %c0_i32 : i32
  }
  func.func @transform_1(%arg0: i32) -> (i32, i32, i32) {
    %c0_i32 = arith.constant 0 : i32
    %c0_i32_0 = arith.constant 0 : i32
    %c0_i32_1 = arith.constant 0 : i32
    return %arg0, %c0_i32, %c0_i32_0 : i32, i32, i32
  }
  func.func @transform_2(%arg0: i32) -> (i32, i32, i32) {
    %c0_i32 = arith.constant 0 : i32
    %c0_i32_0 = arith.constant 0 : i32
    %c0_i32_1 = arith.constant 0 : i32
    return %arg0, %c0_i32, %c0_i32_0 : i32, i32, i32
  }
  func.func @transform_3(%arg0: i32) -> (i32, i32) {
    %c0_i32 = arith.constant 0 : i32
    %c0_i32_0 = arith.constant 0 : i32
    %c0_i32_1 = arith.constant 0 : i32
    return %c0_i32, %c0_i32_0 : i32, i32
  }
  func.func @transform_4(%arg0: i32) -> (i32, i32) {
    %c0_i32 = arith.constant 0 : i32
    %c0_i32_0 = arith.constant 0 : i32
    %c0_i32_1 = arith.constant 0 : i32
    return %c0_i32, %c0_i32_0 : i32, i32
  }
  func.func @transform_5(%arg0: i32) -> (i32, i32) {
    %c0_i32 = arith.constant 0 : i32
    %c0_i32_0 = arith.constant 0 : i32
    %c0_i32_1 = arith.constant 0 : i32
    return %c0_i32, %c0_i32_0 : i32, i32
  }
  func.func @transform_6(%arg0: i32) -> (i32, i32) {
    %c0_i32 = arith.constant 0 : i32
    %c0_i32_0 = arith.constant 0 : i32
    %c0_i32_1 = arith.constant 0 : i32
    return %c0_i32, %c0_i32_0 : i32, i32
  }
  func.func @transform_7(%arg0: i32) -> (i32, i32) {
    %c0_i32 = arith.constant 0 : i32
    %c0_i32_0 = arith.constant 0 : i32
    %c0_i32_1 = arith.constant 0 : i32
    return %c0_i32, %c0_i32_0 : i32, i32
  }
  func.func @transform_8(%arg0: i32) -> (i32, i32, i32) {
    %c0_i32 = arith.constant 0 : i32
    %c0_i32_0 = arith.constant 0 : i32
    %c0_i32_1 = arith.constant 0 : i32
    %c0_i32_2 = arith.constant 0 : i32
    return %c0_i32, %c0_i32_0, %c0_i32_1 : i32, i32, i32
  }
  func.func @transform_9(%arg0: i32) -> (i32, i32) {
    %c0_i32 = arith.constant 0 : i32
    %c0_i32_0 = arith.constant 0 : i32
    %c0_i32_1 = arith.constant 0 : i32
    return %c0_i32, %c0_i32_0 : i32, i32
  }
  func.func @transform_10(%arg0: i32) -> (i32, i32) {
    %c0_i32 = arith.constant 0 : i32
    %c0_i32_0 = arith.constant 0 : i32
    %c0_i32_1 = arith.constant 0 : i32
    return %c0_i32, %c0_i32_0 : i32, i32
  }
  func.func @transform_11(%arg0: i32) -> (i32, i32) {
    %c0_i32 = arith.constant 0 : i32
    %c0_i32_0 = arith.constant 0 : i32
    %c0_i32_1 = arith.constant 0 : i32
    return %c0_i32, %c0_i32_0 : i32, i32
  }
  func.func @transform_12(%arg0: i32) -> (i32, i32) {
    %c0_i32 = arith.constant 0 : i32
    %c0_i32_0 = arith.constant 0 : i32
    %c0_i32_1 = arith.constant 0 : i32
    return %c0_i32, %c0_i32_0 : i32, i32
  }
  func.func @transform_13(%arg0: i32) -> (i32, i32) {
    %c0_i32 = arith.constant 0 : i32
    %c0_i32_0 = arith.constant 0 : i32
    %c0_i32_1 = arith.constant 0 : i32
    return %c0_i32, %c0_i32_0 : i32, i32
  }
  func.func @transform_14(%arg0: i32) -> (i32, i32, i32) {
    %c0_i32 = arith.constant 0 : i32
    %c0_i32_0 = arith.constant 0 : i32
    %c0_i32_1 = arith.constant 0 : i32
    return %arg0, %c0_i32, %c0_i32_0 : i32, i32, i32
  }
  func.func @transform_15(%arg0: i32) -> (i32, i32, i32, i32) {
    %c0_i32 = arith.constant 0 : i32
    %c0_i32_0 = arith.constant 0 : i32
    %c0_i32_1 = arith.constant 0 : i32
    %c0_i32_2 = arith.constant 0 : i32
    return %arg0, %c0_i32, %c0_i32_0, %c0_i32_1 : i32, i32, i32, i32
  }
}

</mosaic_0001>

<llo_original>
// kernel: tpu_custom_call.1
$region0: #{tpu_custom_call.1}
  #allocation0 [shape = 'u32[]', space=smem, size = 0x4, offset = 0x4, fixed_abs, tag = 'smem constant byte address 0x4 - core index']
  #allocation1 [shape = 'u32[144,128]{1,0:T(1,128)}', space=vmem, size = 0x12000, scoped, tag = 'internal scratch']
  %s0 = inlined_call_operand.vmem [shape: f32[2], index: 0, kind: input, shape index: {}]
  %s1 = inlined_call_operand.vmem [shape: f32[4,8,16], index: 1, kind: input, shape index: {}]
  %s2 = inlined_call_operand.vmem [shape: f32[4,128,24], index: 2, kind: input, shape index: {}]
  %s3 = inlined_call_operand.vmem [shape: f32[16,24], index: 3, kind: input, shape index: {}]
  %s4 = inlined_call_operand.vmem [shape: f32[1,24], index: 4, kind: input, shape index: {}]
  %s5 = inlined_call_operand.vmem [shape: f32[24,24], index: 5, kind: input, shape index: {}]
  %s6 = inlined_call_operand.vmem [shape: f32[1,24], index: 6, kind: input, shape index: {}]
  %s7 = inlined_call_operand.vmem [shape: f32[5,24], index: 7, kind: input, shape index: {}]
  %s8 = inlined_call_operand.vmem [shape: f32[5,1,1], index: 8, kind: input, shape index: {}]
  %s9 = inlined_call_operand.vmem [shape: f32[8,1], index: 9, kind: input, shape index: {}]
  %s10 = inlined_call_operand.vmem [shape: f32[128,1], index: 10, kind: input, shape index: {}]
  %s11 = inlined_call_operand.vmem [shape: f32[24,8], index: 11, kind: input, shape index: {}]
  %s12 = inlined_call_operand.vmem [shape: f32[1,8], index: 12, kind: input, shape index: {}]
  %s13 = inlined_call_operand.vmem [shape: f32[1,8], index: 13, kind: input, shape index: {}]
  %s14 = inlined_call_operand.hbm [shape: f32[2,2,8], index: 14, kind: output, shape index: {0}]
  %s15 = inlined_call_operand.hbm [shape: f32[4,4,8,128], index: 15, kind: output, shape index: {1}]
  %16 = xla_tuple %s14, %s15
  %s17 = sld [smem:[#allocation0]]
  $region101: #{tpu_custom_call.1} parent=0
    _
  %s19 = ssub.s32 1, %s17
  %s20 = scalar_select 0, %s19, %s17
  $region1: #{tpu_custom_call.1} parent=0
    #allocation2 [shape = 'u8[512]{0}', space=smem, size = 0x200, scoped, tag = 'input window, operand 0, single buffered']
    #allocation3 [shape = 's32[2]{0}', space=sflag, size = 0x8, scoped, tag = 'scoped memory for tpu_custom_call.1']
    #allocation4 [shape = 's32[2]{0}', space=sflag, size = 0x8, scoped, tag = 'scoped memory for tpu_custom_call.1']
    #allocation5 [shape = 'u8[2048]{0}', space=vmem, size = 0x800, scoped, tag = 'output window, operand 0']
    #allocation6 [shape = 'u8[65536]{0}', space=vmem, size = 0x10000, scoped, tag = 'output window, operand 1']
    #allocation7 [shape = 's32[2]{0}', space=sflag, size = 0x8, scoped, tag = 'scoped memory for tpu_custom_call.1']
    %21 = vsyncpa [#allocation4], 0
    %22 = vsyncpa [#allocation3], 0
    %s23 = scalar_lea.sflag [#allocation3], 1
    %24 = vsyncpa %s23, 0
    %25 = vsyncpa [#allocation7], 0
    %s26 = scalar_lea.sflag [#allocation7], 1
    %27 = vsyncpa %s26, 0
    loop: start=0, step=1, limit=4
    $region2: #{tpu_custom_call.1} parent=1 // loop_pre_header
      _
    $region3: #{tpu_custom_call.1} parent=1 // loop_header
      %s29 = sphi 0, %s33
      %p30 = scmp.ge.s32.totalorder %s29, 4
      %s37 = sphi 0, %s37
      %s39 = sphi 0, %s37
      %s40 = sphi 0, %s39
      %s54 = sphi 0, %s40
      %s60 = sphi 0, %s62
      %s63 = sphi 0, %s60
      %s64 = sphi 0, %s63
      %s80 = sphi 0, %s64
      %s86 = sphi 0, %s88
      %s89 = sphi 0, %s86
      %s90 = sphi 0, %s89
      %s106 = sphi 0, %s90
      %s110 = sphi 0, %s110
      %s112 = sphi 0, %s110
      %s113 = sphi 0, %s112
      %s127 = sphi 0, %s113
      %s131 = sphi 0, %s131
      %s133 = sphi 0, %s131
      %s134 = sphi 0, %s133
      %s148 = sphi 0, %s134
      %s152 = sphi 0, %s152
      %s154 = sphi 0, %s152
      %s155 = sphi 0, %s154
      %s169 = sphi 0, %s155
      %s173 = sphi 0, %s173
      %s175 = sphi 0, %s173
      %s176 = sphi 0, %s175
      %s190 = sphi 0, %s176
      %s194 = sphi 0, %s194
      %s196 = sphi 0, %s194
      %s197 = sphi 0, %s196
      %s211 = sphi 0, %s197
      %s215 = sphi 0, %s215
      %s217 = sphi 0, %s215
      %s218 = sphi 0, %s217
      %s232 = sphi 0, %s218
      %s236 = sphi 0, %s236
      %s238 = sphi 0, %s236
      %s239 = sphi 0, %s238
      %s253 = sphi 0, %s239
      %s257 = sphi 0, %s257
      %s259 = sphi 0, %s257
      %s260 = sphi 0, %s259
      %s274 = sphi 0, %s260
      %s278 = sphi 0, %s278
      %s280 = sphi 0, %s278
      %s281 = sphi 0, %s280
      %s295 = sphi 0, %s281
      %s299 = sphi 0, %s299
      %s301 = sphi 0, %s299
      %s302 = sphi 0, %s301
      %s316 = sphi 0, %s302
      %s320 = sphi 0, %s320
      %s322 = sphi 0, %s320
      %s323 = sphi 0, %s322
      %s337 = sphi 0, %s323
      %s343 = sphi 0, %s345
      %s346 = sphi 0, %s343
      %s347 = sphi 0, %s346
      %s363 = sphi 0, %s347
      %s369 = sphi 0, %s371
      %s372 = sphi 0, %s369
      %s373 = sphi 0, %s372
      %s389 = sphi 0, %s373
    $region4: #{tpu_custom_call.1} parent=1 // loop_header_branch
      %32 = sbr.rel (%p30) target = $region8
    $region5: #{tpu_custom_call.1} parent=1 // loop_body
      %s34 = ssub.s32 %s29, 1
      %s35 = ssub.s32 %s29, 2
      %s36 = sadd.s32 %s29, 1
      %s38 = sadd.s32 %s37, 1
      %p41 = scmp.eq.s32.totalorder %s29, 1
      %p42 = scmp.ne.s32.totalorder %s37, %s39
      %p43 = scmp.eq.s32.totalorder %s29, 0
      %p44 = por %p42, %p43
      %p45 = scmp.ne.s32.totalorder %s37, %s39
      %p46 = scmp.eq.s32.totalorder %s34, 1
      %p47 = por %p45, %p46
      %p48 = scmp.ne.s32.totalorder %s39, %s40
      %p49 = scmp.eq.s32.totalorder %s34, 0
      %p50 = por %p48, %p49
      %p51 = scmp.ne.s32.totalorder %s39, %s40
      %p52 = scmp.eq.s32.totalorder %s35, 1
      %p53 = por %p51, %p52
      %p55 = scmp.ne.s32.totalorder %s40, %s54
      %p56 = scmp.eq.s32.totalorder %s35, 0
      %p57 = por %p55, %p56
      %s58 = ssub.s32 %s29, %s36
      %p59 = scmp.eq.s32.totalorder %s58, 0
      %s61 = sadd.s32 %s60, 1
      %s62 = scalar_select %p59, %s60, %s61
      %p65 = pneg %p59
      %p66 = scmp.eq.s32.totalorder %s29, 1
      %p67 = por %p65, %p66
      %p68 = scmp.ne.s32.totalorder %s60, %s63
      %p69 = scmp.eq.s32.totalorder %s29, 0
      %p70 = por %p68, %p69
      %p71 = scmp.ne.s32.totalorder %s60, %s63
      %p72 = scmp.eq.s32.totalorder %s34, 1
      %p73 = por %p71, %p72
      %p74 = scmp.ne.s32.totalorder %s63, %s64
      %p75 = scmp.eq.s32.totalorder %s34, 0
      %p76 = por %p74, %p75
      %p77 = scmp.ne.s32.totalorder %s63, %s64
      %p78 = scmp.eq.s32.totalorder %s35, 1
      %p79 = por %p77, %p78
      %p81 = scmp.ne.s32.totalorder %s64, %s80
      %p82 = scmp.eq.s32.totalorder %s35, 0
      %p83 = por %p81, %p82
      %s84 = ssub.s32 %s29, %s36
      %p85 = scmp.eq.s32.totalorder %s84, 0
      %s87 = sadd.s32 %s86, 1
      %s88 = scalar_select %p85, %s86, %s87
      %p91 = pneg %p85
      %p92 = scmp.eq.s32.totalorder %s29, 1
      %p93 = por %p91, %p92
      %p94 = scmp.ne.s32.totalorder %s86, %s89
      %p95 = scmp.eq.s32.totalorder %s29, 0
      %p96 = por %p94, %p95
      %p97 = scmp.ne.s32.totalorder %s86, %s89
      %p98 = scmp.eq.s32.totalorder %s34, 1
      %p99 = por %p97, %p98
      %p100 = scmp.ne.s32.totalorder %s89, %s90
      %p101 = scmp.eq.s32.totalorder %s34, 0
      %p102 = por %p100, %p101
      %p103 = scmp.ne.s32.totalorder %s89, %s90
      %p104 = scmp.eq.s32.totalorder %s35, 1
      %p105 = por %p103, %p104
      %p107 = scmp.ne.s32.totalorder %s90, %s106
      %p108 = scmp.eq.s32.totalorder %s35, 0
      %p109 = por %p107, %p108
      %s111 = sadd.s32 %s110, 1
      %p114 = scmp.eq.s32.totalorder %s29, 1
      %p115 = scmp.ne.s32.totalorder %s110, %s112
      %p116 = scmp.eq.s32.totalorder %s29, 0
      %p117 = por %p115, %p116
      %p118 = scmp.ne.s32.totalorder %s110, %s112
      %p119 = scmp.eq.s32.totalorder %s34, 1
      %p120 = por %p118, %p119
      %p121 = scmp.ne.s32.totalorder %s112, %s113
      %p122 = scmp.eq.s32.totalorder %s34, 0
      %p123 = por %p121, %p122
      %p124 = scmp.ne.s32.totalorder %s112, %s113
      %p125 = scmp.eq.s32.totalorder %s35, 1
      %p126 = por %p124, %p125
      %p128 = scmp.ne.s32.totalorder %s113, %s127
      %p129 = scmp.eq.s32.totalorder %s35, 0
      %p130 = por %p128, %p129
      %s132 = sadd.s32 %s131, 1
      %p135 = scmp.eq.s32.totalorder %s29, 1
      %p136 = scmp.ne.s32.totalorder %s131, %s133
      %p137 = scmp.eq.s32.totalorder %s29, 0
      %p138 = por %p136, %p137
      %p139 = scmp.ne.s32.totalorder %s131, %s133
      %p140 = scmp.eq.s32.totalorder %s34, 1
      %p141 = por %p139, %p140
      %p142 = scmp.ne.s32.totalorder %s133, %s134
      %p143 = scmp.eq.s32.totalorder %s34, 0
      %p144 = por %p142, %p143
      %p145 = scmp.ne.s32.totalorder %s133, %s134
      %p146 = scmp.eq.s32.totalorder %s35, 1
      %p147 = por %p145, %p146
      %p149 = scmp.ne.s32.totalorder %s134, %s148
      %p150 = scmp.eq.s32.totalorder %s35, 0
      %p151 = por %p149, %p150
      %s153 = sadd.s32 %s152, 1
      %p156 = scmp.eq.s32.totalorder %s29, 1
      %p157 = scmp.ne.s32.totalorder %s152, %s154
      %p158 = scmp.eq.s32.totalorder %s29, 0
      %p159 = por %p157, %p158
      %p160 = scmp.ne.s32.totalorder %s152, %s154
      %p161 = scmp.eq.s32.totalorder %s34, 1
      %p162 = por %p160, %p161
      %p163 = scmp.ne.s32.totalorder %s154, %s155
      %p164 = scmp.eq.s32.totalorder %s34, 0
      %p165 = por %p163, %p164
      %p166 = scmp.ne.s32.totalorder %s154, %s155
      %p167 = scmp.eq.s32.totalorder %s35, 1
      %p168 = por %p166, %p167
      %p170 = scmp.ne.s32.totalorder %s155, %s169
      %p171 = scmp.eq.s32.totalorder %s35, 0
      %p172 = por %p170, %p171
      %s174 = sadd.s32 %s173, 1
      %p177 = scmp.eq.s32.totalorder %s29, 1
      %p178 = scmp.ne.s32.totalorder %s173, %s175
      %p179 = scmp.eq.s32.totalorder %s29, 0
      %p180 = por %p178, %p179
      %p181 = scmp.ne.s32.totalorder %s173, %s175
      %p182 = scmp.eq.s32.totalorder %s34, 1
      %p183 = por %p181, %p182
      %p184 = scmp.ne.s32.totalorder %s175, %s176
      %p185 = scmp.eq.s32.totalorder %s34, 0
      %p186 = por %p184, %p185
      %p187 = scmp.ne.s32.totalorder %s175, %s176
      %p188 = scmp.eq.s32.totalorder %s35, 1
      %p189 = por %p187, %p188
      %p191 = scmp.ne.s32.totalorder %s176, %s190
      %p192 = scmp.eq.s32.totalorder %s35, 0
      %p193 = por %p191, %p192
      %s195 = sadd.s32 %s194, 1
      %p198 = scmp.eq.s32.totalorder %s29, 1
      %p199 = scmp.ne.s32.totalorder %s194, %s196
      %p200 = scmp.eq.s32.totalorder %s29, 0
      %p201 = por %p199, %p200
      %p202 = scmp.ne.s32.totalorder %s194, %s196
      %p203 = scmp.eq.s32.totalorder %s34, 1
      %p204 = por %p202, %p203
      %p205 = scmp.ne.s32.totalorder %s196, %s197
      %p206 = scmp.eq.s32.totalorder %s34, 0
      %p207 = por %p205, %p206
      %p208 = scmp.ne.s32.totalorder %s196, %s197
      %p209 = scmp.eq.s32.totalorder %s35, 1
      %p210 = por %p208, %p209
      %p212 = scmp.ne.s32.totalorder %s197, %s211
      %p213 = scmp.eq.s32.totalorder %s35, 0
      %p214 = por %p212, %p213
      %s216 = sadd.s32 %s215, 1
      %p219 = scmp.eq.s32.totalorder %s29, 1
      %p220 = scmp.ne.s32.totalorder %s215, %s217
      %p221 = scmp.eq.s32.totalorder %s29, 0
      %p222 = por %p220, %p221
      %p223 = scmp.ne.s32.totalorder %s215, %s217
      %p224 = scmp.eq.s32.totalorder %s34, 1
      %p225 = por %p223, %p224
      %p226 = scmp.ne.s32.totalorder %s217, %s218
      %p227 = scmp.eq.s32.totalorder %s34, 0
      %p228 = por %p226, %p227
      %p229 = scmp.ne.s32.totalorder %s217, %s218
      %p230 = scmp.eq.s32.totalorder %s35, 1
      %p231 = por %p229, %p230
      %p233 = scmp.ne.s32.totalorder %s218, %s232
      %p234 = scmp.eq.s32.totalorder %s35, 0
      %p235 = por %p233, %p234
      %s237 = sadd.s32 %s236, 1
      %p240 = scmp.eq.s32.totalorder %s29, 1
      %p241 = scmp.ne.s32.totalorder %s236, %s238
      %p242 = scmp.eq.s32.totalorder %s29, 0
      %p243 = por %p241, %p242
      %p244 = scmp.ne.s32.totalorder %s236, %s238
      %p245 = scmp.eq.s32.totalorder %s34, 1
      %p246 = por %p244, %p245
      %p247 = scmp.ne.s32.totalorder %s238, %s239
      %p248 = scmp.eq.s32.totalorder %s34, 0
      %p249 = por %p247, %p248
      %p250 = scmp.ne.s32.totalorder %s238, %s239
      %p251 = scmp.eq.s32.totalorder %s35, 1
      %p252 = por %p250, %p251
      %p254 = scmp.ne.s32.totalorder %s239, %s253
      %p255 = scmp.eq.s32.totalorder %s35, 0
      %p256 = por %p254, %p255
      %s258 = sadd.s32 %s257, 1
      %p261 = scmp.eq.s32.totalorder %s29, 1
      %p262 = scmp.ne.s32.totalorder %s257, %s259
      %p263 = scmp.eq.s32.totalorder %s29, 0
      %p264 = por %p262, %p263
      %p265 = scmp.ne.s32.totalorder %s257, %s259
      %p266 = scmp.eq.s32.totalorder %s34, 1
      %p267 = por %p265, %p266
      %p268 = scmp.ne.s32.totalorder %s259, %s260
      %p269 = scmp.eq.s32.totalorder %s34, 0
      %p270 = por %p268, %p269
      %p271 = scmp.ne.s32.totalorder %s259, %s260
      %p272 = scmp.eq.s32.totalorder %s35, 1
      %p273 = por %p271, %p272
      %p275 = scmp.ne.s32.totalorder %s260, %s274
      %p276 = scmp.eq.s32.totalorder %s35, 0
      %p277 = por %p275, %p276
      %s279 = sadd.s32 %s278, 1
      %p282 = scmp.eq.s32.totalorder %s29, 1
      %p283 = scmp.ne.s32.totalorder %s278, %s280
      %p284 = scmp.eq.s32.totalorder %s29, 0
      %p285 = por %p283, %p284
      %p286 = scmp.ne.s32.totalorder %s278, %s280
      %p287 = scmp.eq.s32.totalorder %s34, 1
      %p288 = por %p286, %p287
      %p289 = scmp.ne.s32.totalorder %s280, %s281
      %p290 = scmp.eq.s32.totalorder %s34, 0
      %p291 = por %p289, %p290
      %p292 = scmp.ne.s32.totalorder %s280, %s281
      %p293 = scmp.eq.s32.totalorder %s35, 1
      %p294 = por %p292, %p293
      %p296 = scmp.ne.s32.totalorder %s281, %s295
      %p297 = scmp.eq.s32.totalorder %s35, 0
      %p298 = por %p296, %p297
      %s300 = sadd.s32 %s299, 1
      %p303 = scmp.eq.s32.totalorder %s29, 1
      %p304 = scmp.ne.s32.totalorder %s299, %s301
      %p305 = scmp.eq.s32.totalorder %s29, 0
      %p306 = por %p304, %p305
      %p307 = scmp.ne.s32.totalorder %s299, %s301
      %p308 = scmp.eq.s32.totalorder %s34, 1
      %p309 = por %p307, %p308
      %p310 = scmp.ne.s32.totalorder %s301, %s302
      %p311 = scmp.eq.s32.totalorder %s34, 0
      %p312 = por %p310, %p311
      %p313 = scmp.ne.s32.totalorder %s301, %s302
      %p314 = scmp.eq.s32.totalorder %s35, 1
      %p315 = por %p313, %p314
      %p317 = scmp.ne.s32.totalorder %s302, %s316
      %p318 = scmp.eq.s32.totalorder %s35, 0
      %p319 = por %p317, %p318
      %s321 = sadd.s32 %s320, 1
      %p324 = scmp.eq.s32.totalorder %s29, 1
      %p325 = scmp.ne.s32.totalorder %s320, %s322
      %p326 = scmp.eq.s32.totalorder %s29, 0
      %p327 = por %p325, %p326
      %p328 = scmp.ne.s32.totalorder %s320, %s322
      %p329 = scmp.eq.s32.totalorder %s34, 1
      %p330 = por %p328, %p329
      %p331 = scmp.ne.s32.totalorder %s322, %s323
      %p332 = scmp.eq.s32.totalorder %s34, 0
      %p333 = por %p331, %p332
      %p334 = scmp.ne.s32.totalorder %s322, %s323
      %p335 = scmp.eq.s32.totalorder %s35, 1
      %p336 = por %p334, %p335
      %p338 = scmp.ne.s32.totalorder %s323, %s337
      %p339 = scmp.eq.s32.totalorder %s35, 0
      %p340 = por %p338, %p339
      %s341 = ssub.s32 %s29, %s36
      %p342 = scmp.eq.s32.totalorder %s341, 0
      %s344 = sadd.s32 %s343, 1
      %s345 = scalar_select %p342, %s343, %s344
      %p348 = pneg %p342
      %p349 = scmp.eq.s32.totalorder %s29, 1
      %p350 = por %p348, %p349
      %p351 = scmp.ne.s32.totalorder %s343, %s346
      %p352 = scmp.eq.s32.totalorder %s29, 0
      %p353 = por %p351, %p352
      %p354 = scmp.ne.s32.totalorder %s343, %s346
      %p355 = scmp.eq.s32.totalorder %s34, 1
      %p356 = por %p354, %p355
      %p357 = scmp.ne.s32.totalorder %s346, %s347
      %p358 = scmp.eq.s32.totalorder %s34, 0
      %p359 = por %p357, %p358
      %p360 = scmp.ne.s32.totalorder %s346, %s347
      %p361 = scmp.eq.s32.totalorder %s35, 1
      %p362 = por %p360, %p361
      %p364 = scmp.ne.s32.totalorder %s347, %s363
      %p365 = scmp.eq.s32.totalorder %s35, 0
      %p366 = por %p364, %p365
      %s367 = ssub.s32 %s29, %s36
      %p368 = scmp.eq.s32.totalorder %s367, 0
      %s370 = sadd.s32 %s369, 1
      %s371 = scalar_select %p368, %s369, %s370
      %p374 = pneg %p368
      %p375 = scmp.eq.s32.totalorder %s29, 1
      %p376 = por %p374, %p375
      %p377 = scmp.ne.s32.totalorder %s369, %s372
      %p378 = scmp.eq.s32.totalorder %s29, 0
      %p379 = por %p377, %p378
      %p380 = scmp.ne.s32.totalorder %s369, %s372
      %p381 = scmp.eq.s32.totalorder %s34, 1
      %p382 = por %p380, %p381
      %p383 = scmp.ne.s32.totalorder %s372, %s373
      %p384 = scmp.eq.s32.totalorder %s34, 0
      %p385 = por %p383, %p384
      %p386 = scmp.ne.s32.totalorder %s372, %s373
      %p387 = scmp.eq.s32.totalorder %s35, 1
      %p388 = por %p386, %p387
      %p390 = scmp.ne.s32.totalorder %s373, %s389
      %p391 = scmp.eq.s32.totalorder %s35, 0
      %p392 = por %p390, %p391
      %p393 = scmp.le.s32.totalorder 1, %s29
      %p394 = scmp.lt.s32.totalorder %s29, 3
      %p395 = pnand %p393, %p394
      %p396 = pneg %p395
      // Predicated region
      $region9: #{tpu_custom_call.1} parent=5 // pred_check
        _
      $region10: #{tpu_custom_call.1} parent=5 // pred_check_branch
        %398 = sbr.rel (%p395) target = $region12
      $region11: #{tpu_custom_call.1} parent=5 // pred_region
        %s399 = ssub.s32 %s29, 1
        // Predicated region
        $region13: #{tpu_custom_call.1} parent=11 // pred_check
          %p400 = pneg %p50
        $region14: #{tpu_custom_call.1} parent=11 // pred_check_branch
          %402 = sbr.rel (%p400) target = $region16
        $region15: #{tpu_custom_call.1} parent=11 // pred_region
          %s404 = ssub.s32 16, 16
          %405 = vsyncadd [#allocation4], %s404
          %s407 = sshll.u32 %s0, 4
          %s408 = int_to_ptr.vmem [resolvable:$true] %s407
          %410 = dma.vmem_to_smem %s408, 16, [#allocation2], [#allocation4]
        $region16: #{tpu_custom_call.1} parent=11 // pred_fallthru
          _
        // Predicated region
        $region17: #{tpu_custom_call.1} parent=11 // pred_check
          %p411 = pneg %p123
        $region18: #{tpu_custom_call.1} parent=11 // pred_check_branch
          %413 = sbr.rel (%p411) target = $region20
        $region19: #{tpu_custom_call.1} parent=11 // pred_region
          _
        $region20: #{tpu_custom_call.1} parent=11 // pred_fallthru
          _
        // Predicated region
        $region21: #{tpu_custom_call.1} parent=11 // pred_check
          %p414 = pneg %p144
        $region22: #{tpu_custom_call.1} parent=11 // pred_check_branch
          %416 = sbr.rel (%p414) target = $region24
        $region23: #{tpu_custom_call.1} parent=11 // pred_region
          _
        $region24: #{tpu_custom_call.1} parent=11 // pred_fallthru
          _
        // Predicated region
        $region25: #{tpu_custom_call.1} parent=11 // pred_check
          %p417 = pneg %p165
        $region26: #{tpu_custom_call.1} parent=11 // pred_check_branch
          %419 = sbr.rel (%p417) target = $region28
        $region27: #{tpu_custom_call.1} parent=11 // pred_region
          _
        $region28: #{tpu_custom_call.1} parent=11 // pred_fallthru
          _
        // Predicated region
        $region29: #{tpu_custom_call.1} parent=11 // pred_check
          %p420 = pneg %p186
        $region30: #{tpu_custom_call.1} parent=11 // pred_check_branch
          %422 = sbr.rel (%p420) target = $region32
        $region31: #{tpu_custom_call.1} parent=11 // pred_region
          _
        $region32: #{tpu_custom_call.1} parent=11 // pred_fallthru
          _
        // Predicated region
        $region33: #{tpu_custom_call.1} parent=11 // pred_check
          %p423 = pneg %p207
        $region34: #{tpu_custom_call.1} parent=11 // pred_check_branch
          %425 = sbr.rel (%p423) target = $region36
        $region35: #{tpu_custom_call.1} parent=11 // pred_region
          _
        $region36: #{tpu_custom_call.1} parent=11 // pred_fallthru
          _
        // Predicated region
        $region37: #{tpu_custom_call.1} parent=11 // pred_check
          %p426 = pneg %p228
        $region38: #{tpu_custom_call.1} parent=11 // pred_check_branch
          %428 = sbr.rel (%p426) target = $region40
        $region39: #{tpu_custom_call.1} parent=11 // pred_region
          _
        $region40: #{tpu_custom_call.1} parent=11 // pred_fallthru
          _
        // Predicated region
        $region41: #{tpu_custom_call.1} parent=11 // pred_check
          %p429 = pneg %p249
        $region42: #{tpu_custom_call.1} parent=11 // pred_check_branch
          %431 = sbr.rel (%p429) target = $region44
        $region43: #{tpu_custom_call.1} parent=11 // pred_region
          _
        $region44: #{tpu_custom_call.1} parent=11 // pred_fallthru
          _
        // Predicated region
        $region45: #{tpu_custom_call.1} parent=11 // pred_check
          %p432 = pneg %p270
        $region46: #{tpu_custom_call.1} parent=11 // pred_check_branch
          %434 = sbr.rel (%p432) target = $region48
        $region47: #{tpu_custom_call.1} parent=11 // pred_region
          _
        $region48: #{tpu_custom_call.1} parent=11 // pred_fallthru
          _
        // Predicated region
        $region49: #{tpu_custom_call.1} parent=11 // pred_check
          %p435 = pneg %p291
        $region50: #{tpu_custom_call.1} parent=11 // pred_check_branch
          %437 = sbr.rel (%p435) target = $region52
        $region51: #{tpu_custom_call.1} parent=11 // pred_region
          _
        $region52: #{tpu_custom_call.1} parent=11 // pred_fallthru
          _
        // Predicated region
        $region53: #{tpu_custom_call.1} parent=11 // pred_check
          %p438 = pneg %p312
        $region54: #{tpu_custom_call.1} parent=11 // pred_check_branch
          %440 = sbr.rel (%p438) target = $region56
        $region55: #{tpu_custom_call.1} parent=11 // pred_region
          _
        $region56: #{tpu_custom_call.1} parent=11 // pred_fallthru
          _
        // Predicated region
        $region57: #{tpu_custom_call.1} parent=11 // pred_check
          %p441 = pneg %p333
        $region58: #{tpu_custom_call.1} parent=11 // pred_check_branch
          %443 = sbr.rel (%p441) target = $region60
        $region59: #{tpu_custom_call.1} parent=11 // pred_region
          _
        $region60: #{tpu_custom_call.1} parent=11 // pred_fallthru
          _
      $region12: #{tpu_custom_call.1} parent=5 // pred_fallthru
        _
      %p444 = scmp.lt.s32.totalorder %s29, 2
      // Predicated region
      $region61: #{tpu_custom_call.1} parent=5 // pred_check
        %p445 = pneg %p444
      $region62: #{tpu_custom_call.1} parent=5 // pred_check_branch
        %447 = sbr.rel (%p445) target = $region64
      $region63: #{tpu_custom_call.1} parent=5 // pred_region
        // Predicated region
        $region65: #{tpu_custom_call.1} parent=63 // pred_check
          %p448 = pneg %p70
        $region66: #{tpu_custom_call.1} parent=63 // pred_check_branch
          %450 = sbr.rel (%p448) target = $region68
        $region67: #{tpu_custom_call.1} parent=63 // pred_region
          %s451 = smul.u32 2, %s29
          %p452 = scmp.lt.s32.totalorder %s451, 3
          %s453 = scalar_select %p452, %s451, 3
          %s454 = smul.addr %s453, 8
          %s455 = scalar_lea.vmem %s1, %s454
          %s456 = smul.u32 2, %s29
        $region68: #{tpu_custom_call.1} parent=63 // pred_fallthru
          _
        // Predicated region
        $region69: #{tpu_custom_call.1} parent=63 // pred_check
          %p457 = pneg %p96
        $region70: #{tpu_custom_call.1} parent=63 // pred_check_branch
          %459 = sbr.rel (%p457) target = $region72
        $region71: #{tpu_custom_call.1} parent=63 // pred_region
          %s460 = smul.u32 2, %s29
          %p461 = scmp.lt.s32.totalorder %s460, 3
          %s462 = scalar_select %p461, %s460, 3
          %s463 = smul.addr %s462, 16
          %s464 = smul.addr %s463, 8
          %s465 = scalar_lea.vmem %s2, %s464
          %s466 = smul.u32 2, %s29
        $region72: #{tpu_custom_call.1} parent=63 // pred_fallthru
          _
      $region64: #{tpu_custom_call.1} parent=5 // pred_fallthru
        _
      %p467 = scmp.le.s32.totalorder 1, %s29
      %p468 = scmp.lt.s32.totalorder %s29, 3
      %p469 = pnand %p467, %p468
      %p470 = pneg %p469
      // Predicated region
      $region73: #{tpu_custom_call.1} parent=5 // pred_check
        _
      $region74: #{tpu_custom_call.1} parent=5 // pred_check_branch
        %472 = sbr.rel (%p469) target = $region76
      $region75: #{tpu_custom_call.1} parent=5 // pred_region
        %s473 = ssub.s32 %s29, 1
        // Predicated region
        $region77: #{tpu_custom_call.1} parent=75 // pred_check
          %p474 = pneg %p50
        $region78: #{tpu_custom_call.1} parent=75 // pred_check_branch
          %476 = sbr.rel (%p474) target = $region80
        $region79: #{tpu_custom_call.1} parent=75 // pred_region
          %477 = dma.done [#allocation4], 16
        $region80: #{tpu_custom_call.1} parent=75 // pred_fallthru
          _
        %478 = sfence
        %p479 = pneg %p50
        %p480 = pneg %p47
        %s481 = smul.u32 2, %s34
        %p482 = scmp.lt.s32.totalorder %s481, 3
        %s483 = scalar_select %p482, %s481, 3
        %s484 = smul.addr %s483, 8
        %s485 = scalar_lea.vmem %s1, %s484
        %p486 = pneg %p76
        %p487 = pneg %p73
        %s488 = smul.u32 2, %s34
        %p489 = scmp.lt.s32.totalorder %s488, 3
        %s490 = scalar_select %p489, %s488, 3
        %s491 = smul.addr %s490, 16
        %s492 = smul.addr %s491, 8
        %s493 = scalar_lea.vmem %s2, %s492
        %p494 = pneg %p102
        %p495 = pneg %p99
        %p496 = pneg %p123
        %p497 = pneg %p120
        %p498 = pneg %p144
        %p499 = pneg %p141
        %p500 = pneg %p165
        %p501 = pneg %p162
        %p502 = pneg %p186
        %p503 = pneg %p183
        %p504 = pneg %p207
        %p505 = pneg %p204
        %p506 = pneg %p228
        %p507 = pneg %p225
        %p508 = pneg %p249
        %p509 = pneg %p246
        %p510 = pneg %p270
        %p511 = pneg %p267
        %p512 = pneg %p291
        %p513 = pneg %p288
        %p514 = pneg %p312
        %p515 = pneg %p309
        %p516 = pneg %p333
        %p517 = pneg %p330
        %p518 = pneg %p359
        %p519 = pneg %p356
        %s520 = sand.u32 %s346, 1
        %s521 = scalar_lea.sflag [#allocation3], %s520
        %s522 = sand.u32 %s346, 1
        %s523 = smul.addr %s522, 2
        %s524 = scalar_lea.vmem [#allocation5], %s523
        %p525 = pneg %p385
        %p526 = pneg %p382
        %s527 = sand.u32 %s372, 1
        %s528 = scalar_lea.sflag [#allocation7], %s527
        %s529 = sand.u32 %s372, 1
        %s530 = smul.addr %s529, 64
        %s531 = scalar_lea.vmem [#allocation6], %s530
        %s532 = smul.u32 2, %s34
        %p533 = scmp.lt.s32.totalorder %s532, 3
        %s534 = scalar_select %p533, %s532, 3
        %s535 = smul.addr %s534, 8
        %s536 = scalar_lea.vmem %s1, %s535
        %s537 = smul.u32 2, %s34
        %s538 = smul.u32 2, %s34
        %p539 = scmp.lt.s32.totalorder %s538, 3
        %s540 = scalar_select %p539, %s538, 3
        %s541 = smul.addr %s540, 16
        %s542 = smul.addr %s541, 8
        %s543 = scalar_lea.vmem %s2, %s542
        %s544 = smul.u32 2, %s34
        %s545 = smul.u32 2, %s34
        %s546 = sld [smem:[#allocation2]]
        %s547 = sld [smem:[#allocation2 + $0x1]]
        %v548 = vld [vmem:[%s536] sm:$0xff]
        %v549 = vld [vmem:[%s536 + $0x8] sm:$0xff]
        %v550 = vld [vmem:[%s543] sm:$0xff]
        %v551 = vld [vmem:[%s543 + $0x8] sm:$0xff]
        %v552 = vld [vmem:[%s543 + $0x10] sm:$0xff]
        %v553 = vld [vmem:[%s543 + $0x18] sm:$0xff]
        %v554 = vld [vmem:[%s543 + $0x20] sm:$0xff]
        %v555 = vld [vmem:[%s543 + $0x28] sm:$0xff]
        %v556 = vld [vmem:[%s543 + $0x30] sm:$0xff]
        %v557 = vld [vmem:[%s543 + $0x38] sm:$0xff]
        %v558 = vld [vmem:[%s543 + $0x40] sm:$0xff]
        %v559 = vld [vmem:[%s543 + $0x48] sm:$0xff]
        %v560 = vld [vmem:[%s543 + $0x50] sm:$0xff]
        %v561 = vld [vmem:[%s543 + $0x58] sm:$0xff]
        %v562 = vld [vmem:[%s543 + $0x60] sm:$0xff]
        %v563 = vld [vmem:[%s543 + $0x68] sm:$0xff]
        %v564 = vld [vmem:[%s543 + $0x70] sm:$0xff]
        %v565 = vld [vmem:[%s543 + $0x78] sm:$0xff]
        %v566 = vld [vmem:[%s543 + $0x80] sm:$0xff]
        %v567 = vld [vmem:[%s543 + $0x88] sm:$0xff]
        %v568 = vld [vmem:[%s543 + $0x90] sm:$0xff]
        %v569 = vld [vmem:[%s543 + $0x98] sm:$0xff]
        %v570 = vld [vmem:[%s543 + $0xa0] sm:$0xff]
        %v571 = vld [vmem:[%s543 + $0xa8] sm:$0xff]
        %v572 = vld [vmem:[%s543 + $0xb0] sm:$0xff]
        %v573 = vld [vmem:[%s543 + $0xb8] sm:$0xff]
        %v574 = vld [vmem:[%s543 + $0xc0] sm:$0xff]
        %v575 = vld [vmem:[%s543 + $0xc8] sm:$0xff]
        %v576 = vld [vmem:[%s543 + $0xd0] sm:$0xff]
        %v577 = vld [vmem:[%s543 + $0xd8] sm:$0xff]
        %v578 = vld [vmem:[%s543 + $0xe0] sm:$0xff]
        %v579 = vld [vmem:[%s543 + $0xe8] sm:$0xff]
        %v580 = vld [vmem:[%s543 + $0xf0] sm:$0xff]
        %v581 = vld [vmem:[%s543 + $0xf8] sm:$0xff]
        %v582 = vld [vmem:[%s3] sm:$0xff]
        %v583 = vld [vmem:[%s3 + $0x8] sm:$0xff]
        %vm584 = vcmask 130048
        %v586 = vsel %vm584, %v548, 0
        %v589 = vsel %vm584, %v549, 0
        %591 = vmatprep.subr.mxu0 0.0
        %592 = vmatpush1.msra.mxu0 0.0
        %593 = vmatprep.subr.mxu0 0.0
        %594 = vmatpush1.msra.mxu0 0.0
        %595 = vmatprep.subr.mxu0 0.0
        %596 = vmatpush1.msra.mxu0 0.0
        %597 = vmatprep.subr.mxu0 0.0
        %598 = vmatpush1.msra.mxu0 0.0
        %599 = vmatprep.subr.mxu0 0.0
        %600 = vmatpush1.msra.mxu0 0.0
        %601 = vmatprep.subr.mxu0 0.0
        %602 = vmatpush1.msra.mxu0 0.0
        %603 = vmatprep.subr.mxu0 0.0
        %604 = vmatpush1.msra.mxu0 0.0
        %605 = vmatprep.subr.mxu0 0.0
        %606 = vmatpush1.msra.mxu0 0.0
        %607 = vmatprep.subr.mxu0 0.0
        %608 = vmatpush1.msra.mxu0 0.0
        %609 = vmatprep.subr.mxu0 0.0
        %610 = vmatpush1.msra.mxu0 0.0
        %611 = vmatprep.subr.mxu0 0.0
        %612 = vmatpush1.msra.mxu0 0.0
        %613 = vmatprep.subr.mxu0 0.0
        %614 = vmatpush1.msra.mxu0 0.0
        %615 = vmatprep.subr.mxu0 0.0
        %616 = vmatpush1.msra.mxu0 0.0
        %617 = vmatprep.subr.mxu0 0.0
        %618 = vmatpush1.msra.mxu0 0.0
        %619 = vmatprep.subr.mxu0 0.0
        %620 = vmatpush1.msra.mxu0 %v583
        %621 = vmatprep.subr.mxu0 0.0
        %622 = vmatpush1.msra.mxu0 %v582
        %623 = vmatprep.subr.mxu0 0.0
        %624 = vmatpush2.msra.mxu0 0.0
        %625 = vmatprep.subr.mxu0 0.0
        %626 = vmatpush2.msra.mxu0 0.0
        %627 = vmatprep.subr.mxu0 0.0
        %628 = vmatpush2.msra.mxu0 0.0
        %629 = vmatprep.subr.mxu0 0.0
        %630 = vmatpush2.msra.mxu0 0.0
        %631 = vmatprep.subr.mxu0 0.0
        %632 = vmatpush2.msra.mxu0 0.0
        %633 = vmatprep.subr.mxu0 0.0
        %634 = vmatpush2.msra.mxu0 0.0
        %635 = vmatprep.subr.mxu0 0.0
        %636 = vmatpush2.msra.mxu0 0.0
        %637 = vmatprep.subr.mxu0 0.0
        %638 = vmatpush2.msra.mxu0 0.0
        %639 = vmatprep.subr.mxu0 0.0
        %640 = vmatpush2.msra.mxu0 0.0
        %641 = vmatprep.subr.mxu0 0.0
        %642 = vmatpush2.msra.mxu0 0.0
        %643 = vmatprep.subr.mxu0 0.0
        %644 = vmatpush2.msra.mxu0 0.0
        %645 = vmatprep.subr.mxu0 0.0
        %646 = vmatpush2.msra.mxu0 0.0
        %647 = vmatprep.subr.mxu0 0.0
        %648 = vmatpush2.msra.mxu0 0.0
        %649 = vmatprep.subr.mxu0 0.0
        %650 = vmatpush2.msra.mxu0 0.0
        %651 = vmatprep.subr.mxu0 0.0
        %652 = vmatpush2.msra.mxu0 0.0
        %653 = vmatprep.subr.mxu0 0.0
        %654 = vmatpush2.msra.mxu0 0.0
        %655 = vmatprep.mubr.f32.mxu0 0.0
        %656 = vmatmul.mubr.f32.gmra.mxu0 %v586
        %v657 = vpop.f32.mrf.mxu0
        %v658 = vadd.f32 0.0, %v657
        %v659 = vpop.f32.mrf.mxu0
        %660 = vmatprep.mubr.f32.mxu0 0.0
        %661 = vmatmul.mubr.f32.gmra.mxu0 %v589
        %v662 = vpop.f32.mrf.mxu0
        %v663 = vadd.f32 0.0, %v662
        %v664 = vpop.f32.mrf.mxu0
        %665 = vdwg.mxu0
        %v666 = vstv %s546
        %v667 = vmul.f32 %v658, %v666
        %v668 = vmul.f32 %v663, %v666
        %v669 = vld [vmem:[%s4] sm:$0x1]
        %v671 = vlaneseq
        %v672 = vshrl.u32 %v671, 7
        %v673 = vsub.s32 0, %v672
        %v674 = vrot.slane %v669, %v673
        %v676 = vadd.f32 %v667, %v674
        %v677 = vadd.f32 %v668, %v674
        %v678 = vmax.f32 %v676, 0.0
        %v679 = vmax.f32 %v677, 0.0
        %v680 = vld [vmem:[%s5] sm:$0xff]
        %v681 = vld [vmem:[%s5 + $0x8] sm:$0xff]
        %v682 = vld [vmem:[%s5 + $0x10] sm:$0xff]
        %vm683 = vcmask 195584
        %v685 = vsel %vm683, %v550, 0
        %v688 = vsel %vm683, %v551, 0
        %v691 = vsel %vm683, %v552, 0
        %v694 = vsel %vm683, %v553, 0
        %v697 = vsel %vm683, %v554, 0
        %v700 = vsel %vm683, %v555, 0
        %v703 = vsel %vm683, %v556, 0
        %v706 = vsel %vm683, %v557, 0
        %v709 = vsel %vm683, %v558, 0
        %v712 = vsel %vm683, %v559, 0
        %v715 = vsel %vm683, %v560, 0
        %v718 = vsel %vm683, %v561, 0
        %v721 = vsel %vm683, %v562, 0
        %v724 = vsel %vm683, %v563, 0
        %v727 = vsel %vm683, %v564, 0
        %v730 = vsel %vm683, %v565, 0
        %v733 = vsel %vm683, %v566, 0
        %v736 = vsel %vm683, %v567, 0
        %v739 = vsel %vm683, %v568, 0
        %v742 = vsel %vm683, %v569, 0
        %v745 = vsel %vm683, %v570, 0
        %v748 = vsel %vm683, %v571, 0
        %v751 = vsel %vm683, %v572, 0
        %v754 = vsel %vm683, %v573, 0
        %v757 = vsel %vm683, %v574, 0
        %v760 = vsel %vm683, %v575, 0
        %v763 = vsel %vm683, %v576, 0
        %v766 = vsel %vm683, %v577, 0
        %v769 = vsel %vm683, %v578, 0
        %v772 = vsel %vm683, %v579, 0
        %v775 = vsel %vm683, %v580, 0
        %v778 = vsel %vm683, %v581, 0
        %780 = vmatprep.subr.mxu0 0.0
        %781 = vmatpush1.msra.mxu0 0.0
        %782 = vmatprep.subr.mxu0 0.0
        %783 = vmatpush1.msra.mxu0 0.0
        %784 = vmatprep.subr.mxu0 0.0
        %785 = vmatpush1.msra.mxu0 0.0
        %786 = vmatprep.subr.mxu0 0.0
        %787 = vmatpush1.msra.mxu0 0.0
        %788 = vmatprep.subr.mxu0 0.0
        %789 = vmatpush1.msra.mxu0 0.0
        %790 = vmatprep.subr.mxu0 0.0
        %791 = vmatpush1.msra.mxu0 0.0
        %792 = vmatprep.subr.mxu0 0.0
        %793 = vmatpush1.msra.mxu0 0.0
        %794 = vmatprep.subr.mxu0 0.0
        %795 = vmatpush1.msra.mxu0 0.0
        %796 = vmatprep.subr.mxu0 0.0
        %797 = vmatpush1.msra.mxu0 0.0
        %798 = vmatprep.subr.mxu0 0.0
        %799 = vmatpush1.msra.mxu0 0.0
        %800 = vmatprep.subr.mxu0 0.0
        %801 = vmatpush1.msra.mxu0 0.0
        %802 = vmatprep.subr.mxu0 0.0
        %803 = vmatpush1.msra.mxu0 0.0
        %804 = vmatprep.subr.mxu0 0.0
        %805 = vmatpush1.msra.mxu0 0.0
        %806 = vmatprep.subr.mxu0 0.0
        %807 = vmatpush1.msra.mxu0 %v682
        %808 = vmatprep.subr.mxu0 0.0
        %809 = vmatpush1.msra.mxu0 %v681
        %810 = vmatprep.subr.mxu0 0.0
        %811 = vmatpush1.msra.mxu0 %v680
        %812 = vmatprep.subr.mxu0 0.0
        %813 = vmatpush2.msra.mxu0 0.0
        %814 = vmatprep.subr.mxu0 0.0
        %815 = vmatpush2.msra.mxu0 0.0
        %816 = vmatprep.subr.mxu0 0.0
        %817 = vmatpush2.msra.mxu0 0.0
        %818 = vmatprep.subr.mxu0 0.0
        %819 = vmatpush2.msra.mxu0 0.0
        %820 = vmatprep.subr.mxu0 0.0
        %821 = vmatpush2.msra.mxu0 0.0
        %822 = vmatprep.subr.mxu0 0.0
        %823 = vmatpush2.msra.mxu0 0.0
        %824 = vmatprep.subr.mxu0 0.0
        %825 = vmatpush2.msra.mxu0 0.0
        %826 = vmatprep.subr.mxu0 0.0
        %827 = vmatpush2.msra.mxu0 0.0
        %828 = vmatprep.subr.mxu0 0.0
        %829 = vmatpush2.msra.mxu0 0.0
        %830 = vmatprep.subr.mxu0 0.0
        %831 = vmatpush2.msra.mxu0 0.0
        %832 = vmatprep.subr.mxu0 0.0
        %833 = vmatpush2.msra.mxu0 0.0
        %834 = vmatprep.subr.mxu0 0.0
        %835 = vmatpush2.msra.mxu0 0.0
        %836 = vmatprep.subr.mxu0 0.0
        %837 = vmatpush2.msra.mxu0 0.0
        %838 = vmatprep.subr.mxu0 0.0
        %839 = vmatpush2.msra.mxu0 0.0
        %840 = vmatprep.subr.mxu0 0.0
        %841 = vmatpush2.msra.mxu0 0.0
        %842 = vmatprep.subr.mxu0 0.0
        %843 = vmatpush2.msra.mxu0 0.0
        %844 = vmatprep.mubr.f32.mxu0 0.0
        %845 = vmatmul.mubr.f32.gmra.mxu0 %v685
        %v846 = vpop.f32.mrf.mxu0
        %v847 = vadd.f32 0.0, %v846
        %v848 = vpop.f32.mrf.mxu0
        %849 = vmatprep.mubr.f32.mxu0 0.0
        %850 = vmatmul.mubr.f32.gmra.mxu0 %v688
        %v851 = vpop.f32.mrf.mxu0
        %v852 = vadd.f32 0.0, %v851
        %v853 = vpop.f32.mrf.mxu0
        %854 = vmatprep.mubr.f32.mxu0 0.0
        %855 = vmatmul.mubr.f32.gmra.mxu0 %v691
        %v856 = vpop.f32.mrf.mxu0
        %v857 = vadd.f32 0.0, %v856
        %v858 = vpop.f32.mrf.mxu0
        %859 = vmatprep.mubr.f32.mxu0 0.0
        %860 = vmatmul.mubr.f32.gmra.mxu0 %v694
        %v861 = vpop.f32.mrf.mxu0
        %v862 = vadd.f32 0.0, %v861
        %v863 = vpop.f32.mrf.mxu0
        %864 = vmatprep.mubr.f32.mxu0 0.0
        %865 = vmatmul.mubr.f32.gmra.mxu0 %v697
        %v866 = vpop.f32.mrf.mxu0
        %v867 = vadd.f32 0.0, %v866
        %v868 = vpop.f32.mrf.mxu0
        %869 = vmatprep.mubr.f32.mxu0 0.0
        %870 = vmatmul.mubr.f32.gmra.mxu0 %v700
        %v871 = vpop.f32.mrf.mxu0
        %v872 = vadd.f32 0.0, %v871
        %v873 = vpop.f32.mrf.mxu0
        %874 = vmatprep.mubr.f32.mxu0 0.0
        %875 = vmatmul.mubr.f32.gmra.mxu0 %v703
        %v876 = vpop.f32.mrf.mxu0
        %v877 = vadd.f32 0.0, %v876
        %v878 = vpop.f32.mrf.mxu0
        %879 = vmatprep.mubr.f32.mxu0 0.0
        %880 = vmatmul.mubr.f32.gmra.mxu0 %v706
        %v881 = vpop.f32.mrf.mxu0
        %v882 = vadd.f32 0.0, %v881
        %v883 = vpop.f32.mrf.mxu0
        %884 = vmatprep.mubr.f32.mxu0 0.0
        %885 = vmatmul.mubr.f32.gmra.mxu0 %v709
        %v886 = vpop.f32.mrf.mxu0
        %v887 = vadd.f32 0.0, %v886
        %v888 = vpop.f32.mrf.mxu0
        %889 = vmatprep.mubr.f32.mxu0 0.0
        %890 = vmatmul.mubr.f32.gmra.mxu0 %v712
        %v891 = vpop.f32.mrf.mxu0
        %v892 = vadd.f32 0.0, %v891
        %v893 = vpop.f32.mrf.mxu0
        %894 = vmatprep.mubr.f32.mxu0 0.0
        %895 = vmatmul.mubr.f32.gmra.mxu0 %v715
        %v896 = vpop.f32.mrf.mxu0
        %v897 = vadd.f32 0.0, %v896
        %v898 = vpop.f32.mrf.mxu0
        %899 = vmatprep.mubr.f32.mxu0 0.0
        %900 = vmatmul.mubr.f32.gmra.mxu0 %v718
        %v901 = vpop.f32.mrf.mxu0
        %v902 = vadd.f32 0.0, %v901
        %v903 = vpop.f32.mrf.mxu0
        %904 = vmatprep.mubr.f32.mxu0 0.0
        %905 = vmatmul.mubr.f32.gmra.mxu0 %v721
        %v906 = vpop.f32.mrf.mxu0
        %v907 = vadd.f32 0.0, %v906
        %v908 = vpop.f32.mrf.mxu0
        %909 = vmatprep.mubr.f32.mxu0 0.0
        %910 = vmatmul.mubr.f32.gmra.mxu0 %v724
        %v911 = vpop.f32.mrf.mxu0
        %v912 = vadd.f32 0.0, %v911
        %v913 = vpop.f32.mrf.mxu0
        %914 = vmatprep.mubr.f32.mxu0 0.0
        %915 = vmatmul.mubr.f32.gmra.mxu0 %v727
        %v916 = vpop.f32.mrf.mxu0
        %v917 = vadd.f32 0.0, %v916
        %v918 = vpop.f32.mrf.mxu0
        %919 = vmatprep.mubr.f32.mxu0 0.0
        %920 = vmatmul.mubr.f32.gmra.mxu0 %v730
        %v921 = vpop.f32.mrf.mxu0
        %v922 = vadd.f32 0.0, %v921
        %v923 = vpop.f32.mrf.mxu0
        %924 = vmatprep.mubr.f32.mxu0 0.0
        %925 = vmatmul.mubr.f32.gmra.mxu0 %v733
        %v926 = vpop.f32.mrf.mxu0
        %v927 = vadd.f32 0.0, %v926
        %v928 = vpop.f32.mrf.mxu0
        %929 = vmatprep.mubr.f32.mxu0 0.0
        %930 = vmatmul.mubr.f32.gmra.mxu0 %v736
        %v931 = vpop.f32.mrf.mxu0
        %v932 = vadd.f32 0.0, %v931
        %v933 = vpop.f32.mrf.mxu0
        %934 = vmatprep.mubr.f32.mxu0 0.0
        %935 = vmatmul.mubr.f32.gmra.mxu0 %v739
        %v936 = vpop.f32.mrf.mxu0
        %v937 = vadd.f32 0.0, %v936
        %v938 = vpop.f32.mrf.mxu0
        %939 = vmatprep.mubr.f32.mxu0 0.0
        %940 = vmatmul.mubr.f32.gmra.mxu0 %v742
        %v941 = vpop.f32.mrf.mxu0
        %v942 = vadd.f32 0.0, %v941
        %v943 = vpop.f32.mrf.mxu0
        %944 = vmatprep.mubr.f32.mxu0 0.0
        %945 = vmatmul.mubr.f32.gmra.mxu0 %v745
        %v946 = vpop.f32.mrf.mxu0
        %v947 = vadd.f32 0.0, %v946
        %v948 = vpop.f32.mrf.mxu0
        %949 = vmatprep.mubr.f32.mxu0 0.0
        %950 = vmatmul.mubr.f32.gmra.mxu0 %v748
        %v951 = vpop.f32.mrf.mxu0
        %v952 = vadd.f32 0.0, %v951
        %v953 = vpop.f32.mrf.mxu0
        %954 = vmatprep.mubr.f32.mxu0 0.0
        %955 = vmatmul.mubr.f32.gmra.mxu0 %v751
        %v956 = vpop.f32.mrf.mxu0
        %v957 = vadd.f32 0.0, %v956
        %v958 = vpop.f32.mrf.mxu0
        %959 = vmatprep.mubr.f32.mxu0 0.0
        %960 = vmatmul.mubr.f32.gmra.mxu0 %v754
        %v961 = vpop.f32.mrf.mxu0
        %v962 = vadd.f32 0.0, %v961
        %v963 = vpop.f32.mrf.mxu0
        %964 = vmatprep.mubr.f32.mxu0 0.0
        %965 = vmatmul.mubr.f32.gmra.mxu0 %v757
        %v966 = vpop.f32.mrf.mxu0
        %v967 = vadd.f32 0.0, %v966
        %v968 = vpop.f32.mrf.mxu0
        %969 = vmatprep.mubr.f32.mxu0 0.0
        %970 = vmatmul.mubr.f32.gmra.mxu0 %v760
        %v971 = vpop.f32.mrf.mxu0
        %v972 = vadd.f32 0.0, %v971
        %v973 = vpop.f32.mrf.mxu0
        %974 = vmatprep.mubr.f32.mxu0 0.0
        %975 = vmatmul.mubr.f32.gmra.mxu0 %v763
        %v976 = vpop.f32.mrf.mxu0
        %v977 = vadd.f32 0.0, %v976
        %v978 = vpop.f32.mrf.mxu0
        %979 = vmatprep.mubr.f32.mxu0 0.0
        %980 = vmatmul.mubr.f32.gmra.mxu0 %v766
        %v981 = vpop.f32.mrf.mxu0
        %v982 = vadd.f32 0.0, %v981
        %v983 = vpop.f32.mrf.mxu0
        %984 = vmatprep.mubr.f32.mxu0 0.0
        %985 = vmatmul.mubr.f32.gmra.mxu0 %v769
        %v986 = vpop.f32.mrf.mxu0
        %v987 = vadd.f32 0.0, %v986
        %v988 = vpop.f32.mrf.mxu0
        %989 = vmatprep.mubr.f32.mxu0 0.0
        %990 = vmatmul.mubr.f32.gmra.mxu0 %v772
        %v991 = vpop.f32.mrf.mxu0
        %v992 = vadd.f32 0.0, %v991
        %v993 = vpop.f32.mrf.mxu0
        %994 = vmatprep.mubr.f32.mxu0 0.0
        %995 = vmatmul.mubr.f32.gmra.mxu0 %v775
        %v996 = vpop.f32.mrf.mxu0
        %v997 = vadd.f32 0.0, %v996
        %v998 = vpop.f32.mrf.mxu0
        %999 = vmatprep.mubr.f32.mxu0 0.0
        %1000 = vmatmul.mubr.f32.gmra.mxu0 %v778
        %v1001 = vpop.f32.mrf.mxu0
        %v1002 = vadd.f32 0.0, %v1001
        %v1003 = vpop.f32.mrf.mxu0
        %1004 = vdwg.mxu0
        %v1005 = vstv %s547
        %v1006 = vmul.f32 %v847, %v1005
        %v1007 = vmul.f32 %v852, %v1005
        %v1008 = vmul.f32 %v857, %v1005
        %v1009 = vmul.f32 %v862, %v1005
        %v1010 = vmul.f32 %v867, %v1005
        %v1011 = vmul.f32 %v872, %v1005
        %v1012 = vmul.f32 %v877, %v1005
        %v1013 = vmul.f32 %v882, %v1005
        %v1014 = vmul.f32 %v887, %v1005
        %v1015 = vmul.f32 %v892, %v1005
        %v1016 = vmul.f32 %v897, %v1005
        %v1017 = vmul.f32 %v902, %v1005
        %v1018 = vmul.f32 %v907, %v1005
        %v1019 = vmul.f32 %v912, %v1005
        %v1020 = vmul.f32 %v917, %v1005
        %v1021 = vmul.f32 %v922, %v1005
        %v1022 = vmul.f32 %v927, %v1005
        %v1023 = vmul.f32 %v932, %v1005
        %v1024 = vmul.f32 %v937, %v1005
        %v1025 = vmul.f32 %v942, %v1005
        %v1026 = vmul.f32 %v947, %v1005
        %v1027 = vmul.f32 %v952, %v1005
        %v1028 = vmul.f32 %v957, %v1005
        %v1029 = vmul.f32 %v962, %v1005
        %v1030 = vmul.f32 %v967, %v1005
        %v1031 = vmul.f32 %v972, %v1005
        %v1032 = vmul.f32 %v977, %v1005
        %v1033 = vmul.f32 %v982, %v1005
        %v1034 = vmul.f32 %v987, %v1005
        %v1035 = vmul.f32 %v992, %v1005
        %v1036 = vmul.f32 %v997, %v1005
        %v1037 = vmul.f32 %v1002, %v1005
        %v1038 = vld [vmem:[%s6] sm:$0x1]
        %v1040 = vlaneseq
        %v1041 = vshrl.u32 %v1040, 7
        %v1042 = vsub.s32 0, %v1041
        %v1043 = vrot.slane %v1038, %v1042
        %v1045 = vadd.f32 %v1006, %v1043
        %v1046 = vadd.f32 %v1007, %v1043
        %v1047 = vadd.f32 %v1008, %v1043
        %v1048 = vadd.f32 %v1009, %v1043
        %v1049 = vadd.f32 %v1010, %v1043
        %v1050 = vadd.f32 %v1011, %v1043
        %v1051 = vadd.f32 %v1012, %v1043
        %v1052 = vadd.f32 %v1013, %v1043
        %v1053 = vadd.f32 %v1014, %v1043
        %v1054 = vadd.f32 %v1015, %v1043
        %v1055 = vadd.f32 %v1016, %v1043
        %v1056 = vadd.f32 %v1017, %v1043
        %v1057 = vadd.f32 %v1018, %v1043
        %v1058 = vadd.f32 %v1019, %v1043
        %v1059 = vadd.f32 %v1020, %v1043
        %v1060 = vadd.f32 %v1021, %v1043
        %v1061 = vadd.f32 %v1022, %v1043
        %v1062 = vadd.f32 %v1023, %v1043
        %v1063 = vadd.f32 %v1024, %v1043
        %v1064 = vadd.f32 %v1025, %v1043
        %v1065 = vadd.f32 %v1026, %v1043
        %v1066 = vadd.f32 %v1027, %v1043
        %v1067 = vadd.f32 %v1028, %v1043
        %v1068 = vadd.f32 %v1029, %v1043
        %v1069 = vadd.f32 %v1030, %v1043
        %v1070 = vadd.f32 %v1031, %v1043
        %v1071 = vadd.f32 %v1032, %v1043
        %v1072 = vadd.f32 %v1033, %v1043
        %v1073 = vadd.f32 %v1034, %v1043
        %v1074 = vadd.f32 %v1035, %v1043
        %v1075 = vadd.f32 %v1036, %v1043
        %v1076 = vadd.f32 %v1037, %v1043
        %v1077 = vmax.f32 %v1045, 0.0
        %v1078 = vmax.f32 %v1046, 0.0
        %v1079 = vmax.f32 %v1047, 0.0
        %v1080 = vmax.f32 %v1048, 0.0
        %v1081 = vmax.f32 %v1049, 0.0
        %v1082 = vmax.f32 %v1050, 0.0
        %v1083 = vmax.f32 %v1051, 0.0
        %v1084 = vmax.f32 %v1052, 0.0
        %v1085 = vmax.f32 %v1053, 0.0
        %v1086 = vmax.f32 %v1054, 0.0
        %v1087 = vmax.f32 %v1055, 0.0
        %v1088 = vmax.f32 %v1056, 0.0
        %v1089 = vmax.f32 %v1057, 0.0
        %v1090 = vmax.f32 %v1058, 0.0
        %v1091 = vmax.f32 %v1059, 0.0
        %v1092 = vmax.f32 %v1060, 0.0
        %v1093 = vmax.f32 %v1061, 0.0
        %v1094 = vmax.f32 %v1062, 0.0
        %v1095 = vmax.f32 %v1063, 0.0
        %v1096 = vmax.f32 %v1064, 0.0
        %v1097 = vmax.f32 %v1065, 0.0
        %v1098 = vmax.f32 %v1066, 0.0
        %v1099 = vmax.f32 %v1067, 0.0
        %v1100 = vmax.f32 %v1068, 0.0
        %v1101 = vmax.f32 %v1069, 0.0
        %v1102 = vmax.f32 %v1070, 0.0
        %v1103 = vmax.f32 %v1071, 0.0
        %v1104 = vmax.f32 %v1072, 0.0
        %v1105 = vmax.f32 %v1073, 0.0
        %v1106 = vmax.f32 %v1074, 0.0
        %v1107 = vmax.f32 %v1075, 0.0
        %v1108 = vmax.f32 %v1076, 0.0
        %v1109 = vld [vmem:[%s7] sm:$0x1f]
        %v1110 = vld [vmem:[%s8] sm:$0x1]
        %v1111 = vld [vmem:[%s8 + $0x1] sm:$0x1]
        %v1112 = vld [vmem:[%s8 + $0x2] sm:$0x1]
        %v1113 = vld [vmem:[%s8 + $0x3] sm:$0x1]
        %v1114 = vld [vmem:[%s8 + $0x4] sm:$0x1]
        %v1115 = vld [vmem:[%s9] sm:$0xff]
        %v1116 = vld [vmem:[%s10] sm:$0xff]
        %v1117 = vld [vmem:[%s10 + $0x8] sm:$0xff]
        %v1118 = vld [vmem:[%s10 + $0x10] sm:$0xff]
        %v1119 = vld [vmem:[%s10 + $0x18] sm:$0xff]
        %v1120 = vld [vmem:[%s10 + $0x20] sm:$0xff]
        %v1121 = vld [vmem:[%s10 + $0x28] sm:$0xff]
        %v1122 = vld [vmem:[%s10 + $0x30] sm:$0xff]
        %v1123 = vld [vmem:[%s10 + $0x38] sm:$0xff]
        %v1124 = vld [vmem:[%s10 + $0x40] sm:$0xff]
        %v1125 = vld [vmem:[%s10 + $0x48] sm:$0xff]
        %v1126 = vld [vmem:[%s10 + $0x50] sm:$0xff]
        %v1127 = vld [vmem:[%s10 + $0x58] sm:$0xff]
        %v1128 = vld [vmem:[%s10 + $0x60] sm:$0xff]
        %v1129 = vld [vmem:[%s10 + $0x68] sm:$0xff]
        %v1130 = vld [vmem:[%s10 + $0x70] sm:$0xff]
        %v1131 = vld [vmem:[%s10 + $0x78] sm:$0xff]
        %1133 = vset.pattern.permute.xlu0 0
        %1134 = vperm.xlu0 %1133, %v1115
        %v1135 = vpop.permute.xlu0 %1134
        %v1137 = vmul.f32 %v678, %v1135
        %1139 = vset.pattern.permute.xlu0 0
        %1140 = vperm.xlu0 %1139, %v1116
        %v1141 = vpop.permute.xlu0 %1140
        %1144 = vset.pattern.permute.xlu0 0
        %1145 = vperm.xlu0 %1144, %v1117
        %v1146 = vpop.permute.xlu0 %1145
        %1149 = vset.pattern.permute.xlu0 0
        %1150 = vperm.xlu0 %1149, %v1118
        %v1151 = vpop.permute.xlu0 %1150
        %1154 = vset.pattern.permute.xlu0 0
        %1155 = vperm.xlu0 %1154, %v1119
        %v1156 = vpop.permute.xlu0 %1155
        %1159 = vset.pattern.permute.xlu0 0
        %1160 = vperm.xlu0 %1159, %v1120
        %v1161 = vpop.permute.xlu0 %1160
        %1164 = vset.pattern.permute.xlu0 0
        %1165 = vperm.xlu0 %1164, %v1121
        %v1166 = vpop.permute.xlu0 %1165
        %1169 = vset.pattern.permute.xlu0 0
        %1170 = vperm.xlu0 %1169, %v1122
        %v1171 = vpop.permute.xlu0 %1170
        %1174 = vset.pattern.permute.xlu0 0
        %1175 = vperm.xlu0 %1174, %v1123
        %v1176 = vpop.permute.xlu0 %1175
        %1179 = vset.pattern.permute.xlu0 0
        %1180 = vperm.xlu0 %1179, %v1124
        %v1181 = vpop.permute.xlu0 %1180
        %1184 = vset.pattern.permute.xlu0 0
        %1185 = vperm.xlu0 %1184, %v1125
        %v1186 = vpop.permute.xlu0 %1185
        %1189 = vset.pattern.permute.xlu0 0
        %1190 = vperm.xlu0 %1189, %v1126
        %v1191 = vpop.permute.xlu0 %1190
        %1194 = vset.pattern.permute.xlu0 0
        %1195 = vperm.xlu0 %1194, %v1127
        %v1196 = vpop.permute.xlu0 %1195
        %1199 = vset.pattern.permute.xlu0 0
        %1200 = vperm.xlu0 %1199, %v1128
        %v1201 = vpop.permute.xlu0 %1200
        %1204 = vset.pattern.permute.xlu0 0
        %1205 = vperm.xlu0 %1204, %v1129
        %v1206 = vpop.permute.xlu0 %1205
        %1209 = vset.pattern.permute.xlu0 0
        %1210 = vperm.xlu0 %1209, %v1130
        %v1211 = vpop.permute.xlu0 %1210
        %1214 = vset.pattern.permute.xlu0 0
        %1215 = vperm.xlu0 %1214, %v1131
        %v1216 = vpop.permute.xlu0 %1215
        %v1218 = vmul.f32 %v1077, %v1141
        %v1219 = vmul.f32 %v1078, %v1146
        %v1220 = vmul.f32 %v1079, %v1151
        %v1221 = vmul.f32 %v1080, %v1156
        %v1222 = vmul.f32 %v1081, %v1161
        %v1223 = vmul.f32 %v1082, %v1166
        %v1224 = vmul.f32 %v1083, %v1171
        %v1225 = vmul.f32 %v1084, %v1176
        %v1226 = vmul.f32 %v1085, %v1181
        %v1227 = vmul.f32 %v1086, %v1186
        %v1228 = vmul.f32 %v1087, %v1191
        %v1229 = vmul.f32 %v1088, %v1196
        %v1230 = vmul.f32 %v1089, %v1201
        %v1231 = vmul.f32 %v1090, %v1206
        %v1232 = vmul.f32 %v1091, %v1211
        %v1233 = vmul.f32 %v1092, %v1216
        %v1235 = vcombine.high %v1109, %v1109
        %v1237 = vunpack.c.l.s4 1966171168
        %v1238 = vunpack.c.0.s8 %v1237
        %v1239 = vlaneseq
        %v1240 = vshrl.u32 %v1239, 7
        %v1241 = vsub.s32 %v1238, %v1240
        %v1242 = vrot.slane %v1109, %v1241
        %v1244 = vunpack.c.l.s4 1966171168
        %v1245 = vunpack.c.0.s8 %v1244
        %v1246 = vlaneseq
        %v1247 = vshrl.u32 %v1246, 7
        %v1248 = vsub.s32 %v1245, %v1247
        %v1249 = vrot.slane %v1235, %v1248
        %v1250 = vcombine.high %v1242, %v1242
        %v1252 = vunpack.c.l.s4 1966171168
        %v1253 = vunpack.c.0.s8 %v1252
        %v1254 = vlaneseq
        %v1255 = vshrl.u32 %v1254, 7
        %v1256 = vsub.s32 %v1253, %v1255
        %v1257 = vrot.slane %v1242, %v1256
        %v1259 = vunpack.c.l.s4 1966171168
        %v1260 = vunpack.c.0.s8 %v1259
        %v1261 = vlaneseq
        %v1262 = vshrl.u32 %v1261, 7
        %v1263 = vsub.s32 %v1260, %v1262
        %v1264 = vrot.slane %v1249, %v1263
        %v1266 = vunpack.c.l.s4 1966171168
        %v1267 = vunpack.c.0.s8 %v1266
        %v1268 = vlaneseq
        %v1269 = vshrl.u32 %v1268, 7
        %v1270 = vsub.s32 %v1267, %v1269
        %v1271 = vrot.slane %v1250, %v1270
        %v1272 = vcombine.high %v1257, %v1257
        %v1273 = vcombine.high %v1271, %v1271
        %v1274 = vlaneseq
        %v1275 = vshrl.u32 %v1274, 7
        %v1276 = vsub.s32 0, %v1275
        %v1277 = vrot.slane %v1257, %v1276
        %v1278 = vlaneseq
        %v1279 = vshrl.u32 %v1278, 7
        %v1280 = vsub.s32 0, %v1279
        %v1281 = vrot.slane %v1271, %v1280
        %v1282 = vlaneseq
        %v1283 = vshrl.u32 %v1282, 7
        %v1284 = vsub.s32 0, %v1283
        %v1285 = vrot.slane %v1272, %v1284
        %v1286 = vlaneseq
        %v1287 = vshrl.u32 %v1286, 7
        %v1288 = vsub.s32 0, %v1287
        %v1289 = vrot.slane %v1273, %v1288
        %v1290 = vlaneseq
        %v1291 = vshrl.u32 %v1290, 7
        %v1292 = vsub.s32 0, %v1291
        %v1293 = vrot.slane %v1264, %v1292
        %v1299 = vmul.f32 %v1277, %v1137
        %v1300 = vmul.f32 %v1281, %v1137
        %v1301 = vmul.f32 %v1285, %v1137
        %v1302 = vmul.f32 %v1289, %v1137
        %v1303 = vmul.f32 %v1293, %v1137
        %v1305 = vsel %vm683, %v1299, 0
        %v1308 = vsel %vm683, %v1300, 0
        %v1311 = vsel %vm683, %v1301, 0
        %v1314 = vsel %vm683, %v1302, 0
        %v1317 = vsel %vm683, %v1303, 0
        %v1320 = vsel %vm683, %v1218, 0
        %v1323 = vsel %vm683, %v1219, 0
        %v1326 = vsel %vm683, %v1220, 0
        %v1329 = vsel %vm683, %v1221, 0
        %v1332 = vsel %vm683, %v1222, 0
        %v1335 = vsel %vm683, %v1223, 0
        %v1338 = vsel %vm683, %v1224, 0
        %v1341 = vsel %vm683, %v1225, 0
        %v1344 = vsel %vm683, %v1226, 0
        %v1347 = vsel %vm683, %v1227, 0
        %v1350 = vsel %vm683, %v1228, 0
        %v1353 = vsel %vm683, %v1229, 0
        %v1356 = vsel %vm683, %v1230, 0
        %v1359 = vsel %vm683, %v1231, 0
        %v1362 = vsel %vm683, %v1232, 0
        %v1365 = vsel %vm683, %v1233, 0
        %1367 = vmatprep.subr.mxu0 0.0
        %1368 = vmatpush1.xpose.msra.mxu0 %v1365
        %1369 = vmatprep.subr.mxu0 0.0
        %1370 = vmatpush1.xpose.msra.mxu0 %v1362
        %1371 = vmatprep.subr.mxu0 0.0
        %1372 = vmatpush1.xpose.msra.mxu0 %v1359
        %1373 = vmatprep.subr.mxu0 0.0
        %1374 = vmatpush1.xpose.msra.mxu0 %v1356
        %1375 = vmatprep.subr.mxu0 0.0
        %1376 = vmatpush1.xpose.msra.mxu0 %v1353
        %1377 = vmatprep.subr.mxu0 0.0
        %1378 = vmatpush1.xpose.msra.mxu0 %v1350
        %1379 = vmatprep.subr.mxu0 0.0
        %1380 = vmatpush1.xpose.msra.mxu0 %v1347
        %1381 = vmatprep.subr.mxu0 0.0
        %1382 = vmatpush1.xpose.msra.mxu0 %v1344
        %1383 = vmatprep.subr.mxu0 0.0
        %1384 = vmatpush1.xpose.msra.mxu0 %v1341
        %1385 = vmatprep.subr.mxu0 0.0
        %1386 = vmatpush1.xpose.msra.mxu0 %v1338
        %1387 = vmatprep.subr.mxu0 0.0
        %1388 = vmatpush1.xpose.msra.mxu0 %v1335
        %1389 = vmatprep.subr.mxu0 0.0
        %1390 = vmatpush1.xpose.msra.mxu0 %v1332
        %1391 = vmatprep.subr.mxu0 0.0
        %1392 = vmatpush1.xpose.msra.mxu0 %v1329
        %1393 = vmatprep.subr.mxu0 0.0
        %1394 = vmatpush1.xpose.msra.mxu0 %v1326
        %1395 = vmatprep.subr.mxu0 0.0
        %1396 = vmatpush1.xpose.msra.mxu0 %v1323
        %1397 = vmatprep.subr.mxu0 0.0
        %1398 = vmatpush1.xpose.msra.mxu0 %v1320
        %1399 = vmatprep.subr.mxu0 0.0
        %1400 = vmatpush2.xpose.msra.mxu0 0.0
        %1401 = vmatprep.subr.mxu0 0.0
        %1402 = vmatpush2.xpose.msra.mxu0 0.0
        %1403 = vmatprep.subr.mxu0 0.0
        %1404 = vmatpush2.xpose.msra.mxu0 0.0
        %1405 = vmatprep.subr.mxu0 0.0
        %1406 = vmatpush2.xpose.msra.mxu0 0.0
        %1407 = vmatprep.subr.mxu0 0.0
        %1408 = vmatpush2.xpose.msra.mxu0 0.0
        %1409 = vmatprep.subr.mxu0 0.0
        %1410 = vmatpush2.xpose.msra.mxu0 0.0
        %1411 = vmatprep.subr.mxu0 0.0
        %1412 = vmatpush2.xpose.msra.mxu0 0.0
        %1413 = vmatprep.subr.mxu0 0.0
        %1414 = vmatpush2.xpose.msra.mxu0 0.0
        %1415 = vmatprep.subr.mxu0 0.0
        %1416 = vmatpush2.xpose.msra.mxu0 0.0
        %1417 = vmatprep.subr.mxu0 0.0
        %1418 = vmatpush2.xpose.msra.mxu0 0.0
        %1419 = vmatprep.subr.mxu0 0.0
        %1420 = vmatpush2.xpose.msra.mxu0 0.0
        %1421 = vmatprep.subr.mxu0 0.0
        %1422 = vmatpush2.xpose.msra.mxu0 0.0
        %1423 = vmatprep.subr.mxu0 0.0
        %1424 = vmatpush2.xpose.msra.mxu0 0.0
        %1425 = vmatprep.subr.mxu0 0.0
        %1426 = vmatpush2.xpose.msra.mxu0 0.0
        %1427 = vmatprep.subr.mxu0 0.0
        %1428 = vmatpush2.xpose.msra.mxu0 0.0
        %1429 = vmatprep.subr.mxu0 0.0
        %1430 = vmatpush2.xpose.msra.mxu0 0.0
        %1431 = vmatprep.mubr.f32.mxu0 0.0
        %1432 = vmatmul.mubr.f32.gmra.mxu0 %v1305
        %v1433 = vpop.f32.mrf.mxu0
        %v1434 = vadd.f32 0.0, %v1433
        %v1435 = vpop.f32.mrf.mxu0
        %1436 = vmatprep.mubr.f32.mxu0 0.0
        %1437 = vmatmul.mubr.f32.gmra.mxu0 %v1308
        %v1438 = vpop.f32.mrf.mxu0
        %v1439 = vadd.f32 0.0, %v1438
        %v1440 = vpop.f32.mrf.mxu0
        %1441 = vmatprep.mubr.f32.mxu0 0.0
        %1442 = vmatmul.mubr.f32.gmra.mxu0 %v1311
        %v1443 = vpop.f32.mrf.mxu0
        %v1444 = vadd.f32 0.0, %v1443
        %v1445 = vpop.f32.mrf.mxu0
        %1446 = vmatprep.mubr.f32.mxu0 0.0
        %1447 = vmatmul.mubr.f32.gmra.mxu0 %v1314
        %v1448 = vpop.f32.mrf.mxu0
        %v1449 = vadd.f32 0.0, %v1448
        %v1450 = vpop.f32.mrf.mxu0
        %1451 = vmatprep.mubr.f32.mxu0 0.0
        %1452 = vmatmul.mubr.f32.gmra.mxu0 %v1317
        %v1453 = vpop.f32.mrf.mxu0
        %v1454 = vadd.f32 0.0, %v1453
        %v1455 = vpop.f32.mrf.mxu0
        %1456 = vdwg.mxu0
        %v1462 = vlaneseq
        %v1463 = vshrl.u32 %v1462, 7
        %v1464 = vsub.s32 0, %v1463
        %v1465 = vrot.slane %v1110, %v1464
        %v1466 = vlaneseq
        %v1467 = vshrl.u32 %v1466, 7
        %v1468 = vsub.s32 0, %v1467
        %v1469 = vrot.slane %v1111, %v1468
        %v1470 = vlaneseq
        %v1471 = vshrl.u32 %v1470, 7
        %v1472 = vsub.s32 0, %v1471
        %v1473 = vrot.slane %v1112, %v1472
        %v1474 = vlaneseq
        %v1475 = vshrl.u32 %v1474, 7
        %v1476 = vsub.s32 0, %v1475
        %v1477 = vrot.slane %v1113, %v1476
        %v1478 = vlaneseq
        %v1479 = vshrl.u32 %v1478, 7
        %v1480 = vsub.s32 0, %v1479
        %v1481 = vrot.slane %v1114, %v1480
        %1482 = vset.pattern.permute.xlu0 0
        %1483 = vperm.xlu0 %1482, %v1465
        %v1484 = vpop.permute.xlu0 %1483
        %1486 = vset.pattern.permute.xlu0 0
        %1487 = vperm.xlu0 %1486, %v1469
        %v1488 = vpop.permute.xlu0 %1487
        %1490 = vset.pattern.permute.xlu0 0
        %1491 = vperm.xlu0 %1490, %v1473
        %v1492 = vpop.permute.xlu0 %1491
        %1494 = vset.pattern.permute.xlu0 0
        %1495 = vperm.xlu0 %1494, %v1477
        %v1496 = vpop.permute.xlu0 %1495
        %1498 = vset.pattern.permute.xlu0 0
        %1499 = vperm.xlu0 %1498, %v1481
        %v1500 = vpop.permute.xlu0 %1499
        %v1502 = vadd.f32 %v1434, %v1484
        %v1503 = vadd.f32 %v1439, %v1488
        %v1504 = vadd.f32 %v1444, %v1492
        %v1505 = vadd.f32 %v1449, %v1496
        %v1506 = vadd.f32 %v1454, %v1500
        %1507 = vst [vmem:[%s531] sm:$0xff] %v1502
        %1508 = vst [vmem:[%s531 + $0x8] sm:$0xff] %v1503
        %1509 = vst [vmem:[%s531 + $0x10] sm:$0xff] %v1504
        %1510 = vst [vmem:[%s531 + $0x18] sm:$0xff] %v1505
        %1511 = vmatprep.subr.mxu0 0.0
        %1512 = vmatpush1.msra.mxu0 %v1233
        %1513 = vmatprep.subr.mxu0 0.0
        %1514 = vmatpush1.msra.mxu0 %v1232
        %1515 = vmatprep.subr.mxu0 0.0
        %1516 = vmatpush1.msra.mxu0 %v1231
        %1517 = vmatprep.subr.mxu0 0.0
        %1518 = vmatpush1.msra.mxu0 %v1230
        %1519 = vmatprep.subr.mxu0 0.0
        %1520 = vmatpush1.msra.mxu0 %v1229
        %1521 = vmatprep.subr.mxu0 0.0
        %1522 = vmatpush1.msra.mxu0 %v1228
        %1523 = vmatprep.subr.mxu0 0.0
        %1524 = vmatpush1.msra.mxu0 %v1227
        %1525 = vmatprep.subr.mxu0 0.0
        %1526 = vmatpush1.msra.mxu0 %v1226
        %1527 = vmatprep.subr.mxu0 0.0
        %1528 = vmatpush1.msra.mxu0 %v1225
        %1529 = vmatprep.subr.mxu0 0.0
        %1530 = vmatpush1.msra.mxu0 %v1224
        %1531 = vmatprep.subr.mxu0 0.0
        %1532 = vmatpush1.msra.mxu0 %v1223
        %1533 = vmatprep.subr.mxu0 0.0
        %1534 = vmatpush1.msra.mxu0 %v1222
        %1535 = vmatprep.subr.mxu0 0.0
        %1536 = vmatpush1.msra.mxu0 %v1221
        %1537 = vmatprep.subr.mxu0 0.0
        %1538 = vmatpush1.msra.mxu0 %v1220
        %1539 = vmatprep.subr.mxu0 0.0
        %1540 = vmatpush1.msra.mxu0 %v1219
        %1541 = vmatprep.subr.mxu0 0.0
        %1542 = vmatpush1.msra.mxu0 %v1218
        %1543 = vmatprep.subr.mxu0 0.0
        %1544 = vmatpush2.msra.mxu0 0.0
        %1545 = vmatprep.subr.mxu0 0.0
        %1546 = vmatpush2.msra.mxu0 0.0
        %1547 = vmatprep.subr.mxu0 0.0
        %1548 = vmatpush2.msra.mxu0 0.0
        %1549 = vmatprep.subr.mxu0 0.0
        %1550 = vmatpush2.msra.mxu0 0.0
        %1551 = vmatprep.subr.mxu0 0.0
        %1552 = vmatpush2.msra.mxu0 0.0
        %1553 = vmatprep.subr.mxu0 0.0
        %1554 = vmatpush2.msra.mxu0 0.0
        %1555 = vmatprep.subr.mxu0 0.0
        %1556 = vmatpush2.msra.mxu0 0.0
        %1557 = vmatprep.subr.mxu0 0.0
        %1558 = vmatpush2.msra.mxu0 0.0
        %1559 = vmatprep.subr.mxu0 0.0
        %1560 = vmatpush2.msra.mxu0 0.0
        %1561 = vmatprep.subr.mxu0 0.0
        %1562 = vmatpush2.msra.mxu0 0.0
        %1563 = vmatprep.subr.mxu0 0.0
        %1564 = vmatpush2.msra.mxu0 0.0
        %1565 = vmatprep.subr.mxu0 0.0
        %1566 = vmatpush2.msra.mxu0 0.0
        %1567 = vmatprep.subr.mxu0 0.0
        %1568 = vmatpush2.msra.mxu0 0.0
        %1569 = vmatprep.subr.mxu0 0.0
        %1570 = vmatpush2.msra.mxu0 0.0
        %1571 = vmatprep.subr.mxu0 0.0
        %1572 = vmatpush2.msra.mxu0 0.0
        %1573 = vmatprep.subr.mxu0 0.0
        %1574 = vmatpush2.msra.mxu0 0.0
        %1575 = vmatprep.mubr.f32.mxu0 0.0
        %1576 = vmatmul.mubr.f32.gmra.mxu0 %v1506
        %v1577 = vpop.f32.mrf.mxu0
        %v1578 = vadd.f32 0.0, %v1577
        %v1579 = vpop.f32.mrf.mxu0
        %1580 = vdwg.mxu0
        %v1581 = vmul.f32 %v1137, %v1578
        %v1582 = vsel %vm683, %v1581, 0.0
        %v1583 = vrot.slane %v1582, 4
        %v1584 = vadd.f32 %v1582, %v1583
        %v1585 = vrot.slane %v1584, 2
        %v1586 = vadd.f32 %v1584, %v1585
        %v1587 = vrot.slane %v1586, 1
        %v1588 = vadd.f32 %v1586, %v1587
        %v1589 = vmul.f32 %v679, %v1135
        %v1590 = vmul.f32 %v1093, %v1141
        %v1591 = vmul.f32 %v1094, %v1146
        %v1592 = vmul.f32 %v1095, %v1151
        %v1593 = vmul.f32 %v1096, %v1156
        %v1594 = vmul.f32 %v1097, %v1161
        %v1595 = vmul.f32 %v1098, %v1166
        %v1596 = vmul.f32 %v1099, %v1171
        %v1597 = vmul.f32 %v1100, %v1176
        %v1598 = vmul.f32 %v1101, %v1181
        %v1599 = vmul.f32 %v1102, %v1186
        %v1600 = vmul.f32 %v1103, %v1191
        %v1601 = vmul.f32 %v1104, %v1196
        %v1602 = vmul.f32 %v1105, %v1201
        %v1603 = vmul.f32 %v1106, %v1206
        %v1604 = vmul.f32 %v1107, %v1211
        %v1605 = vmul.f32 %v1108, %v1216
        %v1606 = vmul.f32 %v1277, %v1589
        %v1607 = vmul.f32 %v1281, %v1589
        %v1608 = vmul.f32 %v1285, %v1589
        %v1609 = vmul.f32 %v1289, %v1589
        %v1610 = vmul.f32 %v1293, %v1589
        %v1612 = vsel %vm683, %v1606, 0
        %v1615 = vsel %vm683, %v1607, 0
        %v1618 = vsel %vm683, %v1608, 0
        %v1621 = vsel %vm683, %v1609, 0
        %v1624 = vsel %vm683, %v1610, 0
        %v1627 = vsel %vm683, %v1590, 0
        %v1630 = vsel %vm683, %v1591, 0
        %v1633 = vsel %vm683, %v1592, 0
        %v1636 = vsel %vm683, %v1593, 0
        %v1639 = vsel %vm683, %v1594, 0
        %v1642 = vsel %vm683, %v1595, 0
        %v1645 = vsel %vm683, %v1596, 0
        %v1648 = vsel %vm683, %v1597, 0
        %v1651 = vsel %vm683, %v1598, 0
        %v1654 = vsel %vm683, %v1599, 0
        %v1657 = vsel %vm683, %v1600, 0
        %v1660 = vsel %vm683, %v1601, 0
        %v1663 = vsel %vm683, %v1602, 0
        %v1666 = vsel %vm683, %v1603, 0
        %v1669 = vsel %vm683, %v1604, 0
        %v1672 = vsel %vm683, %v1605, 0
        %1674 = vmatprep.subr.mxu0 0.0
        %1675 = vmatpush1.xpose.msra.mxu0 %v1672
        %1676 = vmatprep.subr.mxu0 0.0
        %1677 = vmatpush1.xpose.msra.mxu0 %v1669
        %1678 = vmatprep.subr.mxu0 0.0
        %1679 = vmatpush1.xpose.msra.mxu0 %v1666
        %1680 = vmatprep.subr.mxu0 0.0
        %1681 = vmatpush1.xpose.msra.mxu0 %v1663
        %1682 = vmatprep.subr.mxu0 0.0
        %1683 = vmatpush1.xpose.msra.mxu0 %v1660
        %1684 = vmatprep.subr.mxu0 0.0
        %1685 = vmatpush1.xpose.msra.mxu0 %v1657
        %1686 = vmatprep.subr.mxu0 0.0
        %1687 = vmatpush1.xpose.msra.mxu0 %v1654
        %1688 = vmatprep.subr.mxu0 0.0
        %1689 = vmatpush1.xpose.msra.mxu0 %v1651
        %1690 = vmatprep.subr.mxu0 0.0
        %1691 = vmatpush1.xpose.msra.mxu0 %v1648
        %1692 = vmatprep.subr.mxu0 0.0
        %1693 = vmatpush1.xpose.msra.mxu0 %v1645
        %1694 = vmatprep.subr.mxu0 0.0
        %1695 = vmatpush1.xpose.msra.mxu0 %v1642
        %1696 = vmatprep.subr.mxu0 0.0
        %1697 = vmatpush1.xpose.msra.mxu0 %v1639
        %1698 = vmatprep.subr.mxu0 0.0
        %1699 = vmatpush1.xpose.msra.mxu0 %v1636
        %1700 = vmatprep.subr.mxu0 0.0
        %1701 = vmatpush1.xpose.msra.mxu0 %v1633
        %1702 = vmatprep.subr.mxu0 0.0
        %1703 = vmatpush1.xpose.msra.mxu0 %v1630
        %1704 = vmatprep.subr.mxu0 0.0
        %1705 = vmatpush1.xpose.msra.mxu0 %v1627
        %1706 = vmatprep.subr.mxu0 0.0
        %1707 = vmatpush2.xpose.msra.mxu0 0.0
        %1708 = vmatprep.subr.mxu0 0.0
        %1709 = vmatpush2.xpose.msra.mxu0 0.0
        %1710 = vmatprep.subr.mxu0 0.0
        %1711 = vmatpush2.xpose.msra.mxu0 0.0
        %1712 = vmatprep.subr.mxu0 0.0
        %1713 = vmatpush2.xpose.msra.mxu0 0.0
        %1714 = vmatprep.subr.mxu0 0.0
        %1715 = vmatpush2.xpose.msra.mxu0 0.0
        %1716 = vmatprep.subr.mxu0 0.0
        %1717 = vmatpush2.xpose.msra.mxu0 0.0
        %1718 = vmatprep.subr.mxu0 0.0
        %1719 = vmatpush2.xpose.msra.mxu0 0.0
        %1720 = vmatprep.subr.mxu0 0.0
        %1721 = vmatpush2.xpose.msra.mxu0 0.0
        %1722 = vmatprep.subr.mxu0 0.0
        %1723 = vmatpush2.xpose.msra.mxu0 0.0
        %1724 = vmatprep.subr.mxu0 0.0
        %1725 = vmatpush2.xpose.msra.mxu0 0.0
        %1726 = vmatprep.subr.mxu0 0.0
        %1727 = vmatpush2.xpose.msra.mxu0 0.0
        %1728 = vmatprep.subr.mxu0 0.0
        %1729 = vmatpush2.xpose.msra.mxu0 0.0
        %1730 = vmatprep.subr.mxu0 0.0
        %1731 = vmatpush2.xpose.msra.mxu0 0.0
        %1732 = vmatprep.subr.mxu0 0.0
        %1733 = vmatpush2.xpose.msra.mxu0 0.0
        %1734 = vmatprep.subr.mxu0 0.0
        %1735 = vmatpush2.xpose.msra.mxu0 0.0
        %1736 = vmatprep.subr.mxu0 0.0
        %1737 = vmatpush2.xpose.msra.mxu0 0.0
        %1738 = vmatprep.mubr.f32.mxu0 0.0
        %1739 = vmatmul.mubr.f32.gmra.mxu0 %v1612
        %v1740 = vpop.f32.mrf.mxu0
        %v1741 = vadd.f32 0.0, %v1740
        %v1742 = vpop.f32.mrf.mxu0
        %1743 = vmatprep.mubr.f32.mxu0 0.0
        %1744 = vmatmul.mubr.f32.gmra.mxu0 %v1615
        %v1745 = vpop.f32.mrf.mxu0
        %v1746 = vadd.f32 0.0, %v1745
        %v1747 = vpop.f32.mrf.mxu0
        %1748 = vmatprep.mubr.f32.mxu0 0.0
        %1749 = vmatmul.mubr.f32.gmra.mxu0 %v1618
        %v1750 = vpop.f32.mrf.mxu0
        %v1751 = vadd.f32 0.0, %v1750
        %v1752 = vpop.f32.mrf.mxu0
        %1753 = vmatprep.mubr.f32.mxu0 0.0
        %1754 = vmatmul.mubr.f32.gmra.mxu0 %v1621
        %v1755 = vpop.f32.mrf.mxu0
        %v1756 = vadd.f32 0.0, %v1755
        %v1757 = vpop.f32.mrf.mxu0
        %1758 = vmatprep.mubr.f32.mxu0 0.0
        %1759 = vmatmul.mubr.f32.gmra.mxu0 %v1624
        %v1760 = vpop.f32.mrf.mxu0
        %v1761 = vadd.f32 0.0, %v1760
        %v1762 = vpop.f32.mrf.mxu0
        %1763 = vdwg.mxu0
        %v1764 = vadd.f32 %v1741, %v1484
        %v1765 = vadd.f32 %v1746, %v1488
        %v1766 = vadd.f32 %v1751, %v1492
        %v1767 = vadd.f32 %v1756, %v1496
        %v1768 = vadd.f32 %v1761, %v1500
        %s1769 = scalar_lea.vmem %s531, 32 [#allocation6]
        %1770 = vst [vmem:[%s1769] sm:$0xff] %v1764
        %1771 = vst [vmem:[%s1769 + $0x8] sm:$0xff] %v1765
        %1772 = vst [vmem:[%s1769 + $0x10] sm:$0xff] %v1766
        %1773 = vst [vmem:[%s1769 + $0x18] sm:$0xff] %v1767
        %1774 = vmatprep.subr.mxu0 0.0
        %1775 = vmatpush1.msra.mxu0 %v1605
        %1776 = vmatprep.subr.mxu0 0.0
        %1777 = vmatpush1.msra.mxu0 %v1604
        %1778 = vmatprep.subr.mxu0 0.0
        %1779 = vmatpush1.msra.mxu0 %v1603
        %1780 = vmatprep.subr.mxu0 0.0
        %1781 = vmatpush1.msra.mxu0 %v1602
        %1782 = vmatprep.subr.mxu0 0.0
        %1783 = vmatpush1.msra.mxu0 %v1601
        %1784 = vmatprep.subr.mxu0 0.0
        %1785 = vmatpush1.msra.mxu0 %v1600
        %1786 = vmatprep.subr.mxu0 0.0
        %1787 = vmatpush1.msra.mxu0 %v1599
        %1788 = vmatprep.subr.mxu0 0.0
        %1789 = vmatpush1.msra.mxu0 %v1598
        %1790 = vmatprep.subr.mxu0 0.0
        %1791 = vmatpush1.msra.mxu0 %v1597
        %1792 = vmatprep.subr.mxu0 0.0
        %1793 = vmatpush1.msra.mxu0 %v1596
        %1794 = vmatprep.subr.mxu0 0.0
        %1795 = vmatpush1.msra.mxu0 %v1595
        %1796 = vmatprep.subr.mxu0 0.0
        %1797 = vmatpush1.msra.mxu0 %v1594
        %1798 = vmatprep.subr.mxu0 0.0
        %1799 = vmatpush1.msra.mxu0 %v1593
        %1800 = vmatprep.subr.mxu0 0.0
        %1801 = vmatpush1.msra.mxu0 %v1592
        %1802 = vmatprep.subr.mxu0 0.0
        %1803 = vmatpush1.msra.mxu0 %v1591
        %1804 = vmatprep.subr.mxu0 0.0
        %1805 = vmatpush1.msra.mxu0 %v1590
        %1806 = vmatprep.subr.mxu0 0.0
        %1807 = vmatpush2.msra.mxu0 0.0
        %1808 = vmatprep.subr.mxu0 0.0
        %1809 = vmatpush2.msra.mxu0 0.0
        %1810 = vmatprep.subr.mxu0 0.0
        %1811 = vmatpush2.msra.mxu0 0.0
        %1812 = vmatprep.subr.mxu0 0.0
        %1813 = vmatpush2.msra.mxu0 0.0
        %1814 = vmatprep.subr.mxu0 0.0
        %1815 = vmatpush2.msra.mxu0 0.0
        %1816 = vmatprep.subr.mxu0 0.0
        %1817 = vmatpush2.msra.mxu0 0.0
        %1818 = vmatprep.subr.mxu0 0.0
        %1819 = vmatpush2.msra.mxu0 0.0
        %1820 = vmatprep.subr.mxu0 0.0
        %1821 = vmatpush2.msra.mxu0 0.0
        %1822 = vmatprep.subr.mxu0 0.0
        %1823 = vmatpush2.msra.mxu0 0.0
        %1824 = vmatprep.subr.mxu0 0.0
        %1825 = vmatpush2.msra.mxu0 0.0
        %1826 = vmatprep.subr.mxu0 0.0
        %1827 = vmatpush2.msra.mxu0 0.0
        %1828 = vmatprep.subr.mxu0 0.0
        %1829 = vmatpush2.msra.mxu0 0.0
        %1830 = vmatprep.subr.mxu0 0.0
        %1831 = vmatpush2.msra.mxu0 0.0
        %1832 = vmatprep.subr.mxu0 0.0
        %1833 = vmatpush2.msra.mxu0 0.0
        %1834 = vmatprep.subr.mxu0 0.0
        %1835 = vmatpush2.msra.mxu0 0.0
        %1836 = vmatprep.subr.mxu0 0.0
        %1837 = vmatpush2.msra.mxu0 0.0
        %1838 = vmatprep.mubr.f32.mxu0 0.0
        %1839 = vmatmul.mubr.f32.gmra.mxu0 %v1768
        %v1840 = vpop.f32.mrf.mxu0
        %v1841 = vadd.f32 0.0, %v1840
        %v1842 = vpop.f32.mrf.mxu0
        %1843 = vdwg.mxu0
        %v1844 = vmul.f32 %v1589, %v1841
        %v1845 = vsel %vm683, %v1844, 0.0
        %v1846 = vrot.slane %v1845, 4
        %v1847 = vadd.f32 %v1845, %v1846
        %v1848 = vrot.slane %v1847, 2
        %v1849 = vadd.f32 %v1847, %v1848
        %v1850 = vrot.slane %v1849, 1
        %v1851 = vadd.f32 %v1849, %v1850
        %vm1852 = vcmask 1040384
        %v1853 = vsel %vm1852, %v1588, %v1851
        %v1854 = vld [vmem:[%s11] sm:$0xff]
        %v1855 = vld [vmem:[%s11 + $0x8] sm:$0xff]
        %v1856 = vld [vmem:[%s11 + $0x10] sm:$0xff]
        %v1858 = vsel %vm683, %v1853, 0
        %1860 = vmatprep.subr.mxu0 0.0
        %1861 = vmatpush1.msra.mxu0 0.0
        %1862 = vmatprep.subr.mxu0 0.0
        %1863 = vmatpush1.msra.mxu0 0.0
        %1864 = vmatprep.subr.mxu0 0.0
        %1865 = vmatpush1.msra.mxu0 0.0
        %1866 = vmatprep.subr.mxu0 0.0
        %1867 = vmatpush1.msra.mxu0 0.0
        %1868 = vmatprep.subr.mxu0 0.0
        %1869 = vmatpush1.msra.mxu0 0.0
        %1870 = vmatprep.subr.mxu0 0.0
        %1871 = vmatpush1.msra.mxu0 0.0
        %1872 = vmatprep.subr.mxu0 0.0
        %1873 = vmatpush1.msra.mxu0 0.0
        %1874 = vmatprep.subr.mxu0 0.0
        %1875 = vmatpush1.msra.mxu0 0.0
        %1876 = vmatprep.subr.mxu0 0.0
        %1877 = vmatpush1.msra.mxu0 0.0
        %1878 = vmatprep.subr.mxu0 0.0
        %1879 = vmatpush1.msra.mxu0 0.0
        %1880 = vmatprep.subr.mxu0 0.0
        %1881 = vmatpush1.msra.mxu0 0.0
        %1882 = vmatprep.subr.mxu0 0.0
        %1883 = vmatpush1.msra.mxu0 0.0
        %1884 = vmatprep.subr.mxu0 0.0
        %1885 = vmatpush1.msra.mxu0 0.0
        %1886 = vmatprep.subr.mxu0 0.0
        %1887 = vmatpush1.msra.mxu0 %v1856
        %1888 = vmatprep.subr.mxu0 0.0
        %1889 = vmatpush1.msra.mxu0 %v1855
        %1890 = vmatprep.subr.mxu0 0.0
        %1891 = vmatpush1.msra.mxu0 %v1854
        %1892 = vmatprep.subr.mxu0 0.0
        %1893 = vmatpush2.msra.mxu0 0.0
        %1894 = vmatprep.subr.mxu0 0.0
        %1895 = vmatpush2.msra.mxu0 0.0
        %1896 = vmatprep.subr.mxu0 0.0
        %1897 = vmatpush2.msra.mxu0 0.0
        %1898 = vmatprep.subr.mxu0 0.0
        %1899 = vmatpush2.msra.mxu0 0.0
        %1900 = vmatprep.subr.mxu0 0.0
        %1901 = vmatpush2.msra.mxu0 0.0
        %1902 = vmatprep.subr.mxu0 0.0
        %1903 = vmatpush2.msra.mxu0 0.0
        %1904 = vmatprep.subr.mxu0 0.0
        %1905 = vmatpush2.msra.mxu0 0.0
        %1906 = vmatprep.subr.mxu0 0.0
        %1907 = vmatpush2.msra.mxu0 0.0
        %1908 = vmatprep.subr.mxu0 0.0
        %1909 = vmatpush2.msra.mxu0 0.0
        %1910 = vmatprep.subr.mxu0 0.0
        %1911 = vmatpush2.msra.mxu0 0.0
        %1912 = vmatprep.subr.mxu0 0.0
        %1913 = vmatpush2.msra.mxu0 0.0
        %1914 = vmatprep.subr.mxu0 0.0
        %1915 = vmatpush2.msra.mxu0 0.0
        %1916 = vmatprep.subr.mxu0 0.0
        %1917 = vmatpush2.msra.mxu0 0.0
        %1918 = vmatprep.subr.mxu0 0.0
        %1919 = vmatpush2.msra.mxu0 0.0
        %1920 = vmatprep.subr.mxu0 0.0
        %1921 = vmatpush2.msra.mxu0 0.0
        %1922 = vmatprep.subr.mxu0 0.0
        %1923 = vmatpush2.msra.mxu0 0.0
        %1924 = vmatprep.mubr.f32.mxu0 0.0
        %1925 = vmatmul.mubr.f32.gmra.mxu0 %v1858
        %v1926 = vpop.f32.mrf.mxu0
        %v1927 = vadd.f32 0.0, %v1926
        %v1928 = vpop.f32.mrf.mxu0
        %1929 = vdwg.mxu0
        %v1930 = vld [vmem:[%s12] sm:$0x1]
        %v1932 = vlaneseq
        %v1933 = vshrl.u32 %v1932, 7
        %v1934 = vsub.s32 0, %v1933
        %v1935 = vrot.slane %v1930, %v1934
        %v1937 = vmul.f32 %v1927, %v1935
        %v1938 = vld [vmem:[%s13] sm:$0x1]
        %v1940 = vlaneseq
        %v1941 = vshrl.u32 %v1940, 7
        %v1942 = vsub.s32 0, %v1941
        %v1943 = vrot.slane %v1938, %v1942
        %v1945 = vadd.f32 %v1937, %v1943
        %vm1946 = vcmask 58368
        %1947 = vst.msk [vmem:[%s524] sm:$0x3] %vm1946, %v1945
        %s1948 = sand.u32 %s346, 1
        %s1949 = scalar_lea.sflag [#allocation3], %s1948
        %s1950 = sand.u32 %s346, 1
        %s1951 = smul.addr %s1950, 2
        %s1952 = scalar_lea.vmem [#allocation5], %s1951
        %s1953 = sand.u32 %s372, 1
        %s1954 = scalar_lea.sflag [#allocation7], %s1953
        %s1955 = sand.u32 %s372, 1
        %s1956 = smul.addr %s1955, 64
        %s1957 = scalar_lea.vmem [#allocation6], %s1956
        // Predicated region
        $region81: #{tpu_custom_call.1} parent=75 // pred_check
          %p1958 = pneg %p356
        $region82: #{tpu_custom_call.1} parent=75 // pred_check_branch
          %1960 = sbr.rel (%p1958) target = $region84
        $region83: #{tpu_custom_call.1} parent=75 // pred_region
          %s1962 = ssub.s32 32, 32
          %1963 = vsyncadd %s1949, %s1962
          %s1964 = smul.addr %s34, 32
          %s1965 = scalar_lea.hbm %s14, %s1964
          %s1967 = sshll.u32 %s1952, 4
          %s1968 = int_to_ptr.vmem [resolvable:$true] %s1967
          %1970 = dma.vmem_to_hbm [thread:$0]  %s1968, 32, %s1965, %s1949
        $region84: #{tpu_custom_call.1} parent=75 // pred_fallthru
          _
        // Predicated region
        $region85: #{tpu_custom_call.1} parent=75 // pred_check
          %p1971 = pneg %p382
        $region86: #{tpu_custom_call.1} parent=75 // pred_check_branch
          %1973 = sbr.rel (%p1971) target = $region88
        $region87: #{tpu_custom_call.1} parent=75 // pred_region
          %s1974 = smul.u32 2, %s34
          %s1976 = ssub.s32 1024, 1024
          %1977 = vsyncadd %s1954, %s1976
          %s1978 = smul.addr %s1974, 4
          %s1979 = smul.addr %s1978, 128
          %s1980 = scalar_lea.hbm %s15, %s1979
          %s1981 = sshll.u32 %s1957, 4
          %s1982 = int_to_ptr.vmem [resolvable:$true] %s1981
          %1987 = dma.vmem_to_hbm [thread:$0]  %s1982, 1024, %s1980, %s1954, 128, 128, 8
        $region88: #{tpu_custom_call.1} parent=75 // pred_fallthru
          _
      $region76: #{tpu_custom_call.1} parent=5 // pred_fallthru
        _
      %p1988 = scmp.le.s32.totalorder 2, %s29
      // Predicated region
      $region89: #{tpu_custom_call.1} parent=5 // pred_check
        %p1989 = pneg %p1988
      $region90: #{tpu_custom_call.1} parent=5 // pred_check_branch
        %1991 = sbr.rel (%p1989) target = $region92
      $region91: #{tpu_custom_call.1} parent=5 // pred_region
        %s1992 = ssub.s32 %s29, 2
        // Predicated region
        $region93: #{tpu_custom_call.1} parent=91 // pred_check
          %p1993 = pneg %p362
        $region94: #{tpu_custom_call.1} parent=91 // pred_check_branch
          %1995 = sbr.rel (%p1993) target = $region96
        $region95: #{tpu_custom_call.1} parent=91 // pred_region
          %s1996 = sand.u32 %s347, 1
          %s1997 = scalar_lea.sflag [#allocation3], %s1996
          %s1998 = sand.u32 %s347, 1
          %s1999 = smul.addr %s1998, 2
          %s2000 = scalar_lea.vmem [#allocation5], %s1999
          %2001 = dma.done %s1997, 32
        $region96: #{tpu_custom_call.1} parent=91 // pred_fallthru
          _
        // Predicated region
        $region97: #{tpu_custom_call.1} parent=91 // pred_check
          %p2002 = pneg %p388
        $region98: #{tpu_custom_call.1} parent=91 // pred_check_branch
          %2004 = sbr.rel (%p2002) target = $region100
        $region99: #{tpu_custom_call.1} parent=91 // pred_region
          %s2005 = sand.u32 %s373, 1
          %s2006 = scalar_lea.sflag [#allocation7], %s2005
          %s2007 = sand.u32 %s373, 1
          %s2008 = smul.addr %s2007, 64
          %s2009 = scalar_lea.vmem [#allocation6], %s2008
          %2010 = dma.done %s2006, 1024
        $region100: #{tpu_custom_call.1} parent=91 // pred_fallthru
          _
      $region92: #{tpu_custom_call.1} parent=5 // pred_fallthru
        _
    $region6: #{tpu_custom_call.1} parent=1 // loop_footer
      %s33 = sadd.s32 1, %s29
    $region7: #{tpu_custom_call.1} parent=1 // loop_footer_branch
      %28 = sbr.rel target = $region3
    $region8: #{tpu_custom_call.1} parent=1 // loop_exit
      _
    %2011 = vsyncpa [#allocation3], 1
    %s2012 = scalar_lea.sflag [#allocation3], 1
    %2013 = vsyncpa %s2012, 1
    %2014 = vsyncpa [#allocation7], 1
    %s2015 = scalar_lea.sflag [#allocation7], 1
    %2016 = vsyncpa %s2015, 1
    %2017 = vsyncpa [#allocation4], 1
    %s2018 = scalar_lea.sflag [#allocation4], 1
    %2019 = vsyncpa %s2018, 1

// kernel: tpu_custom_call.1
$region0: #{tpu_custom_call.1}
  #allocation0 [shape = 'u32[]', space=smem, size = 0x4, offset = 0x4, fixed_abs, tag = 'smem constant byte address 0x4 - core index']
  #allocation1 [shape = 'u32[144,128]{1,0:T(1,128)}', space=vmem, size = 0x12000, scoped, tag = 'internal scratch']
  %s0 = inlined_call_operand.vmem [shape: f32[2], index: 0, kind: input, shape index: {}]
  %s1 = inlined_call_operand.vmem [shape: f32[4,8,16], index: 1, kind: input, shape index: {}]
  %s2 = inlined_call_operand.vmem [shape: f32[4,128,24], index: 2, kind: input, shape index: {}]
  %s3 = inlined_call_operand.vmem [shape: f32[16,24], index: 3, kind: input, shape index: {}]
  %s4 = inlined_call_operand.vmem [shape: f32[1,24], index: 4, kind: input, shape index: {}]
  %s5 = inlined_call_operand.vmem [shape: f32[24,24], index: 5, kind: input, shape index: {}]
  %s6 = inlined_call_operand.vmem [shape: f32[1,24], index: 6, kind: input, shape index: {}]
  %s7 = inlined_call_operand.vmem [shape: f32[5,24], index: 7, kind: input, shape index: {}]
  %s8 = inlined_call_operand.vmem [shape: f32[5,1,1], index: 8, kind: input, shape index: {}]
  %s9 = inlined_call_operand.vmem [shape: f32[8,1], index: 9, kind: input, shape index: {}]
  %s10 = inlined_call_operand.vmem [shape: f32[128,1], index: 10, kind: input, shape index: {}]
  %s11 = inlined_call_operand.vmem [shape: f32[24,8], index: 11, kind: input, shape index: {}]
  %s12 = inlined_call_operand.vmem [shape: f32[1,8], index: 12, kind: input, shape index: {}]
  %s13 = inlined_call_operand.vmem [shape: f32[1,8], index: 13, kind: input, shape index: {}]
  %s14 = inlined_call_operand.hbm [shape: f32[2,2,8], index: 14, kind: output, shape index: {0}]
  %s15 = inlined_call_operand.hbm [shape: f32[4,4,8,128], index: 15, kind: output, shape index: {1}]
  %16 = xla_tuple %s14, %s15
  %s17 = sld [smem:[#allocation0]]
  $region101: #{tpu_custom_call.1} parent=0
    _
  %s19 = ssub.s32 1, %s17
  %s20 = scalar_select 0, %s19, %s17
  $region1: #{tpu_custom_call.1} parent=0
    #allocation2 [shape = 'u8[512]{0}', space=smem, size = 0x200, scoped, tag = 'input window, operand 0, single buffered']
    #allocation3 [shape = 's32[2]{0}', space=sflag, size = 0x8, scoped, tag = 'scoped memory for tpu_custom_call.1']
    #allocation4 [shape = 's32[2]{0}', space=sflag, size = 0x8, scoped, tag = 'scoped memory for tpu_custom_call.1']
    #allocation5 [shape = 'u8[2048]{0}', space=vmem, size = 0x800, scoped, tag = 'output window, operand 0']
    #allocation6 [shape = 'u8[65536]{0}', space=vmem, size = 0x10000, scoped, tag = 'output window, operand 1']
    #allocation7 [shape = 's32[2]{0}', space=sflag, size = 0x8, scoped, tag = 'scoped memory for tpu_custom_call.1']
    %21 = vsyncpa [#allocation4], 0
    %22 = vsyncpa [#allocation3], 0
    %s23 = scalar_lea.sflag [#allocation3], 1
    %24 = vsyncpa %s23, 0
    %25 = vsyncpa [#allocation7], 0
    %s26 = scalar_lea.sflag [#allocation7], 1
    %27 = vsyncpa %s26, 0
    loop: start=0, step=1, limit=4
    $region2: #{tpu_custom_call.1} parent=1 // loop_pre_header
      _
    $region3: #{tpu_custom_call.1} parent=1 // loop_header
      %s29 = sphi 0, %s33
      %p30 = scmp.ge.s32.totalorder %s29, 4
      %s37 = sphi 0, %s37
      %s39 = sphi 0, %s37
      %s40 = sphi 0, %s39
      %s54 = sphi 0, %s40
      %s60 = sphi 0, %s62
      %s63 = sphi 0, %s60
      %s64 = sphi 0, %s63
      %s80 = sphi 0, %s64
      %s86 = sphi 0, %s88
      %s89 = sphi 0, %s86
      %s90 = sphi 0, %s89
      %s106 = sphi 0, %s90
      %s110 = sphi 0, %s110
      %s112 = sphi 0, %s110
      %s113 = sphi 0, %s112
      %s127 = sphi 0, %s113
      %s131 = sphi 0, %s131
      %s133 = sphi 0, %s131
      %s134 = sphi 0, %s133
      %s148 = sphi 0, %s134
      %s152 = sphi 0, %s152
      %s154 = sphi 0, %s152
      %s155 = sphi 0, %s154
      %s169 = sphi 0, %s155
      %s173 = sphi 0, %s173
      %s175 = sphi 0, %s173
      %s176 = sphi 0, %s175
      %s190 = sphi 0, %s176
      %s194 = sphi 0, %s194
      %s196 = sphi 0, %s194
      %s197 = sphi 0, %s196
      %s211 = sphi 0, %s197
      %s215 = sphi 0, %s215
      %s217 = sphi 0, %s215
      %s218 = sphi 0, %s217
      %s232 = sphi 0, %s218
      %s236 = sphi 0, %s236
      %s238 = sphi 0, %s236
      %s239 = sphi 0, %s238
      %s253 = sphi 0, %s239
      %s257 = sphi 0, %s257
      %s259 = sphi 0, %s257
      %s260 = sphi 0, %s259
      %s274 = sphi 0, %s260
      %s278 = sphi 0, %s278
      %s280 = sphi 0, %s278
      %s281 = sphi 0, %s280
      %s295 = sphi 0, %s281
      %s299 = sphi 0, %s299
      %s301 = sphi 0, %s299
      %s302 = sphi 0, %s301
      %s316 = sphi 0, %s302
      %s320 = sphi 0, %s320
      %s322 = sphi 0, %s320
      %s323 = sphi 0, %s322
      %s337 = sphi 0, %s323
      %s343 = sphi 0, %s345
      %s346 = sphi 0, %s343
      %s347 = sphi 0, %s346
      %s363 = sphi 0, %s347
      %s369 = sphi 0, %s371
      %s372 = sphi 0, %s369
      %s373 = sphi 0, %s372
      %s389 = sphi 0, %s373
    $region4: #{tpu_custom_call.1} parent=1 // loop_header_branch
      %32 = sbr.rel (%p30) target = $region8
    $region5: #{tpu_custom_call.1} parent=1 // loop_body
      %s34 = ssub.s32 %s29, 1
      %s35 = ssub.s32 %s29, 2
      %s36 = sadd.s32 %s29, 1
      %s38 = sadd.s32 %s37, 1
      %p41 = scmp.eq.s32.totalorder %s29, 1
      %p42 = scmp.ne.s32.totalorder %s37, %s39
      %p43 = scmp.eq.s32.totalorder %s29, 0
      %p44 = por %p42, %p43
      %p45 = scmp.ne.s32.totalorder %s37, %s39
      %p46 = scmp.eq.s32.totalorder %s34, 1
      %p47 = por %p45, %p46
      %p48 = scmp.ne.s32.totalorder %s39, %s40
      %p49 = scmp.eq.s32.totalorder %s34, 0
      %p50 = por %p48, %p49
      %p51 = scmp.ne.s32.totalorder %s39, %s40
      %p52 = scmp.eq.s32.totalorder %s35, 1
      %p53 = por %p51, %p52
      %p55 = scmp.ne.s32.totalorder %s40, %s54
      %p56 = scmp.eq.s32.totalorder %s35, 0
      %p57 = por %p55, %p56
      %s58 = ssub.s32 %s29, %s36
      %p59 = scmp.eq.s32.totalorder %s58, 0
      %s61 = sadd.s32 %s60, 1
      %s62 = scalar_select %p59, %s60, %s61
      %p65 = pneg %p59
      %p66 = scmp.eq.s32.totalorder %s29, 1
      %p67 = por %p65, %p66
      %p68 = scmp.ne.s32.totalorder %s60, %s63
      %p69 = scmp.eq.s32.totalorder %s29, 0
      %p70 = por %p68, %p69
      %p71 = scmp.ne.s32.totalorder %s60, %s63
      %p72 = scmp.eq.s32.totalorder %s34, 1
      %p73 = por %p71, %p72
      %p74 = scmp.ne.s32.totalorder %s63, %s64
      %p75 = scmp.eq.s32.totalorder %s34, 0
      %p76 = por %p74, %p75
      %p77 = scmp.ne.s32.totalorder %s63, %s64
      %p78 = scmp.eq.s32.totalorder %s35, 1
      %p79 = por %p77, %p78
      %p81 = scmp.ne.s32.totalorder %s64, %s80
      %p82 = scmp.eq.s32.totalorder %s35, 0
      %p83 = por %p81, %p82
      %s84 = ssub.s32 %s29, %s36
      %p85 = scmp.eq.s32.totalorder %s84, 0
      %s87 = sadd.s32 %s86, 1
      %s88 = scalar_select %p85, %s86, %s87
      %p91 = pneg %p85
      %p92 = scmp.eq.s32.totalorder %s29, 1
      %p93 = por %p91, %p92
      %p94 = scmp.ne.s32.totalorder %s86, %s89
      %p95 = scmp.eq.s32.totalorder %s29, 0
      %p96 = por %p94, %p95
      %p97 = scmp.ne.s32.totalorder %s86, %s89
      %p98 = scmp.eq.s32.totalorder %s34, 1
      %p99 = por %p97, %p98
      %p100 = scmp.ne.s32.totalorder %s89, %s90
      %p101 = scmp.eq.s32.totalorder %s34, 0
      %p102 = por %p100, %p101
      %p103 = scmp.ne.s32.totalorder %s89, %s90
      %p104 = scmp.eq.s32.totalorder %s35, 1
      %p105 = por %p103, %p104
      %p107 = scmp.ne.s32.totalorder %s90, %s106
      %p108 = scmp.eq.s32.totalorder %s35, 0
      %p109 = por %p107, %p108
      %s111 = sadd.s32 %s110, 1
      %p114 = scmp.eq.s32.totalorder %s29, 1
      %p115 = scmp.ne.s32.totalorder %s110, %s112
      %p116 = scmp.eq.s32.totalorder %s29, 0
      %p117 = por %p115, %p116
      %p118 = scmp.ne.s32.totalorder %s110, %s112
      %p119 = scmp.eq.s32.totalorder %s34, 1
      %p120 = por %p118, %p119
      %p121 = scmp.ne.s32.totalorder %s112, %s113
      %p122 = scmp.eq.s32.totalorder %s34, 0
      %p123 = por %p121, %p122
      %p124 = scmp.ne.s32.totalorder %s112, %s113
      %p125 = scmp.eq.s32.totalorder %s35, 1
      %p126 = por %p124, %p125
      %p128 = scmp.ne.s32.totalorder %s113, %s127
      %p129 = scmp.eq.s32.totalorder %s35, 0
      %p130 = por %p128, %p129
      %s132 = sadd.s32 %s131, 1
      %p135 = scmp.eq.s32.totalorder %s29, 1
      %p136 = scmp.ne.s32.totalorder %s131, %s133
      %p137 = scmp.eq.s32.totalorder %s29, 0
      %p138 = por %p136, %p137
      %p139 = scmp.ne.s32.totalorder %s131, %s133
      %p140 = scmp.eq.s32.totalorder %s34, 1
      %p141 = por %p139, %p140
      %p142 = scmp.ne.s32.totalorder %s133, %s134
      %p143 = scmp.eq.s32.totalorder %s34, 0
      %p144 = por %p142, %p143
      %p145 = scmp.ne.s32.totalorder %s133, %s134
      %p146 = scmp.eq.s32.totalorder %s35, 1
      %p147 = por %p145, %p146
      %p149 = scmp.ne.s32.totalorder %s134, %s148
      %p150 = scmp.eq.s32.totalorder %s35, 0
      %p151 = por %p149, %p150
      %s153 = sadd.s32 %s152, 1
      %p156 = scmp.eq.s32.totalorder %s29, 1
      %p157 = scmp.ne.s32.totalorder %s152, %s154
      %p158 = scmp.eq.s32.totalorder %s29, 0
      %p159 = por %p157, %p158
      %p160 = scmp.ne.s32.totalorder %s152, %s154
      %p161 = scmp.eq.s32.totalorder %s34, 1
      %p162 = por %p160, %p161
      %p163 = scmp.ne.s32.totalorder %s154, %s155
      %p164 = scmp.eq.s32.totalorder %s34, 0
      %p165 = por %p163, %p164
      %p166 = scmp.ne.s32.totalorder %s154, %s155
      %p167 = scmp.eq.s32.totalorder %s35, 1
      %p168 = por %p166, %p167
      %p170 = scmp.ne.s32.totalorder %s155, %s169
      %p171 = scmp.eq.s32.totalorder %s35, 0
      %p172 = por %p170, %p171
      %s174 = sadd.s32 %s173, 1
      %p177 = scmp.eq.s32.totalorder %s29, 1
      %p178 = scmp.ne.s32.totalorder %s173, %s175
      %p179 = scmp.eq.s32.totalorder %s29, 0
      %p180 = por %p178, %p179
      %p181 = scmp.ne.s32.totalorder %s173, %s175
      %p182 = scmp.eq.s32.totalorder %s34, 1
      %p183 = por %p181, %p182
      %p184 = scmp.ne.s32.totalorder %s175, %s176
      %p185 = scmp.eq.s32.totalorder %s34, 0
      %p186 = por %p184, %p185
      %p187 = scmp.ne.s32.totalorder %s175, %s176
      %p188 = scmp.eq.s32.totalorder %s35, 1
      %p189 = por %p187, %p188
      %p191 = scmp.ne.s32.totalorder %s176, %s190
      %p192 = scmp.eq.s32.totalorder %s35, 0
      %p193 = por %p191, %p192
      %s195 = sadd.s32 %s194, 1
      %p198 = scmp.eq.s32.totalorder %s29, 1
      %p199 = scmp.ne.s32.totalorder %s194, %s196
      %p200 = scmp.eq.s32.totalorder %s29, 0
      %p201 = por %p199, %p200
      %p202 = scmp.ne.s32.totalorder %s194, %s196
      %p203 = scmp.eq.s32.totalorder %s34, 1
      %p204 = por %p202, %p203
      %p205 = scmp.ne.s32.totalorder %s196, %s197
      %p206 = scmp.eq.s32.totalorder %s34, 0
      %p207 = por %p205, %p206
      %p208 = scmp.ne.s32.totalorder %s196, %s197
      %p209 = scmp.eq.s32.totalorder %s35, 1
      %p210 = por %p208, %p209
      %p212 = scmp.ne.s32.totalorder %s197, %s211
      %p213 = scmp.eq.s32.totalorder %s35, 0
      %p214 = por %p212, %p213
      %s216 = sadd.s32 %s215, 1
      %p219 = scmp.eq.s32.totalorder %s29, 1
      %p220 = scmp.ne.s32.totalorder %s215, %s217
      %p221 = scmp.eq.s32.totalorder %s29, 0
      %p222 = por %p220, %p221
      %p223 = scmp.ne.s32.totalorder %s215, %s217
      %p224 = scmp.eq.s32.totalorder %s34, 1
      %p225 = por %p223, %p224
      %p226 = scmp.ne.s32.totalorder %s217, %s218
      %p227 = scmp.eq.s32.totalorder %s34, 0
      %p228 = por %p226, %p227
      %p229 = scmp.ne.s32.totalorder %s217, %s218
      %p230 = scmp.eq.s32.totalorder %s35, 1
      %p231 = por %p229, %p230
      %p233 = scmp.ne.s32.totalorder %s218, %s232
      %p234 = scmp.eq.s32.totalorder %s35, 0
      %p235 = por %p233, %p234
      %s237 = sadd.s32 %s236, 1
      %p240 = scmp.eq.s32.totalorder %s29, 1
      %p241 = scmp.ne.s32.totalorder %s236, %s238
      %p242 = scmp.eq.s32.totalorder %s29, 0
      %p243 = por %p241, %p242
      %p244 = scmp.ne.s32.totalorder %s236, %s238
      %p245 = scmp.eq.s32.totalorder %s34, 1
      %p246 = por %p244, %p245
      %p247 = scmp.ne.s32.totalorder %s238, %s239
      %p248 = scmp.eq.s32.totalorder %s34, 0
      %p249 = por %p247, %p248
      %p250 = scmp.ne.s32.totalorder %s238, %s239
      %p251 = scmp.eq.s32.totalorder %s35, 1
      %p252 = por %p250, %p251
      %p254 = scmp.ne.s32.totalorder %s239, %s253
      %p255 = scmp.eq.s32.totalorder %s35, 0
      %p256 = por %p254, %p255
      %s258 = sadd.s32 %s257, 1
      %p261 = scmp.eq.s32.totalorder %s29, 1
      %p262 = scmp.ne.s32.totalorder %s257, %s259
      %p263 = scmp.eq.s32.totalorder %s29, 0
      %p264 = por %p262, %p263
      %p265 = scmp.ne.s32.totalorder %s257, %s259
      %p266 = scmp.eq.s32.totalorder %s34, 1
      %p267 = por %p265, %p266
      %p268 = scmp.ne.s32.totalorder %s259, %s260
      %p269 = scmp.eq.s32.totalorder %s34, 0
      %p270 = por %p268, %p269
      %p271 = scmp.ne.s32.totalorder %s259, %s260
      %p272 = scmp.eq.s32.totalorder %s35, 1
      %p273 = por %p271, %p272
      %p275 = scmp.ne.s32.totalorder %s260, %s274
      %p276 = scmp.eq.s32.totalorder %s35, 0
      %p277 = por %p275, %p276
      %s279 = sadd.s32 %s278, 1
      %p282 = scmp.eq.s32.totalorder %s29, 1
      %p283 = scmp.ne.s32.totalorder %s278, %s280
      %p284 = scmp.eq.s32.totalorder %s29, 0
      %p285 = por %p283, %p284
      %p286 = scmp.ne.s32.totalorder %s278, %s280
      %p287 = scmp.eq.s32.totalorder %s34, 1
      %p288 = por %p286, %p287
      %p289 = scmp.ne.s32.totalorder %s280, %s281
      %p290 = scmp.eq.s32.totalorder %s34, 0
      %p291 = por %p289, %p290
      %p292 = scmp.ne.s32.totalorder %s280, %s281
      %p293 = scmp.eq.s32.totalorder %s35, 1
      %p294 = por %p292, %p293
      %p296 = scmp.ne.s32.totalorder %s281, %s295
      %p297 = scmp.eq.s32.totalorder %s35, 0
      %p298 = por %p296, %p297
      %s300 = sadd.s32 %s299, 1
      %p303 = scmp.eq.s32.totalorder %s29, 1
      %p304 = scmp.ne.s32.totalorder %s299, %s301
      %p305 = scmp.eq.s32.totalorder %s29, 0
      %p306 = por %p304, %p305
      %p307 = scmp.ne.s32.totalorder %s299, %s301
      %p308 = scmp.eq.s32.totalorder %s34, 1
      %p309 = por %p307, %p308
      %p310 = scmp.ne.s32.totalorder %s301, %s302
      %p311 = scmp.eq.s32.totalorder %s34, 0
      %p312 = por %p310, %p311
      %p313 = scmp.ne.s32.totalorder %s301, %s302
      %p314 = scmp.eq.s32.totalorder %s35, 1
      %p315 = por %p313, %p314
      %p317 = scmp.ne.s32.totalorder %s302, %s316
      %p318 = scmp.eq.s32.totalorder %s35, 0
      %p319 = por %p317, %p318
      %s321 = sadd.s32 %s320, 1
      %p324 = scmp.eq.s32.totalorder %s29, 1
      %p325 = scmp.ne.s32.totalorder %s320, %s322
      %p326 = scmp.eq.s32.totalorder %s29, 0
      %p327 = por %p325, %p326
      %p328 = scmp.ne.s32.totalorder %s320, %s322
      %p329 = scmp.eq.s32.totalorder %s34, 1
      %p330 = por %p328, %p329
      %p331 = scmp.ne.s32.totalorder %s322, %s323
      %p332 = scmp.eq.s32.totalorder %s34, 0
      %p333 = por %p331, %p332
      %p334 = scmp.ne.s32.totalorder %s322, %s323
      %p335 = scmp.eq.s32.totalorder %s35, 1
      %p336 = por %p334, %p335
      %p338 = scmp.ne.s32.totalorder %s323, %s337
      %p339 = scmp.eq.s32.totalorder %s35, 0
      %p340 = por %p338, %p339
      %s341 = ssub.s32 %s29, %s36
      %p342 = scmp.eq.s32.totalorder %s341, 0
      %s344 = sadd.s32 %s343, 1
      %s345 = scalar_select %p342, %s343, %s344
      %p348 = pneg %p342
      %p349 = scmp.eq.s32.totalorder %s29, 1
      %p350 = por %p348, %p349
      %p351 = scmp.ne.s32.totalorder %s343, %s346
      %p352 = scmp.eq.s32.totalorder %s29, 0
      %p353 = por %p351, %p352
      %p354 = scmp.ne.s32.totalorder %s343, %s346
      %p355 = scmp.eq.s32.totalorder %s34, 1
      %p356 = por %p354, %p355
      %p357 = scmp.ne.s32.totalorder %s346, %s347
      %p358 = scmp.eq.s32.totalorder %s34, 0
      %p359 = por %p357, %p358
      %p360 = scmp.ne.s32.totalorder %s346, %s347
      %p361 = scmp.eq.s32.totalorder %s35, 1
      %p362 = por %p360, %p361
      %p364 = scmp.ne.s32.totalorder %s347, %s363
      %p365 = scmp.eq.s32.totalorder %s35, 0
      %p366 = por %p364, %p365
      %s367 = ssub.s32 %s29, %s36
      %p368 = scmp.eq.s32.totalorder %s367, 0
      %s370 = sadd.s32 %s369, 1
      %s371 = scalar_select %p368, %s369, %s370
      %p374 = pneg %p368
      %p375 = scmp.eq.s32.totalorder %s29, 1
      %p376 = por %p374, %p375
      %p377 = scmp.ne.s32.totalorder %s369, %s372
      %p378 = scmp.eq.s32.totalorder %s29, 0
      %p379 = por %p377, %p378
      %p380 = scmp.ne.s32.totalorder %s369, %s372
      %p381 = scmp.eq.s32.totalorder %s34, 1
      %p382 = por %p380, %p381
      %p383 = scmp.ne.s32.totalorder %s372, %s373
      %p384 = scmp.eq.s32.totalorder %s34, 0
      %p385 = por %p383, %p384
      %p386 = scmp.ne.s32.totalorder %s372, %s373
      %p387 = scmp.eq.s32.totalorder %s35, 1
      %p388 = por %p386, %p387
      %p390 = scmp.ne.s32.totalorder %s373, %s389
      %p391 = scmp.eq.s32.totalorder %s35, 0
      %p392 = por %p390, %p391
      %p393 = scmp.le.s32.totalorder 1, %s29
      %p394 = scmp.lt.s32.totalorder %s29, 3
      %p395 = pnand %p393, %p394
      %p396 = pneg %p395
      // Predicated region
      $region9: #{tpu_custom_call.1} parent=5 // pred_check
        _
      $region10: #{tpu_custom_call.1} parent=5 // pred_check_branch
        %398 = sbr.rel (%p395) target = $region12
      $region11: #{tpu_custom_call.1} parent=5 // pred_region
        %s399 = ssub.s32 %s29, 1
        // Predicated region
        $region13: #{tpu_custom_call.1} parent=11 // pred_check
          %p400 = pneg %p50
        $region14: #{tpu_custom_call.1} parent=11 // pred_check_branch
          %402 = sbr.rel (%p400) target = $region16
        $region15: #{tpu_custom_call.1} parent=11 // pred_region
          %s404 = ssub.s32 16, 16
          %405 = vsyncadd [#allocation4], %s404
          %s407 = sshll.u32 %s0, 4
          %s408 = int_to_ptr.vmem [resolvable:$true] %s407
          %410 = dma.vmem_to_smem %s408, 16, [#allocation2], [#allocation4]
        $region16: #{tpu_custom_call.1} parent=11 // pred_fallthru
          _
        // Predicated region
        $region17: #{tpu_custom_call.1} parent=11 // pred_check
          %p411 = pneg %p123
        $region18: #{tpu_custom_call.1} parent=11 // pred_check_branch
          %413 = sbr.rel (%p411) target = $region20
        $region19: #{tpu_custom_call.1} parent=11 // pred_region
          _
        $region20: #{tpu_custom_call.1} parent=11 // pred_fallthru
          _
        // Predicated region
        $region21: #{tpu_custom_call.1} parent=11 // pred_check
          %p414 = pneg %p144
        $region22: #{tpu_custom_call.1} parent=11 // pred_check_branch
          %416 = sbr.rel (%p414) target = $region24
        $region23: #{tpu_custom_call.1} parent=11 // pred_region
          _
        $region24: #{tpu_custom_call.1} parent=11 // pred_fallthru
          _
        // Predicated region
        $region25: #{tpu_custom_call.1} parent=11 // pred_check
          %p417 = pneg %p165
        $region26: #{tpu_custom_call.1} parent=11 // pred_check_branch
          %419 = sbr.rel (%p417) target = $region28
        $region27: #{tpu_custom_call.1} parent=11 // pred_region
          _
        $region28: #{tpu_custom_call.1} parent=11 // pred_fallthru
          _
        // Predicated region
        $region29: #{tpu_custom_call.1} parent=11 // pred_check
          %p420 = pneg %p186
        $region30: #{tpu_custom_call.1} parent=11 // pred_check_branch
          %422 = sbr.rel (%p420) target = $region32
        $region31: #{tpu_custom_call.1} parent=11 // pred_region
          _
        $region32: #{tpu_custom_call.1} parent=11 // pred_fallthru
          _
        // Predicated region
        $region33: #{tpu_custom_call.1} parent=11 // pred_check
          %p423 = pneg %p207
        $region34: #{tpu_custom_call.1} parent=11 // pred_check_branch
          %425 = sbr.rel (%p423) target = $region36
        $region35: #{tpu_custom_call.1} parent=11 // pred_region
          _
        $region36: #{tpu_custom_call.1} parent=11 // pred_fallthru
          _
        // Predicated region
        $region37: #{tpu_custom_call.1} parent=11 // pred_check
          %p426 = pneg %p228
        $region38: #{tpu_custom_call.1} parent=11 // pred_check_branch
          %428 = sbr.rel (%p426) target = $region40
        $region39: #{tpu_custom_call.1} parent=11 // pred_region
          _
        $region40: #{tpu_custom_call.1} parent=11 // pred_fallthru
          _
        // Predicated region
        $region41: #{tpu_custom_call.1} parent=11 // pred_check
          %p429 = pneg %p249
        $region42: #{tpu_custom_call.1} parent=11 // pred_check_branch
          %431 = sbr.rel (%p429) target = $region44
        $region43: #{tpu_custom_call.1} parent=11 // pred_region
          _
        $region44: #{tpu_custom_call.1} parent=11 // pred_fallthru
          _
        // Predicated region
        $region45: #{tpu_custom_call.1} parent=11 // pred_check
          %p432 = pneg %p270
        $region46: #{tpu_custom_call.1} parent=11 // pred_check_branch
          %434 = sbr.rel (%p432) target = $region48
        $region47: #{tpu_custom_call.1} parent=11 // pred_region
          _
        $region48: #{tpu_custom_call.1} parent=11 // pred_fallthru
          _
        // Predicated region
        $region49: #{tpu_custom_call.1} parent=11 // pred_check
          %p435 = pneg %p291
        $region50: #{tpu_custom_call.1} parent=11 // pred_check_branch
          %437 = sbr.rel (%p435) target = $region52
        $region51: #{tpu_custom_call.1} parent=11 // pred_region
          _
        $region52: #{tpu_custom_call.1} parent=11 // pred_fallthru
          _
        // Predicated region
        $region53: #{tpu_custom_call.1} parent=11 // pred_check
          %p438 = pneg %p312
        $region54: #{tpu_custom_call.1} parent=11 // pred_check_branch
          %440 = sbr.rel (%p438) target = $region56
        $region55: #{tpu_custom_call.1} parent=11 // pred_region
          _
        $region56: #{tpu_custom_call.1} parent=11 // pred_fallthru
          _
        // Predicated region
        $region57: #{tpu_custom_call.1} parent=11 // pred_check
          %p441 = pneg %p333
        $region58: #{tpu_custom_call.1} parent=11 // pred_check_branch
          %443 = sbr.rel (%p441) target = $region60
        $region59: #{tpu_custom_call.1} parent=11 // pred_region
          _
        $region60: #{tpu_custom_call.1} parent=11 // pred_fallthru
          _
      $region12: #{tpu_custom_call.1} parent=5 // pred_fallthru
        _
      %p444 = scmp.lt.s32.totalorder %s29, 2
      // Predicated region
      $region61: #{tpu_custom_call.1} parent=5 // pred_check
        %p445 = pneg %p444
      $region62: #{tpu_custom_call.1} parent=5 // pred_check_branch
        %447 = sbr.rel (%p445) target = $region64
      $region63: #{tpu_custom_call.1} parent=5 // pred_region
        // Predicated region
        $region65: #{tpu_custom_call.1} parent=63 // pred_check
          %p448 = pneg %p70
        $region66: #{tpu_custom_call.1} parent=63 // pred_check_branch
          %450 = sbr.rel (%p448) target = $region68
        $region67: #{tpu_custom_call.1} parent=63 // pred_region
          %s451 = smul.u32 2, %s29
          %p452 = scmp.lt.s32.totalorder %s451, 3
          %s453 = scalar_select %p452, %s451, 3
          %s454 = smul.addr %s453, 8
          %s455 = scalar_lea.vmem %s1, %s454
          %s456 = smul.u32 2, %s29
        $region68: #{tpu_custom_call.1} parent=63 // pred_fallthru
          _
        // Predicated region
        $region69: #{tpu_custom_call.1} parent=63 // pred_check
          %p457 = pneg %p96
        $region70: #{tpu_custom_call.1} parent=63 // pred_check_branch
          %459 = sbr.rel (%p457) target = $region72
        $region71: #{tpu_custom_call.1} parent=63 // pred_region
          %s460 = smul.u32 2, %s29
          %p461 = scmp.lt.s32.totalorder %s460, 3
          %s462 = scalar_select %p461, %s460, 3
          %s463 = smul.addr %s462, 16
          %s464 = smul.addr %s463, 8
          %s465 = scalar_lea.vmem %s2, %s464
          %s466 = smul.u32 2, %s29
        $region72: #{tpu_custom_call.1} parent=63 // pred_fallthru
          _
      $region64: #{tpu_custom_call.1} parent=5 // pred_fallthru
        _
      %p467 = scmp.le.s32.totalorder 1, %s29
      %p468 = scmp.lt.s32.totalorder %s29, 3
      %p469 = pnand %p467, %p468
      %p470 = pneg %p469
      // Predicated region
      $region73: #{tpu_custom_call.1} parent=5 // pred_check
        _
      $region74: #{tpu_custom_call.1} parent=5 // pred_check_branch
        %472 = sbr.rel (%p469) target = $region76
      $region75: #{tpu_custom_call.1} parent=5 // pred_region
        %s473 = ssub.s32 %s29, 1
        // Predicated region
        $region77: #{tpu_custom_call.1} parent=75 // pred_check
          %p474 = pneg %p50
        $region78: #{tpu_custom_call.1} parent=75 // pred_check_branch
          %476 = sbr.rel (%p474) target = $region80
        $region79: #{tpu_custom_call.1} parent=75 // pred_region
          %477 = dma.done [#allocation4], 16
        $region80: #{tpu_custom_call.1} parent=75 // pred_fallthru
          _
        %478 = sfence
        %p479 = pneg %p50
        %p480 = pneg %p47
        %s481 = smul.u32 2, %s34
        %p482 = scmp.lt.s32.totalorder %s481, 3
        %s483 = scalar_select %p482, %s481, 3
        %s484 = smul.addr %s483, 8
        %s485 = scalar_lea.vmem %s1, %s484
        %p486 = pneg %p76
        %p487 = pneg %p73
        %s488 = smul.u32 2, %s34
        %p489 = scmp.lt.s32.totalorder %s488, 3
        %s490 = scalar_select %p489, %s488, 3
        %s491 = smul.addr %s490, 16
        %s492 = smul.addr %s491, 8
        %s493 = scalar_lea.vmem %s2, %s492
        %p494 = pneg %p102
        %p495 = pneg %p99
        %p496 = pneg %p123
        %p497 = pneg %p120
        %p498 = pneg %p144
        %p499 = pneg %p141
        %p500 = pneg %p165
        %p501 = pneg %p162
        %p502 = pneg %p186
        %p503 = pneg %p183
        %p504 = pneg %p207
        %p505 = pneg %p204
        %p506 = pneg %p228
        %p507 = pneg %p225
        %p508 = pneg %p249
        %p509 = pneg %p246
        %p510 = pneg %p270
        %p511 = pneg %p267
        %p512 = pneg %p291
        %p513 = pneg %p288
        %p514 = pneg %p312
        %p515 = pneg %p309
        %p516 = pneg %p333
        %p517 = pneg %p330
        %p518 = pneg %p359
        %p519 = pneg %p356
        %s520 = sand.u32 %s346, 1
        %s521 = scalar_lea.sflag [#allocation3], %s520
        %s522 = sand.u32 %s346, 1
        %s523 = smul.addr %s522, 2
        %s524 = scalar_lea.vmem [#allocation5], %s523
        %p525 = pneg %p385
        %p526 = pneg %p382
        %s527 = sand.u32 %s372, 1
        %s528 = scalar_lea.sflag [#allocation7], %s527
        %s529 = sand.u32 %s372, 1
        %s530 = smul.addr %s529, 64
        %s531 = scalar_lea.vmem [#allocation6], %s530
        %s532 = smul.u32 2, %s34
        %p533 = scmp.lt.s32.totalorder %s532, 3
        %s534 = scalar_select %p533, %s532, 3
        %s535 = smul.addr %s534, 8
        %s536 = scalar_lea.vmem %s1, %s535
        %s537 = smul.u32 2, %s34
        %s538 = smul.u32 2, %s34
        %p539 = scmp.lt.s32.totalorder %s538, 3
        %s540 = scalar_select %p539, %s538, 3
        %s541 = smul.addr %s540, 16
        %s542 = smul.addr %s541, 8
        %s543 = scalar_lea.vmem %s2, %s542
        %s544 = smul.u32 2, %s34
        %s545 = smul.u32 2, %s34
        %s546 = sld [smem:[#allocation2]]
        %s547 = sld [smem:[#allocation2 + $0x1]]
        %v548 = vld [vmem:[%s536] sm:$0xff]
        %v549 = vld [vmem:[%s536 + $0x8] sm:$0xff]
        %v550 = vld [vmem:[%s543] sm:$0xff]
        %v551 = vld [vmem:[%s543 + $0x8] sm:$0xff]
        %v552 = vld [vmem:[%s543 + $0x10] sm:$0xff]
        %v553 = vld [vmem:[%s543 + $0x18] sm:$0xff]
        %v554 = vld [vmem:[%s543 + $0x20] sm:$0xff]
        %v555 = vld [vmem:[%s543 + $0x28] sm:$0xff]
        %v556 = vld [vmem:[%s543 + $0x30] sm:$0xff]
        %v557 = vld [vmem:[%s543 + $0x38] sm:$0xff]
        %v558 = vld [vmem:[%s543 + $0x40] sm:$0xff]
        %v559 = vld [vmem:[%s543 + $0x48] sm:$0xff]
        %v560 = vld [vmem:[%s543 + $0x50] sm:$0xff]
        %v561 = vld [vmem:[%s543 + $0x58] sm:$0xff]
        %v562 = vld [vmem:[%s543 + $0x60] sm:$0xff]
        %v563 = vld [vmem:[%s543 + $0x68] sm:$0xff]
        %v564 = vld [vmem:[%s543 + $0x70] sm:$0xff]
        %v565 = vld [vmem:[%s543 + $0x78] sm:$0xff]
        %v566 = vld [vmem:[%s543 + $0x80] sm:$0xff]
        %v567 = vld [vmem:[%s543 + $0x88] sm:$0xff]
        %v568 = vld [vmem:[%s543 + $0x90] sm:$0xff]
        %v569 = vld [vmem:[%s543 + $0x98] sm:$0xff]
        %v570 = vld [vmem:[%s543 + $0xa0] sm:$0xff]
        %v571 = vld [vmem:[%s543 + $0xa8] sm:$0xff]
        %v572 = vld [vmem:[%s543 + $0xb0] sm:$0xff]
        %v573 = vld [vmem:[%s543 + $0xb8] sm:$0xff]
        %v574 = vld [vmem:[%s543 + $0xc0] sm:$0xff]
        %v575 = vld [vmem:[%s543 + $0xc8] sm:$0xff]
        %v576 = vld [vmem:[%s543 + $0xd0] sm:$0xff]
        %v577 = vld [vmem:[%s543 + $0xd8] sm:$0xff]
        %v578 = vld [vmem:[%s543 + $0xe0] sm:$0xff]
        %v579 = vld [vmem:[%s543 + $0xe8] sm:$0xff]
        %v580 = vld [vmem:[%s543 + $0xf0] sm:$0xff]
        %v581 = vld [vmem:[%s543 + $0xf8] sm:$0xff]
        %v582 = vld [vmem:[%s3] sm:$0xff]
        %v583 = vld [vmem:[%s3 + $0x8] sm:$0xff]
        %vm584 = vcmask 130048
        %v586 = vsel %vm584, %v548, 0
        %v589 = vsel %vm584, %v549, 0
        %591 = vmatprep.subr.mxu0 0.0
        %592 = vmatpush1.msra.mxu0 0.0
        %593 = vmatprep.subr.mxu0 0.0
        %594 = vmatpush1.msra.mxu0 0.0
        %595 = vmatprep.subr.mxu0 0.0
        %596 = vmatpush1.msra.mxu0 0.0
        %597 = vmatprep.subr.mxu0 0.0
        %598 = vmatpush1.msra.mxu0 0.0
        %599 = vmatprep.subr.mxu0 0.0
        %600 = vmatpush1.msra.mxu0 0.0
        %601 = vmatprep.subr.mxu0 0.0
        %602 = vmatpush1.msra.mxu0 0.0
        %603 = vmatprep.subr.mxu0 0.0
        %604 = vmatpush1.msra.mxu0 0.0
        %605 = vmatprep.subr.mxu0 0.0
        %606 = vmatpush1.msra.mxu0 0.0
        %607 = vmatprep.subr.mxu0 0.0
        %608 = vmatpush1.msra.mxu0 0.0
        %609 = vmatprep.subr.mxu0 0.0
        %610 = vmatpush1.msra.mxu0 0.0
        %611 = vmatprep.subr.mxu0 0.0
        %612 = vmatpush1.msra.mxu0 0.0
        %613 = vmatprep.subr.mxu0 0.0
        %614 = vmatpush1.msra.mxu0 0.0
        %615 = vmatprep.subr.mxu0 0.0
        %616 = vmatpush1.msra.mxu0 0.0
        %617 = vmatprep.subr.mxu0 0.0
        %618 = vmatpush1.msra.mxu0 0.0
        %619 = vmatprep.subr.mxu0 0.0
        %620 = vmatpush1.msra.mxu0 %v583
        %621 = vmatprep.subr.mxu0 0.0
        %622 = vmatpush1.msra.mxu0 %v582
        %623 = vmatprep.subr.mxu0 0.0
        %624 = vmatpush2.msra.mxu0 0.0
        %625 = vmatprep.subr.mxu0 0.0
        %626 = vmatpush2.msra.mxu0 0.0
        %627 = vmatprep.subr.mxu0 0.0
        %628 = vmatpush2.msra.mxu0 0.0
        %629 = vmatprep.subr.mxu0 0.0
        %630 = vmatpush2.msra.mxu0 0.0
        %631 = vmatprep.subr.mxu0 0.0
        %632 = vmatpush2.msra.mxu0 0.0
        %633 = vmatprep.subr.mxu0 0.0
        %634 = vmatpush2.msra.mxu0 0.0
        %635 = vmatprep.subr.mxu0 0.0
        %636 = vmatpush2.msra.mxu0 0.0
        %637 = vmatprep.subr.mxu0 0.0
        %638 = vmatpush2.msra.mxu0 0.0
        %639 = vmatprep.subr.mxu0 0.0
        %640 = vmatpush2.msra.mxu0 0.0
        %641 = vmatprep.subr.mxu0 0.0
        %642 = vmatpush2.msra.mxu0 0.0
        %643 = vmatprep.subr.mxu0 0.0
        %644 = vmatpush2.msra.mxu0 0.0
        %645 = vmatprep.subr.mxu0 0.0
        %646 = vmatpush2.msra.mxu0 0.0
        %647 = vmatprep.subr.mxu0 0.0
        %648 = vmatpush2.msra.mxu0 0.0
        %649 = vmatprep.subr.mxu0 0.0
        %650 = vmatpush2.msra.mxu0 0.0
        %651 = vmatprep.subr.mxu0 0.0
        %652 = vmatpush2.msra.mxu0 0.0
        %653 = vmatprep.subr.mxu0 0.0
        %654 = vmatpush2.msra.mxu0 0.0
        %655 = vmatprep.mubr.f32.mxu0 0.0
        %656 = vmatmul.mubr.f32.gmra.mxu0 %v586
        %v657 = vpop.f32.mrf.mxu0
        %v658 = vadd.f32 0.0, %v657
        %v659 = vpop.f32.mrf.mxu0
        %660 = vmatprep.mubr.f32.mxu0 0.0
        %661 = vmatmul.mubr.f32.gmra.mxu0 %v589
        %v662 = vpop.f32.mrf.mxu0
        %v663 = vadd.f32 0.0, %v662
        %v664 = vpop.f32.mrf.mxu0
        %665 = vdwg.mxu0
        %v666 = vstv %s546
        %v667 = vmul.f32 %v658, %v666
        %v668 = vmul.f32 %v663, %v666
        %v669 = vld [vmem:[%s4] sm:$0x1]
        %v671 = vlaneseq
        %v672 = vshrl.u32 %v671, 7
        %v673 = vsub.s32 0, %v672
        %v674 = vrot.slane %v669, %v673
        %v676 = vadd.f32 %v667, %v674
        %v677 = vadd.f32 %v668, %v674
        %v678 = vmax.f32 %v676, 0.0
        %v679 = vmax.f32 %v677, 0.0
        %v680 = vld [vmem:[%s5] sm:$0xff]
        %v681 = vld [vmem:[%s5 + $0x8] sm:$0xff]
        %v682 = vld [vmem:[%s5 + $0x10] sm:$0xff]
        %vm683 = vcmask 195584
        %v685 = vsel %vm683, %v550, 0
        %v688 = vsel %vm683, %v551, 0
        %v691 = vsel %vm683, %v552, 0
        %v694 = vsel %vm683, %v553, 0
        %v697 = vsel %vm683, %v554, 0
        %v700 = vsel %vm683, %v555, 0
        %v703 = vsel %vm683, %v556, 0
        %v706 = vsel %vm683, %v557, 0
        %v709 = vsel %vm683, %v558, 0
        %v712 = vsel %vm683, %v559, 0
        %v715 = vsel %vm683, %v560, 0
        %v718 = vsel %vm683, %v561, 0
        %v721 = vsel %vm683, %v562, 0
        %v724 = vsel %vm683, %v563, 0
        %v727 = vsel %vm683, %v564, 0
        %v730 = vsel %vm683, %v565, 0
        %v733 = vsel %vm683, %v566, 0
        %v736 = vsel %vm683, %v567, 0
        %v739 = vsel %vm683, %v568, 0
        %v742 = vsel %vm683, %v569, 0
        %v745 = vsel %vm683, %v570, 0
        %v748 = vsel %vm683, %v571, 0
        %v751 = vsel %vm683, %v572, 0
        %v754 = vsel %vm683, %v573, 0
        %v757 = vsel %vm683, %v574, 0
        %v760 = vsel %vm683, %v575, 0
        %v763 = vsel %vm683, %v576, 0
        %v766 = vsel %vm683, %v577, 0
        %v769 = vsel %vm683, %v578, 0
        %v772 = vsel %vm683, %v579, 0
        %v775 = vsel %vm683, %v580, 0
        %v778 = vsel %vm683, %v581, 0
        %780 = vmatprep.subr.mxu0 0.0
        %781 = vmatpush1.msra.mxu0 0.0
        %782 = vmatprep.subr.mxu0 0.0
        %783 = vmatpush1.msra.mxu0 0.0
        %784 = vmatprep.subr.mxu0 0.0
        %785 = vmatpush1.msra.mxu0 0.0
        %786 = vmatprep.subr.mxu0 0.0
        %787 = vmatpush1.msra.mxu0 0.0
        %788 = vmatprep.subr.mxu0 0.0
        %789 = vmatpush1.msra.mxu0 0.0
        %790 = vmatprep.subr.mxu0 0.0
        %791 = vmatpush1.msra.mxu0 0.0
        %792 = vmatprep.subr.mxu0 0.0
        %793 = vmatpush1.msra.mxu0 0.0
        %794 = vmatprep.subr.mxu0 0.0
        %795 = vmatpush1.msra.mxu0 0.0
        %796 = vmatprep.subr.mxu0 0.0
        %797 = vmatpush1.msra.mxu0 0.0
        %798 = vmatprep.subr.mxu0 0.0
        %799 = vmatpush1.msra.mxu0 0.0
        %800 = vmatprep.subr.mxu0 0.0
        %801 = vmatpush1.msra.mxu0 0.0
        %802 = vmatprep.subr.mxu0 0.0
        %803 = vmatpush1.msra.mxu0 0.0
        %804 = vmatprep.subr.mxu0 0.0
        %805 = vmatpush1.msra.mxu0 0.0
        %806 = vmatprep.subr.mxu0 0.0
        %807 = vmatpush1.msra.mxu0 %v682
        %808 = vmatprep.subr.mxu0 0.0
        %809 = vmatpush1.msra.mxu0 %v681
        %810 = vmatprep.subr.mxu0 0.0
        %811 = vmatpush1.msra.mxu0 %v680
        %812 = vmatprep.subr.mxu0 0.0
        %813 = vmatpush2.msra.mxu0 0.0
        %814 = vmatprep.subr.mxu0 0.0
        %815 = vmatpush2.msra.mxu0 0.0
        %816 = vmatprep.subr.mxu0 0.0
        %817 = vmatpush2.msra.mxu0 0.0
        %818 = vmatprep.subr.mxu0 0.0
        %819 = vmatpush2.msra.mxu0 0.0
        %820 = vmatprep.subr.mxu0 0.0
        %821 = vmatpush2.msra.mxu0 0.0
        %822 = vmatprep.subr.mxu0 0.0
        %823 = vmatpush2.msra.mxu0 0.0
        %824 = vmatprep.subr.mxu0 0.0
        %825 = vmatpush2.msra.mxu0 0.0
        %826 = vmatprep.subr.mxu0 0.0
        %827 = vmatpush2.msra.mxu0 0.0
        %828 = vmatprep.subr.mxu0 0.0
        %829 = vmatpush2.msra.mxu0 0.0
        %830 = vmatprep.subr.mxu0 0.0
        %831 = vmatpush2.msra.mxu0 0.0
        %832 = vmatprep.subr.mxu0 0.0
        %833 = vmatpush2.msra.mxu0 0.0
        %834 = vmatprep.subr.mxu0 0.0
        %835 = vmatpush2.msra.mxu0 0.0
        %836 = vmatprep.subr.mxu0 0.0
        %837 = vmatpush2.msra.mxu0 0.0
        %838 = vmatprep.subr.mxu0 0.0
        %839 = vmatpush2.msra.mxu0 0.0
        %840 = vmatprep.subr.mxu0 0.0
        %841 = vmatpush2.msra.mxu0 0.0
        %842 = vmatprep.subr.mxu0 0.0
        %843 = vmatpush2.msra.mxu0 0.0
        %844 = vmatprep.mubr.f32.mxu0 0.0
        %845 = vmatmul.mubr.f32.gmra.mxu0 %v685
        %v846 = vpop.f32.mrf.mxu0
        %v847 = vadd.f32 0.0, %v846
        %v848 = vpop.f32.mrf.mxu0
        %849 = vmatprep.mubr.f32.mxu0 0.0
        %850 = vmatmul.mubr.f32.gmra.mxu0 %v688
        %v851 = vpop.f32.mrf.mxu0
        %v852 = vadd.f32 0.0, %v851
        %v853 = vpop.f32.mrf.mxu0
        %854 = vmatprep.mubr.f32.mxu0 0.0
        %855 = vmatmul.mubr.f32.gmra.mxu0 %v691
        %v856 = vpop.f32.mrf.mxu0
        %v857 = vadd.f32 0.0, %v856
        %v858 = vpop.f32.mrf.mxu0
        %859 = vmatprep.mubr.f32.mxu0 0.0
        %860 = vmatmul.mubr.f32.gmra.mxu0 %v694
        %v861 = vpop.f32.mrf.mxu0
        %v862 = vadd.f32 0.0, %v861
        %v863 = vpop.f32.mrf.mxu0
        %864 = vmatprep.mubr.f32.mxu0 0.0
        %865 = vmatmul.mubr.f32.gmra.mxu0 %v697
        %v866 = vpop.f32.mrf.mxu0
        %v867 = vadd.f32 0.0, %v866
        %v868 = vpop.f32.mrf.mxu0
        %869 = vmatprep.mubr.f32.mxu0 0.0
        %870 = vmatmul.mubr.f32.gmra.mxu0 %v700
        %v871 = vpop.f32.mrf.mxu0
        %v872 = vadd.f32 0.0, %v871
        %v873 = vpop.f32.mrf.mxu0
        %874 = vmatprep.mubr.f32.mxu0 0.0
        %875 = vmatmul.mubr.f32.gmra.mxu0 %v703
        %v876 = vpop.f32.mrf.mxu0
        %v877 = vadd.f32 0.0, %v876
        %v878 = vpop.f32.mrf.mxu0
        %879 = vmatprep.mubr.f32.mxu0 0.0
        %880 = vmatmul.mubr.f32.gmra.mxu0 %v706
        %v881 = vpop.f32.mrf.mxu0
        %v882 = vadd.f32 0.0, %v881
        %v883 = vpop.f32.mrf.mxu0
        %884 = vmatprep.mubr.f32.mxu0 0.0
        %885 = vmatmul.mubr.f32.gmra.mxu0 %v709
        %v886 = vpop.f32.mrf.mxu0
        %v887 = vadd.f32 0.0, %v886
        %v888 = vpop.f32.mrf.mxu0
        %889 = vmatprep.mubr.f32.mxu0 0.0
        %890 = vmatmul.mubr.f32.gmra.mxu0 %v712
        %v891 = vpop.f32.mrf.mxu0
        %v892 = vadd.f32 0.0, %v891
        %v893 = vpop.f32.mrf.mxu0
        %894 = vmatprep.mubr.f32.mxu0 0.0
        %895 = vmatmul.mubr.f32.gmra.mxu0 %v715
        %v896 = vpop.f32.mrf.mxu0
        %v897 = vadd.f32 0.0, %v896
        %v898 = vpop.f32.mrf.mxu0
        %899 = vmatprep.mubr.f32.mxu0 0.0
        %900 = vmatmul.mubr.f32.gmra.mxu0 %v718
        %v901 = vpop.f32.mrf.mxu0
        %v902 = vadd.f32 0.0, %v901
        %v903 = vpop.f32.mrf.mxu0
        %904 = vmatprep.mubr.f32.mxu0 0.0
        %905 = vmatmul.mubr.f32.gmra.mxu0 %v721
        %v906 = vpop.f32.mrf.mxu0
        %v907 = vadd.f32 0.0, %v906
        %v908 = vpop.f32.mrf.mxu0
        %909 = vmatprep.mubr.f32.mxu0 0.0
        %910 = vmatmul.mubr.f32.gmra.mxu0 %v724
        %v911 = vpop.f32.mrf.mxu0
        %v912 = vadd.f32 0.0, %v911
        %v913 = vpop.f32.mrf.mxu0
        %914 = vmatprep.mubr.f32.mxu0 0.0
        %915 = vmatmul.mubr.f32.gmra.mxu0 %v727
        %v916 = vpop.f32.mrf.mxu0
        %v917 = vadd.f32 0.0, %v916
        %v918 = vpop.f32.mrf.mxu0
        %919 = vmatprep.mubr.f32.mxu0 0.0
        %920 = vmatmul.mubr.f32.gmra.mxu0 %v730
        %v921 = vpop.f32.mrf.mxu0
        %v922 = vadd.f32 0.0, %v921
        %v923 = vpop.f32.mrf.mxu0
        %924 = vmatprep.mubr.f32.mxu0 0.0
        %925 = vmatmul.mubr.f32.gmra.mxu0 %v733
        %v926 = vpop.f32.mrf.mxu0
        %v927 = vadd.f32 0.0, %v926
        %v928 = vpop.f32.mrf.mxu0
        %929 = vmatprep.mubr.f32.mxu0 0.0
        %930 = vmatmul.mubr.f32.gmra.mxu0 %v736
        %v931 = vpop.f32.mrf.mxu0
        %v932 = vadd.f32 0.0, %v931
        %v933 = vpop.f32.mrf.mxu0
        %934 = vmatprep.mubr.f32.mxu0 0.0
        %935 = vmatmul.mubr.f32.gmra.mxu0 %v739
        %v936 = vpop.f32.mrf.mxu0
        %v937 = vadd.f32 0.0, %v936
        %v938 = vpop.f32.mrf.mxu0
        %939 = vmatprep.mubr.f32.mxu0 0.0
        %940 = vmatmul.mubr.f32.gmra.mxu0 %v742
        %v941 = vpop.f32.mrf.mxu0
        %v942 = vadd.f32 0.0, %v941
        %v943 = vpop.f32.mrf.mxu0
        %944 = vmatprep.mubr.f32.mxu0 0.0
        %945 = vmatmul.mubr.f32.gmra.mxu0 %v745
        %v946 = vpop.f32.mrf.mxu0
        %v947 = vadd.f32 0.0, %v946
        %v948 = vpop.f32.mrf.mxu0
        %949 = vmatprep.mubr.f32.mxu0 0.0
        %950 = vmatmul.mubr.f32.gmra.mxu0 %v748
        %v951 = vpop.f32.mrf.mxu0
        %v952 = vadd.f32 0.0, %v951
        %v953 = vpop.f32.mrf.mxu0
        %954 = vmatprep.mubr.f32.mxu0 0.0
        %955 = vmatmul.mubr.f32.gmra.mxu0 %v751
        %v956 = vpop.f32.mrf.mxu0
        %v957 = vadd.f32 0.0, %v956
        %v958 = vpop.f32.mrf.mxu0
        %959 = vmatprep.mubr.f32.mxu0 0.0
        %960 = vmatmul.mubr.f32.gmra.mxu0 %v754
        %v961 = vpop.f32.mrf.mxu0
        %v962 = vadd.f32 0.0, %v961
        %v963 = vpop.f32.mrf.mxu0
        %964 = vmatprep.mubr.f32.mxu0 0.0
        %965 = vmatmul.mubr.f32.gmra.mxu0 %v757
        %v966 = vpop.f32.mrf.mxu0
        %v967 = vadd.f32 0.0, %v966
        %v968 = vpop.f32.mrf.mxu0
        %969 = vmatprep.mubr.f32.mxu0 0.0
        %970 = vmatmul.mubr.f32.gmra.mxu0 %v760
        %v971 = vpop.f32.mrf.mxu0
        %v972 = vadd.f32 0.0, %v971
        %v973 = vpop.f32.mrf.mxu0
        %974 = vmatprep.mubr.f32.mxu0 0.0
        %975 = vmatmul.mubr.f32.gmra.mxu0 %v763
        %v976 = vpop.f32.mrf.mxu0
        %v977 = vadd.f32 0.0, %v976
        %v978 = vpop.f32.mrf.mxu0
        %979 = vmatprep.mubr.f32.mxu0 0.0
        %980 = vmatmul.mubr.f32.gmra.mxu0 %v766
        %v981 = vpop.f32.mrf.mxu0
        %v982 = vadd.f32 0.0, %v981
        %v983 = vpop.f32.mrf.mxu0
        %984 = vmatprep.mubr.f32.mxu0 0.0
        %985 = vmatmul.mubr.f32.gmra.mxu0 %v769
        %v986 = vpop.f32.mrf.mxu0
        %v987 = vadd.f32 0.0, %v986
        %v988 = vpop.f32.mrf.mxu0
        %989 = vmatprep.mubr.f32.mxu0 0.0
        %990 = vmatmul.mubr.f32.gmra.mxu0 %v772
        %v991 = vpop.f32.mrf.mxu0
        %v992 = vadd.f32 0.0, %v991
        %v993 = vpop.f32.mrf.mxu0
        %994 = vmatprep.mubr.f32.mxu0 0.0
        %995 = vmatmul.mubr.f32.gmra.mxu0 %v775
        %v996 = vpop.f32.mrf.mxu0
        %v997 = vadd.f32 0.0, %v996
        %v998 = vpop.f32.mrf.mxu0
        %999 = vmatprep.mubr.f32.mxu0 0.0
        %1000 = vmatmul.mubr.f32.gmra.mxu0 %v778
        %v1001 = vpop.f32.mrf.mxu0
        %v1002 = vadd.f32 0.0, %v1001
        %v1003 = vpop.f32.mrf.mxu0
        %1004 = vdwg.mxu0
        %v1005 = vstv %s547
        %v1006 = vmul.f32 %v847, %v1005
        %v1007 = vmul.f32 %v852, %v1005
        %v1008 = vmul.f32 %v857, %v1005
        %v1009 = vmul.f32 %v862, %v1005
        %v1010 = vmul.f32 %v867, %v1005
        %v1011 = vmul.f32 %v872, %v1005
        %v1012 = vmul.f32 %v877, %v1005
        %v1013 = vmul.f32 %v882, %v1005
        %v1014 = vmul.f32 %v887, %v1005
        %v1015 = vmul.f32 %v892, %v1005
        %v1016 = vmul.f32 %v897, %v1005
        %v1017 = vmul.f32 %v902, %v1005
        %v1018 = vmul.f32 %v907, %v1005
        %v1019 = vmul.f32 %v912, %v1005
        %v1020 = vmul.f32 %v917, %v1005
        %v1021 = vmul.f32 %v922, %v1005
        %v1022 = vmul.f32 %v927, %v1005
        %v1023 = vmul.f32 %v932, %v1005
        %v1024 = vmul.f32 %v937, %v1005
        %v1025 = vmul.f32 %v942, %v1005
        %v1026 = vmul.f32 %v947, %v1005
        %v1027 = vmul.f32 %v952, %v1005
        %v1028 = vmul.f32 %v957, %v1005
        %v1029 = vmul.f32 %v962, %v1005
        %v1030 = vmul.f32 %v967, %v1005
        %v1031 = vmul.f32 %v972, %v1005
        %v1032 = vmul.f32 %v977, %v1005
        %v1033 = vmul.f32 %v982, %v1005
        %v1034 = vmul.f32 %v987, %v1005
        %v1035 = vmul.f32 %v992, %v1005
        %v1036 = vmul.f32 %v997, %v1005
        %v1037 = vmul.f32 %v1002, %v1005
        %v1038 = vld [vmem:[%s6] sm:$0x1]
        %v1040 = vlaneseq
        %v1041 = vshrl.u32 %v1040, 7
        %v1042 = vsub.s32 0, %v1041
        %v1043 = vrot.slane %v1038, %v1042
        %v1045 = vadd.f32 %v1006, %v1043
        %v1046 = vadd.f32 %v1007, %v1043
        %v1047 = vadd.f32 %v1008, %v1043
        %v1048 = vadd.f32 %v1009, %v1043
        %v1049 = vadd.f32 %v1010, %v1043
        %v1050 = vadd.f32 %v1011, %v1043
        %v1051 = vadd.f32 %v1012, %v1043
        %v1052 = vadd.f32 %v1013, %v1043
        %v1053 = vadd.f32 %v1014, %v1043
        %v1054 = vadd.f32 %v1015, %v1043
        %v1055 = vadd.f32 %v1016, %v1043
        %v1056 = vadd.f32 %v1017, %v1043
        %v1057 = vadd.f32 %v1018, %v1043
        %v1058 = vadd.f32 %v1019, %v1043
        %v1059 = vadd.f32 %v1020, %v1043
        %v1060 = vadd.f32 %v1021, %v1043
        %v1061 = vadd.f32 %v1022, %v1043
        %v1062 = vadd.f32 %v1023, %v1043
        %v1063 = vadd.f32 %v1024, %v1043
        %v1064 = vadd.f32 %v1025, %v1043
        %v1065 = vadd.f32 %v1026, %v1043
        %v1066 = vadd.f32 %v1027, %v1043
        %v1067 = vadd.f32 %v1028, %v1043
        %v1068 = vadd.f32 %v1029, %v1043
        %v1069 = vadd.f32 %v1030, %v1043
        %v1070 = vadd.f32 %v1031, %v1043
        %v1071 = vadd.f32 %v1032, %v1043
        %v1072 = vadd.f32 %v1033, %v1043
        %v1073 = vadd.f32 %v1034, %v1043
        %v1074 = vadd.f32 %v1035, %v1043
        %v1075 = vadd.f32 %v1036, %v1043
        %v1076 = vadd.f32 %v1037, %v1043
        %v1077 = vmax.f32 %v1045, 0.0
        %v1078 = vmax.f32 %v1046, 0.0
        %v1079 = vmax.f32 %v1047, 0.0
        %v1080 = vmax.f32 %v1048, 0.0
        %v1081 = vmax.f32 %v1049, 0.0
        %v1082 = vmax.f32 %v1050, 0.0
        %v1083 = vmax.f32 %v1051, 0.0
        %v1084 = vmax.f32 %v1052, 0.0
        %v1085 = vmax.f32 %v1053, 0.0
        %v1086 = vmax.f32 %v1054, 0.0
        %v1087 = vmax.f32 %v1055, 0.0
        %v1088 = vmax.f32 %v1056, 0.0
        %v1089 = vmax.f32 %v1057, 0.0
        %v1090 = vmax.f32 %v1058, 0.0
        %v1091 = vmax.f32 %v1059, 0.0
        %v1092 = vmax.f32 %v1060, 0.0
        %v1093 = vmax.f32 %v1061, 0.0
        %v1094 = vmax.f32 %v1062, 0.0
        %v1095 = vmax.f32 %v1063, 0.0
        %v1096 = vmax.f32 %v1064, 0.0
        %v1097 = vmax.f32 %v1065, 0.0
        %v1098 = vmax.f32 %v1066, 0.0
        %v1099 = vmax.f32 %v1067, 0.0
        %v1100 = vmax.f32 %v1068, 0.0
        %v1101 = vmax.f32 %v1069, 0.0
        %v1102 = vmax.f32 %v1070, 0.0
        %v1103 = vmax.f32 %v1071, 0.0
        %v1104 = vmax.f32 %v1072, 0.0
        %v1105 = vmax.f32 %v1073, 0.0
        %v1106 = vmax.f32 %v1074, 0.0
        %v1107 = vmax.f32 %v1075, 0.0
        %v1108 = vmax.f32 %v1076, 0.0
        %v1109 = vld [vmem:[%s7] sm:$0x1f]
        %v1110 = vld [vmem:[%s8] sm:$0x1]
        %v1111 = vld [vmem:[%s8 + $0x1] sm:$0x1]
        %v1112 = vld [vmem:[%s8 + $0x2] sm:$0x1]
        %v1113 = vld [vmem:[%s8 + $0x3] sm:$0x1]
        %v1114 = vld [vmem:[%s8 + $0x4] sm:$0x1]
        %v1115 = vld [vmem:[%s9] sm:$0xff]
        %v1116 = vld [vmem:[%s10] sm:$0xff]
        %v1117 = vld [vmem:[%s10 + $0x8] sm:$0xff]
        %v1118 = vld [vmem:[%s10 + $0x10] sm:$0xff]
        %v1119 = vld [vmem:[%s10 + $0x18] sm:$0xff]
        %v1120 = vld [vmem:[%s10 + $0x20] sm:$0xff]
        %v1121 = vld [vmem:[%s10 + $0x28] sm:$0xff]
        %v1122 = vld [vmem:[%s10 + $0x30] sm:$0xff]
        %v1123 = vld [vmem:[%s10 + $0x38] sm:$0xff]
        %v1124 = vld [vmem:[%s10 + $0x40] sm:$0xff]
        %v1125 = vld [vmem:[%s10 + $0x48] sm:$0xff]
        %v1126 = vld [vmem:[%s10 + $0x50] sm:$0xff]
        %v1127 = vld [vmem:[%s10 + $0x58] sm:$0xff]
        %v1128 = vld [vmem:[%s10 + $0x60] sm:$0xff]
        %v1129 = vld [vmem:[%s10 + $0x68] sm:$0xff]
        %v1130 = vld [vmem:[%s10 + $0x70] sm:$0xff]
        %v1131 = vld [vmem:[%s10 + $0x78] sm:$0xff]
        %1133 = vset.pattern.permute.xlu0 0
        %1134 = vperm.xlu0 %1133, %v1115
        %v1135 = vpop.permute.xlu0 %1134
        %v1137 = vmul.f32 %v678, %v1135
        %1139 = vset.pattern.permute.xlu0 0
        %1140 = vperm.xlu0 %1139, %v1116
        %v1141 = vpop.permute.xlu0 %1140
        %1144 = vset.pattern.permute.xlu0 0
        %1145 = vperm.xlu0 %1144, %v1117
        %v1146 = vpop.permute.xlu0 %1145
        %1149 = vset.pattern.permute.xlu0 0
        %1150 = vperm.xlu0 %1149, %v1118
        %v1151 = vpop.permute.xlu0 %1150
        %1154 = vset.pattern.permute.xlu0 0
        %1155 = vperm.xlu0 %1154, %v1119
        %v1156 = vpop.permute.xlu0 %1155
        %1159 = vset.pattern.permute.xlu0 0
        %1160 = vperm.xlu0 %1159, %v1120
        %v1161 = vpop.permute.xlu0 %1160
        %1164 = vset.pattern.permute.xlu0 0
        %1165 = vperm.xlu0 %1164, %v1121
        %v1166 = vpop.permute.xlu0 %1165
        %1169 = vset.pattern.permute.xlu0 0
        %1170 = vperm.xlu0 %1169, %v1122
        %v1171 = vpop.permute.xlu0 %1170
        %1174 = vset.pattern.permute.xlu0 0
        %1175 = vperm.xlu0 %1174, %v1123
        %v1176 = vpop.permute.xlu0 %1175
        %1179 = vset.pattern.permute.xlu0 0
        %1180 = vperm.xlu0 %1179, %v1124
        %v1181 = vpop.permute.xlu0 %1180
        %1184 = vset.pattern.permute.xlu0 0
        %1185 = vperm.xlu0 %1184, %v1125
        %v1186 = vpop.permute.xlu0 %1185
        %1189 = vset.pattern.permute.xlu0 0
        %1190 = vperm.xlu0 %1189, %v1126
        %v1191 = vpop.permute.xlu0 %1190
        %1194 = vset.pattern.permute.xlu0 0
        %1195 = vperm.xlu0 %1194, %v1127
        %v1196 = vpop.permute.xlu0 %1195
        %1199 = vset.pattern.permute.xlu0 0
        %1200 = vperm.xlu0 %1199, %v1128
        %v1201 = vpop.permute.xlu0 %1200
        %1204 = vset.pattern.permute.xlu0 0
        %1205 = vperm.xlu0 %1204, %v1129
        %v1206 = vpop.permute.xlu0 %1205
        %1209 = vset.pattern.permute.xlu0 0
        %1210 = vperm.xlu0 %1209, %v1130
        %v1211 = vpop.permute.xlu0 %1210
        %1214 = vset.pattern.permute.xlu0 0
        %1215 = vperm.xlu0 %1214, %v1131
        %v1216 = vpop.permute.xlu0 %1215
        %v1218 = vmul.f32 %v1077, %v1141
        %v1219 = vmul.f32 %v1078, %v1146
        %v1220 = vmul.f32 %v1079, %v1151
        %v1221 = vmul.f32 %v1080, %v1156
        %v1222 = vmul.f32 %v1081, %v1161
        %v1223 = vmul.f32 %v1082, %v1166
        %v1224 = vmul.f32 %v1083, %v1171
        %v1225 = vmul.f32 %v1084, %v1176
        %v1226 = vmul.f32 %v1085, %v1181
        %v1227 = vmul.f32 %v1086, %v1186
        %v1228 = vmul.f32 %v1087, %v1191
        %v1229 = vmul.f32 %v1088, %v1196
        %v1230 = vmul.f32 %v1089, %v1201
        %v1231 = vmul.f32 %v1090, %v1206
        %v1232 = vmul.f32 %v1091, %v1211
        %v1233 = vmul.f32 %v1092, %v1216
        %v1235 = vcombine.high %v1109, %v1109
        %v1237 = vunpack.c.l.s4 1966171168
        %v1238 = vunpack.c.0.s8 %v1237
        %v1239 = vlaneseq
        %v1240 = vshrl.u32 %v1239, 7
        %v1241 = vsub.s32 %v1238, %v1240
        %v1242 = vrot.slane %v1109, %v1241
        %v1244 = vunpack.c.l.s4 1966171168
        %v1245 = vunpack.c.0.s8 %v1244
        %v1246 = vlaneseq
        %v1247 = vshrl.u32 %v1246, 7
        %v1248 = vsub.s32 %v1245, %v1247
        %v1249 = vrot.slane %v1235, %v1248
        %v1250 = vcombine.high %v1242, %v1242
        %v1252 = vunpack.c.l.s4 1966171168
        %v1253 = vunpack.c.0.s8 %v1252
        %v1254 = vlaneseq
        %v1255 = vshrl.u32 %v1254, 7
        %v1256 = vsub.s32 %v1253, %v1255
        %v1257 = vrot.slane %v1242, %v1256
        %v1259 = vunpack.c.l.s4 1966171168
        %v1260 = vunpack.c.0.s8 %v1259
        %v1261 = vlaneseq
        %v1262 = vshrl.u32 %v1261, 7
        %v1263 = vsub.s32 %v1260, %v1262
        %v1264 = vrot.slane %v1249, %v1263
        %v1266 = vunpack.c.l.s4 1966171168
        %v1267 = vunpack.c.0.s8 %v1266
        %v1268 = vlaneseq
        %v1269 = vshrl.u32 %v1268, 7
        %v1270 = vsub.s32 %v1267, %v1269
        %v1271 = vrot.slane %v1250, %v1270
        %v1272 = vcombine.high %v1257, %v1257
        %v1273 = vcombine.high %v1271, %v1271
        %v1274 = vlaneseq
        %v1275 = vshrl.u32 %v1274, 7
        %v1276 = vsub.s32 0, %v1275
        %v1277 = vrot.slane %v1257, %v1276
        %v1278 = vlaneseq
        %v1279 = vshrl.u32 %v1278, 7
        %v1280 = vsub.s32 0, %v1279
        %v1281 = vrot.slane %v1271, %v1280
        %v1282 = vlaneseq
        %v1283 = vshrl.u32 %v1282, 7
        %v1284 = vsub.s32 0, %v1283
        %v1285 = vrot.slane %v1272, %v1284
        %v1286 = vlaneseq
        %v1287 = vshrl.u32 %v1286, 7
        %v1288 = vsub.s32 0, %v1287
        %v1289 = vrot.slane %v1273, %v1288
        %v1290 = vlaneseq
        %v1291 = vshrl.u32 %v1290, 7
        %v1292 = vsub.s32 0, %v1291
        %v1293 = vrot.slane %v1264, %v1292
        %v1299 = vmul.f32 %v1277, %v1137
        %v1300 = vmul.f32 %v1281, %v1137
        %v1301 = vmul.f32 %v1285, %v1137
        %v1302 = vmul.f32 %v1289, %v1137
        %v1303 = vmul.f32 %v1293, %v1137
        %v1305 = vsel %vm683, %v1299, 0
        %v1308 = vsel %vm683, %v1300, 0
        %v1311 = vsel %vm683, %v1301, 0
        %v1314 = vsel %vm683, %v1302, 0
        %v1317 = vsel %vm683, %v1303, 0
        %v1320 = vsel %vm683, %v1218, 0
        %v1323 = vsel %vm683, %v1219, 0
        %v1326 = vsel %vm683, %v1220, 0
        %v1329 = vsel %vm683, %v1221, 0
        %v1332 = vsel %vm683, %v1222, 0
        %v1335 = vsel %vm683, %v1223, 0
        %v1338 = vsel %vm683, %v1224, 0
        %v1341 = vsel %vm683, %v1225, 0
        %v1344 = vsel %vm683, %v1226, 0
        %v1347 = vsel %vm683, %v1227, 0
        %v1350 = vsel %vm683, %v1228, 0
        %v1353 = vsel %vm683, %v1229, 0
        %v1356 = vsel %vm683, %v1230, 0
        %v1359 = vsel %vm683, %v1231, 0
        %v1362 = vsel %vm683, %v1232, 0
        %v1365 = vsel %vm683, %v1233, 0
        %1367 = vmatprep.subr.mxu0 0.0
        %1368 = vmatpush1.xpose.msra.mxu0 %v1365
        %1369 = vmatprep.subr.mxu0 0.0
        %1370 = vmatpush1.xpose.msra.mxu0 %v1362
        %1371 = vmatprep.subr.mxu0 0.0
        %1372 = vmatpush1.xpose.msra.mxu0 %v1359
        %1373 = vmatprep.subr.mxu0 0.0
        %1374 = vmatpush1.xpose.msra.mxu0 %v1356
        %1375 = vmatprep.subr.mxu0 0.0
        %1376 = vmatpush1.xpose.msra.mxu0 %v1353
        %1377 = vmatprep.subr.mxu0 0.0
        %1378 = vmatpush1.xpose.msra.mxu0 %v1350
        %1379 = vmatprep.subr.mxu0 0.0
        %1380 = vmatpush1.xpose.msra.mxu0 %v1347
        %1381 = vmatprep.subr.mxu0 0.0
        %1382 = vmatpush1.xpose.msra.mxu0 %v1344
        %1383 = vmatprep.subr.mxu0 0.0
        %1384 = vmatpush1.xpose.msra.mxu0 %v1341
        %1385 = vmatprep.subr.mxu0 0.0
        %1386 = vmatpush1.xpose.msra.mxu0 %v1338
        %1387 = vmatprep.subr.mxu0 0.0
        %1388 = vmatpush1.xpose.msra.mxu0 %v1335
        %1389 = vmatprep.subr.mxu0 0.0
        %1390 = vmatpush1.xpose.msra.mxu0 %v1332
        %1391 = vmatprep.subr.mxu0 0.0
        %1392 = vmatpush1.xpose.msra.mxu0 %v1329
        %1393 = vmatprep.subr.mxu0 0.0
        %1394 = vmatpush1.xpose.msra.mxu0 %v1326
        %1395 = vmatprep.subr.mxu0 0.0
        %1396 = vmatpush1.xpose.msra.mxu0 %v1323
        %1397 = vmatprep.subr.mxu0 0.0
        %1398 = vmatpush1.xpose.msra.mxu0 %v1320
        %1399 = vmatprep.subr.mxu0 0.0
        %1400 = vmatpush2.xpose.msra.mxu0 0.0
        %1401 = vmatprep.subr.mxu0 0.0
        %1402 = vmatpush2.xpose.msra.mxu0 0.0
        %1403 = vmatprep.subr.mxu0 0.0
        %1404 = vmatpush2.xpose.msra.mxu0 0.0
        %1405 = vmatprep.subr.mxu0 0.0
        %1406 = vmatpush2.xpose.msra.mxu0 0.0
        %1407 = vmatprep.subr.mxu0 0.0
        %1408 = vmatpush2.xpose.msra.mxu0 0.0
        %1409 = vmatprep.subr.mxu0 0.0
        %1410 = vmatpush2.xpose.msra.mxu0 0.0
        %1411 = vmatprep.subr.mxu0 0.0
        %1412 = vmatpush2.xpose.msra.mxu0 0.0
        %1413 = vmatprep.subr.mxu0 0.0
        %1414 = vmatpush2.xpose.msra.mxu0 0.0
        %1415 = vmatprep.subr.mxu0 0.0
        %1416 = vmatpush2.xpose.msra.mxu0 0.0
        %1417 = vmatprep.subr.mxu0 0.0
        %1418 = vmatpush2.xpose.msra.mxu0 0.0
        %1419 = vmatprep.subr.mxu0 0.0
        %1420 = vmatpush2.xpose.msra.mxu0 0.0
        %1421 = vmatprep.subr.mxu0 0.0
        %1422 = vmatpush2.xpose.msra.mxu0 0.0
        %1423 = vmatprep.subr.mxu0 0.0
        %1424 = vmatpush2.xpose.msra.mxu0 0.0
        %1425 = vmatprep.subr.mxu0 0.0
        %1426 = vmatpush2.xpose.msra.mxu0 0.0
        %1427 = vmatprep.subr.mxu0 0.0
        %1428 = vmatpush2.xpose.msra.mxu0 0.0
        %1429 = vmatprep.subr.mxu0 0.0
        %1430 = vmatpush2.xpose.msra.mxu0 0.0
        %1431 = vmatprep.mubr.f32.mxu0 0.0
        %1432 = vmatmul.mubr.f32.gmra.mxu0 %v1305
        %v1433 = vpop.f32.mrf.mxu0
        %v1434 = vadd.f32 0.0, %v1433
        %v1435 = vpop.f32.mrf.mxu0
        %1436 = vmatprep.mubr.f32.mxu0 0.0
        %1437 = vmatmul.mubr.f32.gmra.mxu0 %v1308
        %v1438 = vpop.f32.mrf.mxu0
        %v1439 = vadd.f32 0.0, %v1438
        %v1440 = vpop.f32.mrf.mxu0
        %1441 = vmatprep.mubr.f32.mxu0 0.0
        %1442 = vmatmul.mubr.f32.gmra.mxu0 %v1311
        %v1443 = vpop.f32.mrf.mxu0
        %v1444 = vadd.f32 0.0, %v1443
        %v1445 = vpop.f32.mrf.mxu0
        %1446 = vmatprep.mubr.f32.mxu0 0.0
        %1447 = vmatmul.mubr.f32.gmra.mxu0 %v1314
        %v1448 = vpop.f32.mrf.mxu0
        %v1449 = vadd.f32 0.0, %v1448
        %v1450 = vpop.f32.mrf.mxu0
        %1451 = vmatprep.mubr.f32.mxu0 0.0
        %1452 = vmatmul.mubr.f32.gmra.mxu0 %v1317
        %v1453 = vpop.f32.mrf.mxu0
        %v1454 = vadd.f32 0.0, %v1453
        %v1455 = vpop.f32.mrf.mxu0
        %1456 = vdwg.mxu0
        %v1462 = vlaneseq
        %v1463 = vshrl.u32 %v1462, 7
        %v1464 = vsub.s32 0, %v1463
        %v1465 = vrot.slane %v1110, %v1464
        %v1466 = vlaneseq
        %v1467 = vshrl.u32 %v1466, 7
        %v1468 = vsub.s32 0, %v1467
        %v1469 = vrot.slane %v1111, %v1468
        %v1470 = vlaneseq
        %v1471 = vshrl.u32 %v1470, 7
        %v1472 = vsub.s32 0, %v1471
        %v1473 = vrot.slane %v1112, %v1472
        %v1474 = vlaneseq
        %v1475 = vshrl.u32 %v1474, 7
        %v1476 = vsub.s32 0, %v1475
        %v1477 = vrot.slane %v1113, %v1476
        %v1478 = vlaneseq
        %v1479 = vshrl.u32 %v1478, 7
        %v1480 = vsub.s32 0, %v1479
        %v1481 = vrot.slane %v1114, %v1480
        %1482 = vset.pattern.permute.xlu0 0
        %1483 = vperm.xlu0 %1482, %v1465
        %v1484 = vpop.permute.xlu0 %1483
        %1486 = vset.pattern.permute.xlu0 0
        %1487 = vperm.xlu0 %1486, %v1469
        %v1488 = vpop.permute.xlu0 %1487
        %1490 = vset.pattern.permute.xlu0 0
        %1491 = vperm.xlu0 %1490, %v1473
        %v1492 = vpop.permute.xlu0 %1491
        %1494 = vset.pattern.permute.xlu0 0
        %1495 = vperm.xlu0 %1494, %v1477
        %v1496 = vpop.permute.xlu0 %1495
        %1498 = vset.pattern.permute.xlu0 0
        %1499 = vperm.xlu0 %1498, %v1481
        %v1500 = vpop.permute.xlu0 %1499
        %v1502 = vadd.f32 %v1434, %v1484
        %v1503 = vadd.f32 %v1439, %v1488
        %v1504 = vadd.f32 %v1444, %v1492
        %v1505 = vadd.f32 %v1449, %v1496
        %v1506 = vadd.f32 %v1454, %v1500
        %1507 = vst [vmem:[%s531] sm:$0xff] %v1502
        %1508 = vst [vmem:[%s531 + $0x8] sm:$0xff] %v1503
        %1509 = vst [vmem:[%s531 + $0x10] sm:$0xff] %v1504
        %1510 = vst [vmem:[%s531 + $0x18] sm:$0xff] %v1505
        %1511 = vmatprep.subr.mxu0 0.0
        %1512 = vmatpush1.msra.mxu0 %v1233
        %1513 = vmatprep.subr.mxu0 0.0
        %1514 = vmatpush1.msra.mxu0 %v1232
        %1515 = vmatprep.subr.mxu0 0.0
        %1516 = vmatpush1.msra.mxu0 %v1231
        %1517 = vmatprep.subr.mxu0 0.0
        %1518 = vmatpush1.msra.mxu0 %v1230
        %1519 = vmatprep.subr.mxu0 0.0
        %1520 = vmatpush1.msra.mxu0 %v1229
        %1521 = vmatprep.subr.mxu0 0.0
        %1522 = vmatpush1.msra.mxu0 %v1228
        %1523 = vmatprep.subr.mxu0 0.0
        %1524 = vmatpush1.msra.mxu0 %v1227
        %1525 = vmatprep.subr.mxu0 0.0
        %1526 = vmatpush1.msra.mxu0 %v1226
        %1527 = vmatprep.subr.mxu0 0.0
        %1528 = vmatpush1.msra.mxu0 %v1225
        %1529 = vmatprep.subr.mxu0 0.0
        %1530 = vmatpush1.msra.mxu0 %v1224
        %1531 = vmatprep.subr.mxu0 0.0
        %1532 = vmatpush1.msra.mxu0 %v1223
        %1533 = vmatprep.subr.mxu0 0.0
        %1534 = vmatpush1.msra.mxu0 %v1222
        %1535 = vmatprep.subr.mxu0 0.0
        %1536 = vmatpush1.msra.mxu0 %v1221
        %1537 = vmatprep.subr.mxu0 0.0
        %1538 = vmatpush1.msra.mxu0 %v1220
        %1539 = vmatprep.subr.mxu0 0.0
        %1540 = vmatpush1.msra.mxu0 %v1219
        %1541 = vmatprep.subr.mxu0 0.0
        %1542 = vmatpush1.msra.mxu0 %v1218
        %1543 = vmatprep.subr.mxu0 0.0
        %1544 = vmatpush2.msra.mxu0 0.0
        %1545 = vmatprep.subr.mxu0 0.0
        %1546 = vmatpush2.msra.mxu0 0.0
        %1547 = vmatprep.subr.mxu0 0.0
        %1548 = vmatpush2.msra.mxu0 0.0
        %1549 = vmatprep.subr.mxu0 0.0
        %1550 = vmatpush2.msra.mxu0 0.0
        %1551 = vmatprep.subr.mxu0 0.0
        %1552 = vmatpush2.msra.mxu0 0.0
        %1553 = vmatprep.subr.mxu0 0.0
        %1554 = vmatpush2.msra.mxu0 0.0
        %1555 = vmatprep.subr.mxu0 0.0
        %1556 = vmatpush2.msra.mxu0 0.0
        %1557 = vmatprep.subr.mxu0 0.0
        %1558 = vmatpush2.msra.mxu0 0.0
        %1559 = vmatprep.subr.mxu0 0.0
        %1560 = vmatpush2.msra.mxu0 0.0
        %1561 = vmatprep.subr.mxu0 0.0
        %1562 = vmatpush2.msra.mxu0 0.0
        %1563 = vmatprep.subr.mxu0 0.0
        %1564 = vmatpush2.msra.mxu0 0.0
        %1565 = vmatprep.subr.mxu0 0.0
        %1566 = vmatpush2.msra.mxu0 0.0
        %1567 = vmatprep.subr.mxu0 0.0
        %1568 = vmatpush2.msra.mxu0 0.0
        %1569 = vmatprep.subr.mxu0 0.0
        %1570 = vmatpush2.msra.mxu0 0.0
        %1571 = vmatprep.subr.mxu0 0.0
        %1572 = vmatpush2.msra.mxu0 0.0
        %1573 = vmatprep.subr.mxu0 0.0
        %1574 = vmatpush2.msra.mxu0 0.0
        %1575 = vmatprep.mubr.f32.mxu0 0.0
        %1576 = vmatmul.mubr.f32.gmra.mxu0 %v1506
        %v1577 = vpop.f32.mrf.mxu0
        %v1578 = vadd.f32 0.0, %v1577
        %v1579 = vpop.f32.mrf.mxu0
        %1580 = vdwg.mxu0
        %v1581 = vmul.f32 %v1137, %v1578
        %v1582 = vsel %vm683, %v1581, 0.0
        %v1583 = vrot.slane %v1582, 4
        %v1584 = vadd.f32 %v1582, %v1583
        %v1585 = vrot.slane %v1584, 2
        %v1586 = vadd.f32 %v1584, %v1585
        %v1587 = vrot.slane %v1586, 1
        %v1588 = vadd.f32 %v1586, %v1587
        %v1589 = vmul.f32 %v679, %v1135
        %v1590 = vmul.f32 %v1093, %v1141
        %v1591 = vmul.f32 %v1094, %v1146
        %v1592 = vmul.f32 %v1095, %v1151
        %v1593 = vmul.f32 %v1096, %v1156
        %v1594 = vmul.f32 %v1097, %v1161
        %v1595 = vmul.f32 %v1098, %v1166
        %v1596 = vmul.f32 %v1099, %v1171
        %v1597 = vmul.f32 %v1100, %v1176
        %v1598 = vmul.f32 %v1101, %v1181
        %v1599 = vmul.f32 %v1102, %v1186
        %v1600 = vmul.f32 %v1103, %v1191
        %v1601 = vmul.f32 %v1104, %v1196
        %v1602 = vmul.f32 %v1105, %v1201
        %v1603 = vmul.f32 %v1106, %v1206
        %v1604 = vmul.f32 %v1107, %v1211
        %v1605 = vmul.f32 %v1108, %v1216
        %v1606 = vmul.f32 %v1277, %v1589
        %v1607 = vmul.f32 %v1281, %v1589
        %v1608 = vmul.f32 %v1285, %v1589
        %v1609 = vmul.f32 %v1289, %v1589
        %v1610 = vmul.f32 %v1293, %v1589
        %v1612 = vsel %vm683, %v1606, 0
        %v1615 = vsel %vm683, %v1607, 0
        %v1618 = vsel %vm683, %v1608, 0
        %v1621 = vsel %vm683, %v1609, 0
        %v1624 = vsel %vm683, %v1610, 0
        %v1627 = vsel %vm683, %v1590, 0
        %v1630 = vsel %vm683, %v1591, 0
        %v1633 = vsel %vm683, %v1592, 0
        %v1636 = vsel %vm683, %v1593, 0
        %v1639 = vsel %vm683, %v1594, 0
        %v1642 = vsel %vm683, %v1595, 0
        %v1645 = vsel %vm683, %v1596, 0
        %v1648 = vsel %vm683, %v1597, 0
        %v1651 = vsel %vm683, %v1598, 0
        %v1654 = vsel %vm683, %v1599, 0
        %v1657 = vsel %vm683, %v1600, 0
        %v1660 = vsel %vm683, %v1601, 0
        %v1663 = vsel %vm683, %v1602, 0
        %v1666 = vsel %vm683, %v1603, 0
        %v1669 = vsel %vm683, %v1604, 0
        %v1672 = vsel %vm683, %v1605, 0
        %1674 = vmatprep.subr.mxu0 0.0
        %1675 = vmatpush1.xpose.msra.mxu0 %v1672
        %1676 = vmatprep.subr.mxu0 0.0
        %1677 = vmatpush1.xpose.msra.mxu0 %v1669
        %1678 = vmatprep.subr.mxu0 0.0
        %1679 = vmatpush1.xpose.msra.mxu0 %v1666
        %1680 = vmatprep.subr.mxu0 0.0
        %1681 = vmatpush1.xpose.msra.mxu0 %v1663
        %1682 = vmatprep.subr.mxu0 0.0
        %1683 = vmatpush1.xpose.msra.mxu0 %v1660
        %1684 = vmatprep.subr.mxu0 0.0
        %1685 = vmatpush1.xpose.msra.mxu0 %v1657
        %1686 = vmatprep.subr.mxu0 0.0
        %1687 = vmatpush1.xpose.msra.mxu0 %v1654
        %1688 = vmatprep.subr.mxu0 0.0
        %1689 = vmatpush1.xpose.msra.mxu0 %v1651
        %1690 = vmatprep.subr.mxu0 0.0
        %1691 = vmatpush1.xpose.msra.mxu0 %v1648
        %1692 = vmatprep.subr.mxu0 0.0
        %1693 = vmatpush1.xpose.msra.mxu0 %v1645
        %1694 = vmatprep.subr.mxu0 0.0
        %1695 = vmatpush1.xpose.msra.mxu0 %v1642
        %1696 = vmatprep.subr.mxu0 0.0
        %1697 = vmatpush1.xpose.msra.mxu0 %v1639
        %1698 = vmatprep.subr.mxu0 0.0
        %1699 = vmatpush1.xpose.msra.mxu0 %v1636
        %1700 = vmatprep.subr.mxu0 0.0
        %1701 = vmatpush1.xpose.msra.mxu0 %v1633
        %1702 = vmatprep.subr.mxu0 0.0
        %1703 = vmatpush1.xpose.msra.mxu0 %v1630
        %1704 = vmatprep.subr.mxu0 0.0
        %1705 = vmatpush1.xpose.msra.mxu0 %v1627
        %1706 = vmatprep.subr.mxu0 0.0
        %1707 = vmatpush2.xpose.msra.mxu0 0.0
        %1708 = vmatprep.subr.mxu0 0.0
        %1709 = vmatpush2.xpose.msra.mxu0 0.0
        %1710 = vmatprep.subr.mxu0 0.0
        %1711 = vmatpush2.xpose.msra.mxu0 0.0
        %1712 = vmatprep.subr.mxu0 0.0
        %1713 = vmatpush2.xpose.msra.mxu0 0.0
        %1714 = vmatprep.subr.mxu0 0.0
        %1715 = vmatpush2.xpose.msra.mxu0 0.0
        %1716 = vmatprep.subr.mxu0 0.0
        %1717 = vmatpush2.xpose.msra.mxu0 0.0
        %1718 = vmatprep.subr.mxu0 0.0
        %1719 = vmatpush2.xpose.msra.mxu0 0.0
        %1720 = vmatprep.subr.mxu0 0.0
        %1721 = vmatpush2.xpose.msra.mxu0 0.0
        %1722 = vmatprep.subr.mxu0 0.0
        %1723 = vmatpush2.xpose.msra.mxu0 0.0
        %1724 = vmatprep.subr.mxu0 0.0
        %1725 = vmatpush2.xpose.msra.mxu0 0.0
        %1726 = vmatprep.subr.mxu0 0.0
        %1727 = vmatpush2.xpose.msra.mxu0 0.0
        %1728 = vmatprep.subr.mxu0 0.0
        %1729 = vmatpush2.xpose.msra.mxu0 0.0
        %1730 = vmatprep.subr.mxu0 0.0
        %1731 = vmatpush2.xpose.msra.mxu0 0.0
        %1732 = vmatprep.subr.mxu0 0.0
        %1733 = vmatpush2.xpose.msra.mxu0 0.0
        %1734 = vmatprep.subr.mxu0 0.0
        %1735 = vmatpush2.xpose.msra.mxu0 0.0
        %1736 = vmatprep.subr.mxu0 0.0
        %1737 = vmatpush2.xpose.msra.mxu0 0.0
        %1738 = vmatprep.mubr.f32.mxu0 0.0
        %1739 = vmatmul.mubr.f32.gmra.mxu0 %v1612
        %v1740 = vpop.f32.mrf.mxu0
        %v1741 = vadd.f32 0.0, %v1740
        %v1742 = vpop.f32.mrf.mxu0
        %1743 = vmatprep.mubr.f32.mxu0 0.0
        %1744 = vmatmul.mubr.f32.gmra.mxu0 %v1615
        %v1745 = vpop.f32.mrf.mxu0
        %v1746 = vadd.f32 0.0, %v1745
        %v1747 = vpop.f32.mrf.mxu0
        %1748 = vmatprep.mubr.f32.mxu0 0.0
        %1749 = vmatmul.mubr.f32.gmra.mxu0 %v1618
        %v1750 = vpop.f32.mrf.mxu0
        %v1751 = vadd.f32 0.0, %v1750
        %v1752 = vpop.f32.mrf.mxu0
        %1753 = vmatprep.mubr.f32.mxu0 0.0
        %1754 = vmatmul.mubr.f32.gmra.mxu0 %v1621
        %v1755 = vpop.f32.mrf.mxu0
        %v1756 = vadd.f32 0.0, %v1755
        %v1757 = vpop.f32.mrf.mxu0
        %1758 = vmatprep.mubr.f32.mxu0 0.0
        %1759 = vmatmul.mubr.f32.gmra.mxu0 %v1624
        %v1760 = vpop.f32.mrf.mxu0
        %v1761 = vadd.f32 0.0, %v1760
        %v1762 = vpop.f32.mrf.mxu0
        %1763 = vdwg.mxu0
        %v1764 = vadd.f32 %v1741, %v1484
        %v1765 = vadd.f32 %v1746, %v1488
        %v1766 = vadd.f32 %v1751, %v1492
        %v1767 = vadd.f32 %v1756, %v1496
        %v1768 = vadd.f32 %v1761, %v1500
        %s1769 = scalar_lea.vmem %s531, 32 [#allocation6]
        %1770 = vst [vmem:[%s1769] sm:$0xff] %v1764
        %1771 = vst [vmem:[%s1769 + $0x8] sm:$0xff] %v1765
        %1772 = vst [vmem:[%s1769 + $0x10] sm:$0xff] %v1766
        %1773 = vst [vmem:[%s1769 + $0x18] sm:$0xff] %v1767
        %1774 = vmatprep.subr.mxu0 0.0
        %1775 = vmatpush1.msra.mxu0 %v1605
        %1776 = vmatprep.subr.mxu0 0.0
        %1777 = vmatpush1.msra.mxu0 %v1604
        %1778 = vmatprep.subr.mxu0 0.0
        %1779 = vmatpush1.msra.mxu0 %v1603
        %1780 = vmatprep.subr.mxu0 0.0
        %1781 = vmatpush1.msra.mxu0 %v1602
        %1782 = vmatprep.subr.mxu0 0.0
        %1783 = vmatpush1.msra.mxu0 %v1601
        %1784 = vmatprep.subr.mxu0 0.0
        %1785 = vmatpush1.msra.mxu0 %v1600
        %1786 = vmatprep.subr.mxu0 0.0
        %1787 = vmatpush1.msra.mxu0 %v1599
        %1788 = vmatprep.subr.mxu0 0.0
        %1789 = vmatpush1.msra.mxu0 %v1598
        %1790 = vmatprep.subr.mxu0 0.0
        %1791 = vmatpush1.msra.mxu0 %v1597
        %1792 = vmatprep.subr.mxu0 0.0
        %1793 = vmatpush1.msra.mxu0 %v1596
        %1794 = vmatprep.subr.mxu0 0.0
        %1795 = vmatpush1.msra.mxu0 %v1595
        %1796 = vmatprep.subr.mxu0 0.0
        %1797 = vmatpush1.msra.mxu0 %v1594
        %1798 = vmatprep.subr.mxu0 0.0
        %1799 = vmatpush1.msra.mxu0 %v1593
        %1800 = vmatprep.subr.mxu0 0.0
        %1801 = vmatpush1.msra.mxu0 %v1592
        %1802 = vmatprep.subr.mxu0 0.0
        %1803 = vmatpush1.msra.mxu0 %v1591
        %1804 = vmatprep.subr.mxu0 0.0
        %1805 = vmatpush1.msra.mxu0 %v1590
        %1806 = vmatprep.subr.mxu0 0.0
        %1807 = vmatpush2.msra.mxu0 0.0
        %1808 = vmatprep.subr.mxu0 0.0
        %1809 = vmatpush2.msra.mxu0 0.0
        %1810 = vmatprep.subr.mxu0 0.0
        %1811 = vmatpush2.msra.mxu0 0.0
        %1812 = vmatprep.subr.mxu0 0.0
        %1813 = vmatpush2.msra.mxu0 0.0
        %1814 = vmatprep.subr.mxu0 0.0
        %1815 = vmatpush2.msra.mxu0 0.0
        %1816 = vmatprep.subr.mxu0 0.0
        %1817 = vmatpush2.msra.mxu0 0.0
        %1818 = vmatprep.subr.mxu0 0.0
        %1819 = vmatpush2.msra.mxu0 0.0
        %1820 = vmatprep.subr.mxu0 0.0
        %1821 = vmatpush2.msra.mxu0 0.0
        %1822 = vmatprep.subr.mxu0 0.0
        %1823 = vmatpush2.msra.mxu0 0.0
        %1824 = vmatprep.subr.mxu0 0.0
        %1825 = vmatpush2.msra.mxu0 0.0
        %1826 = vmatprep.subr.mxu0 0.0
        %1827 = vmatpush2.msra.mxu0 0.0
        %1828 = vmatprep.subr.mxu0 0.0
        %1829 = vmatpush2.msra.mxu0 0.0
        %1830 = vmatprep.subr.mxu0 0.0
        %1831 = vmatpush2.msra.mxu0 0.0
        %1832 = vmatprep.subr.mxu0 0.0
        %1833 = vmatpush2.msra.mxu0 0.0
        %1834 = vmatprep.subr.mxu0 0.0
        %1835 = vmatpush2.msra.mxu0 0.0
        %1836 = vmatprep.subr.mxu0 0.0
        %1837 = vmatpush2.msra.mxu0 0.0
        %1838 = vmatprep.mubr.f32.mxu0 0.0
        %1839 = vmatmul.mubr.f32.gmra.mxu0 %v1768
        %v1840 = vpop.f32.mrf.mxu0
        %v1841 = vadd.f32 0.0, %v1840
        %v1842 = vpop.f32.mrf.mxu0
        %1843 = vdwg.mxu0
        %v1844 = vmul.f32 %v1589, %v1841
        %v1845 = vsel %vm683, %v1844, 0.0
        %v1846 = vrot.slane %v1845, 4
        %v1847 = vadd.f32 %v1845, %v1846
        %v1848 = vrot.slane %v1847, 2
        %v1849 = vadd.f32 %v1847, %v1848
        %v1850 = vrot.slane %v1849, 1
        %v1851 = vadd.f32 %v1849, %v1850
        %vm1852 = vcmask 1040384
        %v1853 = vsel %vm1852, %v1588, %v1851
        %v1854 = vld [vmem:[%s11] sm:$0xff]
        %v1855 = vld [vmem:[%s11 + $0x8] sm:$0xff]
        %v1856 = vld [vmem:[%s11 + $0x10] sm:$0xff]
        %v1858 = vsel %vm683, %v1853, 0
        %1860 = vmatprep.subr.mxu0 0.0
        %1861 = vmatpush1.msra.mxu0 0.0
        %1862 = vmatprep.subr.mxu0 0.0
        %1863 = vmatpush1.msra.mxu0 0.0
        %1864 = vmatprep.subr.mxu0 0.0
        %1865 = vmatpush1.msra.mxu0 0.0
        %1866 = vmatprep.subr.mxu0 0.0
        %1867 = vmatpush1.msra.mxu0 0.0
        %1868 = vmatprep.subr.mxu0 0.0
        %1869 = vmatpush1.msra.mxu0 0.0
        %1870 = vmatprep.subr.mxu0 0.0
        %1871 = vmatpush1.msra.mxu0 0.0
        %1872 = vmatprep.subr.mxu0 0.0
        %1873 = vmatpush1.msra.mxu0 0.0
        %1874 = vmatprep.subr.mxu0 0.0
        %1875 = vmatpush1.msra.mxu0 0.0
        %1876 = vmatprep.subr.mxu0 0.0
        %1877 = vmatpush1.msra.mxu0 0.0
        %1878 = vmatprep.subr.mxu0 0.0
        %1879 = vmatpush1.msra.mxu0 0.0
        %1880 = vmatprep.subr.mxu0 0.0
        %1881 = vmatpush1.msra.mxu0 0.0
        %1882 = vmatprep.subr.mxu0 0.0
        %1883 = vmatpush1.msra.mxu0 0.0
        %1884 = vmatprep.subr.mxu0 0.0
        %1885 = vmatpush1.msra.mxu0 0.0
        %1886 = vmatprep.subr.mxu0 0.0
        %1887 = vmatpush1.msra.mxu0 %v1856
        %1888 = vmatprep.subr.mxu0 0.0
        %1889 = vmatpush1.msra.mxu0 %v1855
        %1890 = vmatprep.subr.mxu0 0.0
        %1891 = vmatpush1.msra.mxu0 %v1854
        %1892 = vmatprep.subr.mxu0 0.0
        %1893 = vmatpush2.msra.mxu0 0.0
        %1894 = vmatprep.subr.mxu0 0.0
        %1895 = vmatpush2.msra.mxu0 0.0
        %1896 = vmatprep.subr.mxu0 0.0
        %1897 = vmatpush2.msra.mxu0 0.0
        %1898 = vmatprep.subr.mxu0 0.0
        %1899 = vmatpush2.msra.mxu0 0.0
        %1900 = vmatprep.subr.mxu0 0.0
        %1901 = vmatpush2.msra.mxu0 0.0
        %1902 = vmatprep.subr.mxu0 0.0
        %1903 = vmatpush2.msra.mxu0 0.0
        %1904 = vmatprep.subr.mxu0 0.0
        %1905 = vmatpush2.msra.mxu0 0.0
        %1906 = vmatprep.subr.mxu0 0.0
        %1907 = vmatpush2.msra.mxu0 0.0
        %1908 = vmatprep.subr.mxu0 0.0
        %1909 = vmatpush2.msra.mxu0 0.0
        %1910 = vmatprep.subr.mxu0 0.0
        %1911 = vmatpush2.msra.mxu0 0.0
        %1912 = vmatprep.subr.mxu0 0.0
        %1913 = vmatpush2.msra.mxu0 0.0
        %1914 = vmatprep.subr.mxu0 0.0
        %1915 = vmatpush2.msra.mxu0 0.0
        %1916 = vmatprep.subr.mxu0 0.0
        %1917 = vmatpush2.msra.mxu0 0.0
        %1918 = vmatprep.subr.mxu0 0.0
        %1919 = vmatpush2.msra.mxu0 0.0
        %1920 = vmatprep.subr.mxu0 0.0
        %1921 = vmatpush2.msra.mxu0 0.0
        %1922 = vmatprep.subr.mxu0 0.0
        %1923 = vmatpush2.msra.mxu0 0.0
        %1924 = vmatprep.mubr.f32.mxu0 0.0
        %1925 = vmatmul.mubr.f32.gmra.mxu0 %v1858
        %v1926 = vpop.f32.mrf.mxu0
        %v1927 = vadd.f32 0.0, %v1926
        %v1928 = vpop.f32.mrf.mxu0
        %1929 = vdwg.mxu0
        %v1930 = vld [vmem:[%s12] sm:$0x1]
        %v1932 = vlaneseq
        %v1933 = vshrl.u32 %v1932, 7
        %v1934 = vsub.s32 0, %v1933
        %v1935 = vrot.slane %v1930, %v1934
        %v1937 = vmul.f32 %v1927, %v1935
        %v1938 = vld [vmem:[%s13] sm:$0x1]
        %v1940 = vlaneseq
        %v1941 = vshrl.u32 %v1940, 7
        %v1942 = vsub.s32 0, %v1941
        %v1943 = vrot.slane %v1938, %v1942
        %v1945 = vadd.f32 %v1937, %v1943
        %vm1946 = vcmask 58368
        %1947 = vst.msk [vmem:[%s524] sm:$0x3] %vm1946, %v1945
        %s1948 = sand.u32 %s346, 1
        %s1949 = scalar_lea.sflag [#allocation3], %s1948
        %s1950 = sand.u32 %s346, 1
        %s1951 = smul.addr %s1950, 2
        %s1952 = scalar_lea.vmem [#allocation5], %s1951
        %s1953 = sand.u32 %s372, 1
        %s1954 = scalar_lea.sflag [#allocation7], %s1953
        %s1955 = sand.u32 %s372, 1
        %s1956 = smul.addr %s1955, 64
        %s1957 = scalar_lea.vmem [#allocation6], %s1956
        // Predicated region
        $region81: #{tpu_custom_call.1} parent=75 // pred_check
          %p1958 = pneg %p356
        $region82: #{tpu_custom_call.1} parent=75 // pred_check_branch
          %1960 = sbr.rel (%p1958) target = $region84
        $region83: #{tpu_custom_call.1} parent=75 // pred_region
          %s1962 = ssub.s32 32, 32
          %1963 = vsyncadd %s1949, %s1962
          %s1964 = smul.addr %s34, 32
          %s1965 = scalar_lea.hbm %s14, %s1964
          %s1967 = sshll.u32 %s1952, 4
          %s1968 = int_to_ptr.vmem [resolvable:$true] %s1967
          %1970 = dma.vmem_to_hbm [thread:$0]  %s1968, 32, %s1965, %s1949
        $region84: #{tpu_custom_call.1} parent=75 // pred_fallthru
          _
        // Predicated region
        $region85: #{tpu_custom_call.1} parent=75 // pred_check
          %p1971 = pneg %p382
        $region86: #{tpu_custom_call.1} parent=75 // pred_check_branch
          %1973 = sbr.rel (%p1971) target = $region88
        $region87: #{tpu_custom_call.1} parent=75 // pred_region
          %s1974 = smul.u32 2, %s34
          %s1976 = ssub.s32 1024, 1024
          %1977 = vsyncadd %s1954, %s1976
          %s1978 = smul.addr %s1974, 4
          %s1979 = smul.addr %s1978, 128
          %s1980 = scalar_lea.hbm %s15, %s1979
          %s1981 = sshll.u32 %s1957, 4
          %s1982 = int_to_ptr.vmem [resolvable:$true] %s1981
          %1987 = dma.vmem_to_hbm [thread:$0]  %s1982, 1024, %s1980, %s1954, 128, 128, 8
        $region88: #{tpu_custom_call.1} parent=75 // pred_fallthru
          _
      $region76: #{tpu_custom_call.1} parent=5 // pred_fallthru
        _
      %p1988 = scmp.le.s32.totalorder 2, %s29
      // Predicated region
      $region89: #{tpu_custom_call.1} parent=5 // pred_check
        %p1989 = pneg %p1988
      $region90: #{tpu_custom_call.1} parent=5 // pred_check_branch
        %1991 = sbr.rel (%p1989) target = $region92
      $region91: #{tpu_custom_call.1} parent=5 // pred_region
        %s1992 = ssub.s32 %s29, 2
        // Predicated region
        $region93: #{tpu_custom_call.1} parent=91 // pred_check
          %p1993 = pneg %p362
        $region94: #{tpu_custom_call.1} parent=91 // pred_check_branch
          %1995 = sbr.rel (%p1993) target = $region96
        $region95: #{tpu_custom_call.1} parent=91 // pred_region
          %s1996 = sand.u32 %s347, 1
          %s1997 = scalar_lea.sflag [#allocation3], %s1996
          %s1998 = sand.u32 %s347, 1
          %s1999 = smul.addr %s1998, 2
          %s2000 = scalar_lea.vmem [#allocation5], %s1999
          %2001 = dma.done %s1997, 32
        $region96: #{tpu_custom_call.1} parent=91 // pred_fallthru
          _
        // Predicated region
        $region97: #{tpu_custom_call.1} parent=91 // pred_check
          %p2002 = pneg %p388
        $region98: #{tpu_custom_call.1} parent=91 // pred_check_branch
          %2004 = sbr.rel (%p2002) target = $region100
        $region99: #{tpu_custom_call.1} parent=91 // pred_region
          %s2005 = sand.u32 %s373, 1
          %s2006 = scalar_lea.sflag [#allocation7], %s2005
          %s2007 = sand.u32 %s373, 1
          %s2008 = smul.addr %s2007, 64
          %s2009 = scalar_lea.vmem [#allocation6], %s2008
          %2010 = dma.done %s2006, 1024
        $region100: #{tpu_custom_call.1} parent=91 // pred_fallthru
          _
      $region92: #{tpu_custom_call.1} parent=5 // pred_fallthru
        _
    $region6: #{tpu_custom_call.1} parent=1 // loop_footer
      %s33 = sadd.s32 1, %s29
    $region7: #{tpu_custom_call.1} parent=1 // loop_footer_branch
      %28 = sbr.rel target = $region3
    $region8: #{tpu_custom_call.1} parent=1 // loop_exit
      _
    %2011 = vsyncpa [#allocation3], 1
    %s2012 = scalar_lea.sflag [#allocation3], 1
    %2013 = vsyncpa %s2012, 1
    %2014 = vsyncpa [#allocation7], 1
    %s2015 = scalar_lea.sflag [#allocation7], 1
    %2016 = vsyncpa %s2015, 1
    %2017 = vsyncpa [#allocation4], 1
    %s2018 = scalar_lea.sflag [#allocation4], 1
    %2019 = vsyncpa %s2018, 1

</llo_original>
